<compile_context>
chip_gen: v6e
topology: v6e:2x2x1
jax: 0.10.0
libtpu: 0.0.40
codegen_flags: <defaults>
</compile_context>

<pallas_src>
import math
import functools

import jax
import jax.numpy as jnp
from jax.experimental import pallas as pl
from jax.experimental.pallas import tpu as pltpu


# ----------------------------------------------------------------------------
# In-kernel math helpers
# ----------------------------------------------------------------------------
def _erf_f32(z):
    # Abramowitz & Stegun 7.1.26 rational approximation (max abs err ~1.5e-7).
    # TODO(synk): if lax.erf gains a Mosaic lowering, replace with jax.lax.erf.
    a1, a2, a3, a4, a5 = 0.254829592, -0.284496736, 1.421413741, -1.453152027, 1.061405429
    p = 0.3275911
    sign = jnp.where(z >= 0.0, 1.0, -1.0)
    az = jnp.abs(z)
    t = 1.0 / (1.0 + p * az)
    poly = ((((a5 * t + a4) * t + a3) * t + a2) * t + a1) * t
    return sign * (1.0 - poly * jnp.exp(-az * az))


def _gelu(x):
    # exact gelu: x * 0.5 * (1 + erf(x / sqrt(2)))
    return x * 0.5 * (1.0 + _erf_f32(x * (1.0 / math.sqrt(2.0))))


# ----------------------------------------------------------------------------
# Fully fused forward kernel: one grid step == one batch element.
# Everything (LN -> MHA -> LN -> MHA -> LN -> FFN / MHA -> LN -> FFN) runs on
# VMEM-resident tiles; only x, x1, x3 leave the chip.
# ----------------------------------------------------------------------------
def _make_fused_kernel(heads, d_model):
    dk = d_model // heads
    scale = 1.0 / math.sqrt(dk)

    def kernel(v_ref, w_ref, s_ref,
               ln_g_ref, ln_b_ref,           # (4,1,D), (4,1,D)
               aw_ref, ab_ref,               # (3,4,D,D), (3,4,1,D)  [q,k,v,o]
               fw1_ref, fb1_ref,             # (2,D,4D), (2,1,4D)
               fw2_ref, fb2_ref,             # (2,4D,D), (2,1,D)
               x_ref, x1_ref, x3_ref):
        v_in = v_ref[0]                       # (Lv, D)
        w_in = w_ref[0]                       # (Lw, D)
        s_in = s_ref[0]                       # (Ls, D)

        def layer_norm(x, i):
            m = jnp.mean(x, axis=-1, keepdims=True)
            var = jnp.mean((x - m) ** 2, axis=-1, keepdims=True)
            xn = (x - m) * jax.lax.rsqrt(var + 1e-5)
            return xn * ln_g_ref[i] + ln_b_ref[i]          # (1,D) broadcasts

        def mha(q_in, kv, a):
            # fused QKV projections
            q = jnp.dot(q_in, aw_ref[a, 0], preferred_element_type=jnp.float32) + ab_ref[a, 0]
            k = jnp.dot(kv,   aw_ref[a, 1], preferred_element_type=jnp.float32) + ab_ref[a, 1]
            vv = jnp.dot(kv,  aw_ref[a, 2], preferred_element_type=jnp.float32) + ab_ref[a, 2]
            wo = aw_ref[a, 3]                              # (D, D)

            out = jnp.zeros((q_in.shape[0], d_model), jnp.float32)
            # Static per-head loop; instead of concat + out-proj we fold each
            # head into the output projection:  concat @ Wo == sum_h h @ Wo_h.
            for h in range(heads):
                sl = slice(h * dk, (h + 1) * dk)
                sc = jnp.dot(q[:, sl], k[:, sl].T,
                             preferred_element_type=jnp.float32) * scale
                sc = sc - jnp.max(sc, axis=-1, keepdims=True)
                e = jnp.exp(sc)
                p = e * pl.reciprocal(jnp.sum(e, axis=-1, keepdims=True),
                                      approx=True)
                head = jnp.dot(p, vv[:, sl], preferred_element_type=jnp.float32)
                out = out + jnp.dot(head, wo[sl, :],
                                    preferred_element_type=jnp.float32)
            return out + ab_ref[a, 3]

        def ffn(x, f):
            h1 = jnp.dot(x, fw1_ref[f], preferred_element_type=jnp.float32) + fb1_ref[f]
            h1 = _gelu(h1)
            return jnp.dot(h1, fw2_ref[f], preferred_element_type=jnp.float32) + fb2_ref[f]

        # ----- forward (dropout == identity) -----
        w_n = layer_norm(w_in, 0)                  # norm_1
        x = w_n + mha(w_n, w_n, 0)                 # w + attn_1(w, w, w)
        x2 = layer_norm(x, 1)                      # norm_2
        x = x + mha(x2, v_in, 1)                   # x + attn_2(x2, v, v)
        x2 = layer_norm(x, 2)                      # norm_3
        x1 = x + ffn(x2, 0)                        # x + ff1(x2)
        x = x + mha(x2, s_in, 2)                   # x + attn_3(x2, s, s)
        x2b = layer_norm(x, 3)                     # norm_4
        x3 = x + ffn(x2b, 1)                       # x + ff2(x2b)

        x_ref[0] = x
        x1_ref[0] = x1
        x3_ref[0] = x3

    return kernel


# ----------------------------------------------------------------------------
# Wrapper: pack parameters into a few stacked tensors, launch one pallas_call.
# ----------------------------------------------------------------------------
def _pack_params(P):
    ln_g = jnp.stack([P["ln1_g"], P["ln2_g"], P["ln3_g"], P["ln4_g"]])       # (4,1,D)
    ln_b = jnp.stack([P["ln1_b"], P["ln2_b"], P["ln3_b"], P["ln4_b"]])       # (4,1,D)
    aw = jnp.stack([jnp.stack([P[n][k] for k in ("wq", "wk", "wv", "wo")])
                    for n in ("attn1", "attn2", "attn3")])                   # (3,4,D,D)
    ab = jnp.stack([jnp.stack([P[n][k] for k in ("bq", "bk", "bv", "bo")])
                    for n in ("attn1", "attn2", "attn3")])                   # (3,4,1,D)
    fw1 = jnp.stack([P["ff1"]["w1"], P["ff2"]["w1"]])                        # (2,D,4D)
    fb1 = jnp.stack([P["ff1"]["b1"], P["ff2"]["b1"]])                        # (2,1,4D)
    fw2 = jnp.stack([P["ff1"]["w2"], P["ff2"]["w2"]])                        # (2,4D,D)
    fb2 = jnp.stack([P["ff1"]["b2"], P["ff2"]["b2"]])                        # (2,1,D)
    return ln_g, ln_b, aw, ab, fw1, fb1, fw2, fb2


@functools.partial(jax.jit, static_argnums=(4,))
def dual_attention_forward(v_feat, w_feat, s_feat, P, heads):
    ln_g, ln_b, aw, ab, fw1, fb1, fw2, fb2 = _pack_params(P)
    B, Lw, D = w_feat.shape
    Lv, Ls = v_feat.shape[1], s_feat.shape[1]

    kernel = _make_fused_kernel(heads, D)

    def seq_spec(L):
        return pl.BlockSpec((1, L, D), lambda b: (b, 0, 0))

    def rep_spec(a):                      # whole weight tensor, resident
        nd = a.ndim
        return pl.BlockSpec(a.shape, lambda b, _nd=nd: (0,) * _nd)

    out_spec = pl.BlockSpec((1, Lw, D), lambda b: (b, 0, 0))
    out_sds = jax.ShapeDtypeStruct((B, Lw, D), jnp.float32)

    x, x1, x3 = pl.pallas_call(
        kernel,
        out_shape=(out_sds, out_sds, out_sds),
        grid=(B,),
        in_specs=[seq_spec(Lv), seq_spec(Lw), seq_spec(Ls),
                  rep_spec(ln_g), rep_spec(ln_b),
                  rep_spec(aw), rep_spec(ab),
                  rep_spec(fw1), rep_spec(fb1), rep_spec(fw2), rep_spec(fb2)],
        out_specs=(out_spec, out_spec, out_spec),
        compiler_params=pltpu.CompilerParams(
            dimension_semantics=("parallel",)),   # batch -> TCs on v7x
    )(v_feat, w_feat, s_feat, ln_g, ln_b, aw, ab, fw1, fb1, fw2, fb2)
    return x, x1, x3


# ----------------------------------------------------------------------------
# Pure-JAX reference (for correctness check)
# ----------------------------------------------------------------------------
def _ref_ln(x, g, b):
    m = jnp.mean(x, axis=-1, keepdims=True)
    v = jnp.mean((x - m) ** 2, axis=-1, keepdims=True)
    return (x - m) / jnp.sqrt(v + 1e-5) * g + b


def _ref_mha(q_in, kv, p, heads):
    B, Lq, D = q_in.shape
    dk = D // heads
    q = (q_in @ p["wq"] + p["bq"]).reshape(B, Lq, heads, dk).transpose(0, 2, 1, 3)
    k = (kv @ p["wk"] + p["bk"]).reshape(B, -1, heads, dk).transpose(0, 2, 1, 3)
    v = (kv @ p["wv"] + p["bv"]).reshape(B, -1, heads, dk).transpose(0, 2, 1, 3)
    s = jnp.einsum("bhqd,bhkd->bhqk", q, k) / math.sqrt(dk)
    a = jax.nn.softmax(s, axis=-1)
    o = jnp.einsum("bhqk,bhkd->bhqd", a, v).transpose(0, 2, 1, 3).reshape(B, Lq, D)
    return o @ p["wo"] + p["bo"]


def _ref_ffn(x, p):
    h = x @ p["w1"] + p["b1"]
    h = h * 0.5 * (1.0 + jax.scipy.special.erf(h / math.sqrt(2.0)))
    return h @ p["w2"] + p["b2"]


def ref_forward(v_feat, w_feat, s_feat, P, heads):
    w = _ref_ln(w_feat, P["ln1_g"], P["ln1_b"])
    x = w + _ref_mha(w, w, P["attn1"], heads)
    x2 = _ref_ln(x, P["ln2_g"], P["ln2_b"])
    x = x + _ref_mha(x2, v_feat, P["attn2"], heads)
    x2 = _ref_ln(x, P["ln3_g"], P["ln3_b"])
    x1 = x + _ref_ffn(x2, P["ff1"])
    x = x + _ref_mha(x2, s_feat, P["attn3"], heads)
    x2b = _ref_ln(x, P["ln4_g"], P["ln4_b"])
    x3 = x + _ref_ffn(x2b, P["ff2"])
    return x, x1, x3


# ----------------------------------------------------------------------------
# Deterministic parameter init + driver
# ----------------------------------------------------------------------------
def init_params(key, d_model):
    ks = iter(jax.random.split(key, 64))

    def lin(d_in, d_out):
        return (0.05 * jax.random.normal(next(ks), (d_in, d_out), jnp.float32),
                0.05 * jax.random.normal(next(ks), (1, d_out), jnp.float32))

    def attn():
        wq, bq = lin(d_model, d_model)
        wk, bk = lin(d_model, d_model)
        wv, bv = lin(d_model, d_model)
        wo, bo = lin(d_model, d_model)
        return dict(wq=wq, bq=bq, wk=wk, bk=bk, wv=wv, bv=bv, wo=wo, bo=bo)

    def ffp():
        w1, b1 = lin(d_model, 4 * d_model)
        w2, b2 = lin(4 * d_model, d_model)
        return dict(w1=w1, b1=b1, w2=w2, b2=b2)

    def ln():
        g = 1.0 + 0.1 * jax.random.normal(next(ks), (1, d_model), jnp.float32)
        b = 0.1 * jax.random.normal(next(ks), (1, d_model), jnp.float32)
        return g, b

    P = {}
    P["ln1_g"], P["ln1_b"] = ln()
    P["ln2_g"], P["ln2_b"] = ln()
    P["ln3_g"], P["ln3_b"] = ln()
    P["ln4_g"], P["ln4_b"] = ln()
    P["attn1"], P["attn2"], P["attn3"] = attn(), attn(), attn()
    P["ff1"], P["ff2"] = ffp(), ffp()
    return P


if __name__ == "__main__":
    B, D, HEADS = 2, 32, 4
    Lw, Lv, Ls = 8, 16, 8     # word / visual / state sequence lengths

    key = jax.random.PRNGKey(0)
    k1, k2, k3, kp = jax.random.split(key, 4)
    v_feat = jax.random.normal(k1, (B, Lv, D), jnp.float32)
    w_feat = jax.random.normal(k2, (B, Lw, D), jnp.float32)
    s_feat = jax.random.normal(k3, (B, Ls, D), jnp.float32)
    P = init_params(kp, D)

    x, x1, x3 = dual_attention_forward(v_feat, w_feat, s_feat, P, HEADS)
    jax.block_until_ready((x, x1, x3))

    rx, rx1, rx3 = ref_forward(v_feat, w_feat, s_feat, P, HEADS)
    for got, ref in ((x, rx), (x1, rx1), (x3, rx3)):
        assert jnp.allclose(got, ref, atol=5e-3, rtol=5e-3), (
            float(jnp.max(jnp.abs(got - ref))))

    print("KERNEL_OK")
</pallas_src>

<mosaic_0001>
module attributes {stable_mosaic.version = 11 : i64} {
  func.func @kernel(%arg0: i32, %arg1: memref<1x16x32xf32, #tpu.memory_space<vmem>>, %arg2: memref<1x8x32xf32, #tpu.memory_space<vmem>>, %arg3: memref<1x8x32xf32, #tpu.memory_space<vmem>>, %arg4: memref<4x1x32xf32, #tpu.memory_space<vmem>>, %arg5: memref<4x1x32xf32, #tpu.memory_space<vmem>>, %arg6: memref<3x4x32x32xf32, #tpu.memory_space<vmem>>, %arg7: memref<3x4x1x32xf32, #tpu.memory_space<vmem>>, %arg8: memref<2x32x128xf32, #tpu.memory_space<vmem>>, %arg9: memref<2x1x128xf32, #tpu.memory_space<vmem>>, %arg10: memref<2x128x32xf32, #tpu.memory_space<vmem>>, %arg11: memref<2x1x32xf32, #tpu.memory_space<vmem>>, %arg12: memref<1x8x32xf32, #tpu.memory_space<vmem>>, %arg13: memref<1x8x32xf32, #tpu.memory_space<vmem>>, %arg14: memref<1x8x32xf32, #tpu.memory_space<vmem>>) attributes {dimension_semantics = [#tpu.dimension_semantics<parallel>], iteration_bounds = array<i64: 2>, scalar_prefetch = 0 : i64, scratch_operands = 0 : i64, tpu.core_type = #tpu.core_type<tc>, window_params = [{transform_indices = @transform_0, window_bounds = array<i64: 1, 16, 32>}, {transform_indices = @transform_1, window_bounds = array<i64: 1, 8, 32>}, {transform_indices = @transform_2, window_bounds = array<i64: 1, 8, 32>}, {pipeline_mode = #tpu.pipeline_mode<synchronous>, transform_indices = @transform_3, window_bounds = array<i64: 4, 1, 32>}, {pipeline_mode = #tpu.pipeline_mode<synchronous>, transform_indices = @transform_4, window_bounds = array<i64: 4, 1, 32>}, {pipeline_mode = #tpu.pipeline_mode<synchronous>, transform_indices = @transform_5, window_bounds = array<i64: 3, 4, 32, 32>}, {pipeline_mode = #tpu.pipeline_mode<synchronous>, transform_indices = @transform_6, window_bounds = array<i64: 3, 4, 1, 32>}, {pipeline_mode = #tpu.pipeline_mode<synchronous>, transform_indices = @transform_7, window_bounds = array<i64: 2, 32, 128>}, {pipeline_mode = #tpu.pipeline_mode<synchronous>, transform_indices = @transform_8, window_bounds = array<i64: 2, 1, 128>}, {pipeline_mode = #tpu.pipeline_mode<synchronous>, transform_indices = @transform_9, window_bounds = array<i64: 2, 128, 32>}, {pipeline_mode = #tpu.pipeline_mode<synchronous>, transform_indices = @transform_10, window_bounds = array<i64: 2, 1, 32>}, {transform_indices = @transform_11, window_bounds = array<i64: 1, 8, 32>}, {transform_indices = @transform_12, window_bounds = array<i64: 1, 8, 32>}, {transform_indices = @transform_13, window_bounds = array<i64: 1, 8, 32>}]} {
    %c0 = arith.constant 0 : index
    %c0_0 = arith.constant 0 : index
    %c0_1 = arith.constant 0 : index
    %0 = vector.load %arg1[%c0, %c0_0, %c0_1] : memref<1x16x32xf32, #tpu.memory_space<vmem>>, vector<1x16x32xf32>
    %1 = vector.shape_cast %0 : vector<1x16x32xf32> to vector<16x32xf32>
    %c0_2 = arith.constant 0 : index
    %c0_3 = arith.constant 0 : index
    %c0_4 = arith.constant 0 : index
    %2 = vector.load %arg2[%c0_2, %c0_3, %c0_4] : memref<1x8x32xf32, #tpu.memory_space<vmem>>, vector<1x8x32xf32>
    %3 = vector.shape_cast %2 : vector<1x8x32xf32> to vector<8x32xf32>
    %c0_5 = arith.constant 0 : index
    %c0_6 = arith.constant 0 : index
    %c0_7 = arith.constant 0 : index
    %4 = vector.load %arg3[%c0_5, %c0_6, %c0_7] : memref<1x8x32xf32, #tpu.memory_space<vmem>>, vector<1x8x32xf32>
    %5 = vector.shape_cast %4 : vector<1x8x32xf32> to vector<8x32xf32>
    %cst = arith.constant dense<0.000000e+00> : vector<8xf32>
    %6 = vector.multi_reduction <add>, %3, %cst [1] : vector<8x32xf32> to vector<8xf32>
    %7 = vector.shape_cast %6 : vector<8xf32> to vector<8x1xf32>
    %cst_8 = arith.constant 3.200000e+01 : f32
    %8 = vector.broadcast %cst_8 : f32 to vector<8x1xf32>
    %9 = arith.divf %7, %8 : vector<8x1xf32>
    %10 = vector.broadcast %9 : vector<8x1xf32> to vector<8x32xf32>
    %11 = arith.subf %3, %10 : vector<8x32xf32>
    %12 = arith.mulf %11, %11 : vector<8x32xf32>
    %cst_9 = arith.constant dense<0.000000e+00> : vector<8xf32>
    %13 = vector.multi_reduction <add>, %12, %cst_9 [1] : vector<8x32xf32> to vector<8xf32>
    %14 = vector.shape_cast %13 : vector<8xf32> to vector<8x1xf32>
    %cst_10 = arith.constant 3.200000e+01 : f32
    %15 = vector.broadcast %cst_10 : f32 to vector<8x1xf32>
    %16 = arith.divf %14, %15 : vector<8x1xf32>
    %17 = vector.broadcast %9 : vector<8x1xf32> to vector<8x32xf32>
    %18 = arith.subf %3, %17 : vector<8x32xf32>
    %cst_11 = arith.constant 9.99999974E-6 : f32
    %19 = vector.broadcast %cst_11 : f32 to vector<8x1xf32>
    %20 = arith.addf %16, %19 : vector<8x1xf32>
    %21 = math.rsqrt %20 : vector<8x1xf32>
    %22 = vector.broadcast %21 : vector<8x1xf32> to vector<8x32xf32>
    %23 = arith.mulf %18, %22 : vector<8x32xf32>
    %c0_12 = arith.constant 0 : index
    %c0_13 = arith.constant 0 : index
    %c0_14 = arith.constant 0 : index
    %24 = vector.load %arg4[%c0_12, %c0_13, %c0_14] : memref<4x1x32xf32, #tpu.memory_space<vmem>>, vector<1x1x32xf32>
    %25 = vector.shape_cast %24 : vector<1x1x32xf32> to vector<1x32xf32>
    %26 = vector.broadcast %25 : vector<1x32xf32> to vector<8x32xf32>
    %27 = arith.mulf %23, %26 : vector<8x32xf32>
    %c0_15 = arith.constant 0 : index
    %c0_16 = arith.constant 0 : index
    %c0_17 = arith.constant 0 : index
    %28 = vector.load %arg5[%c0_15, %c0_16, %c0_17] : memref<4x1x32xf32, #tpu.memory_space<vmem>>, vector<1x1x32xf32>
    %29 = vector.shape_cast %28 : vector<1x1x32xf32> to vector<1x32xf32>
    %30 = vector.broadcast %29 : vector<1x32xf32> to vector<8x32xf32>
    %31 = arith.addf %27, %30 : vector<8x32xf32>
    %c0_18 = arith.constant 0 : index
    %c0_19 = arith.constant 0 : index
    %c0_20 = arith.constant 0 : index
    %c0_21 = arith.constant 0 : index
    %32 = vector.load %arg6[%c0_18, %c0_19, %c0_20, %c0_21] : memref<3x4x32x32xf32, #tpu.memory_space<vmem>>, vector<1x1x32x32xf32>
    %33 = vector.shape_cast %32 : vector<1x1x32x32xf32> to vector<32x32xf32>
    %cst_22 = arith.constant dense<0.000000e+00> : vector<8x32xf32>
    %34 = tpu.matmul %31, %33, %cst_22 {dimension_numbers = #tpu.dot_dimension_numbers<[1], [0], [0], [1], [0, 0, 1, 1], [], []>} : vector<8x32xf32>, vector<32x32xf32>, vector<8x32xf32> -> vector<8x32xf32>
    %c0_23 = arith.constant 0 : index
    %c0_24 = arith.constant 0 : index
    %c0_25 = arith.constant 0 : index
    %c0_26 = arith.constant 0 : index
    %35 = vector.load %arg7[%c0_23, %c0_24, %c0_25, %c0_26] : memref<3x4x1x32xf32, #tpu.memory_space<vmem>>, vector<1x1x1x32xf32>
    %36 = vector.shape_cast %35 : vector<1x1x1x32xf32> to vector<1x32xf32>
    %37 = vector.broadcast %36 : vector<1x32xf32> to vector<8x32xf32>
    %38 = arith.addf %34, %37 : vector<8x32xf32>
    %c0_27 = arith.constant 0 : index
    %c1 = arith.constant 1 : index
    %c0_28 = arith.constant 0 : index
    %c0_29 = arith.constant 0 : index
    %39 = vector.load %arg6[%c0_27, %c1, %c0_28, %c0_29] : memref<3x4x32x32xf32, #tpu.memory_space<vmem>>, vector<1x1x32x32xf32>
    %40 = vector.shape_cast %39 : vector<1x1x32x32xf32> to vector<32x32xf32>
    %cst_30 = arith.constant dense<0.000000e+00> : vector<8x32xf32>
    %41 = tpu.matmul %31, %40, %cst_30 {dimension_numbers = #tpu.dot_dimension_numbers<[1], [0], [0], [1], [0, 0, 1, 1], [], []>} : vector<8x32xf32>, vector<32x32xf32>, vector<8x32xf32> -> vector<8x32xf32>
    %c0_31 = arith.constant 0 : index
    %c1_32 = arith.constant 1 : index
    %c0_33 = arith.constant 0 : index
    %c0_34 = arith.constant 0 : index
    %42 = vector.load %arg7[%c0_31, %c1_32, %c0_33, %c0_34] : memref<3x4x1x32xf32, #tpu.memory_space<vmem>>, vector<1x1x1x32xf32>
    %43 = vector.shape_cast %42 : vector<1x1x1x32xf32> to vector<1x32xf32>
    %44 = vector.broadcast %43 : vector<1x32xf32> to vector<8x32xf32>
    %45 = arith.addf %41, %44 : vector<8x32xf32>
    %c0_35 = arith.constant 0 : index
    %c2 = arith.constant 2 : index
    %c0_36 = arith.constant 0 : index
    %c0_37 = arith.constant 0 : index
    %46 = vector.load %arg6[%c0_35, %c2, %c0_36, %c0_37] : memref<3x4x32x32xf32, #tpu.memory_space<vmem>>, vector<1x1x32x32xf32>
    %47 = vector.shape_cast %46 : vector<1x1x32x32xf32> to vector<32x32xf32>
    %cst_38 = arith.constant dense<0.000000e+00> : vector<8x32xf32>
    %48 = tpu.matmul %31, %47, %cst_38 {dimension_numbers = #tpu.dot_dimension_numbers<[1], [0], [0], [1], [0, 0, 1, 1], [], []>} : vector<8x32xf32>, vector<32x32xf32>, vector<8x32xf32> -> vector<8x32xf32>
    %c0_39 = arith.constant 0 : index
    %c2_40 = arith.constant 2 : index
    %c0_41 = arith.constant 0 : index
    %c0_42 = arith.constant 0 : index
    %49 = vector.load %arg7[%c0_39, %c2_40, %c0_41, %c0_42] : memref<3x4x1x32xf32, #tpu.memory_space<vmem>>, vector<1x1x1x32xf32>
    %50 = vector.shape_cast %49 : vector<1x1x1x32xf32> to vector<1x32xf32>
    %51 = vector.broadcast %50 : vector<1x32xf32> to vector<8x32xf32>
    %52 = arith.addf %48, %51 : vector<8x32xf32>
    %c0_43 = arith.constant 0 : index
    %c3 = arith.constant 3 : index
    %c0_44 = arith.constant 0 : index
    %c0_45 = arith.constant 0 : index
    %53 = vector.load %arg6[%c0_43, %c3, %c0_44, %c0_45] : memref<3x4x32x32xf32, #tpu.memory_space<vmem>>, vector<1x1x32x32xf32>
    %54 = vector.shape_cast %53 : vector<1x1x32x32xf32> to vector<32x32xf32>
    %cst_46 = arith.constant 0.000000e+00 : f32
    %55 = vector.broadcast %cst_46 : f32 to vector<8x32xf32>
    %56 = vector.extract_strided_slice %38 {offsets = [0, 0], sizes = [8, 8], strides = [1, 1]} : vector<8x32xf32> to vector<8x8xf32>
    %57 = vector.extract_strided_slice %45 {offsets = [0, 0], sizes = [8, 8], strides = [1, 1]} : vector<8x32xf32> to vector<8x8xf32>
    %58 = tpu.transpose %57, [1, 0] : vector<8x8xf32> -> vector<8x8xf32>
    %cst_47 = arith.constant dense<0.000000e+00> : vector<8x8xf32>
    %59 = tpu.matmul %56, %58, %cst_47 {dimension_numbers = #tpu.dot_dimension_numbers<[1], [0], [0], [1], [0, 0, 1, 1], [], []>} : vector<8x8xf32>, vector<8x8xf32>, vector<8x8xf32> -> vector<8x8xf32>
    %cst_48 = arith.constant 0.353553385 : f32
    %60 = vector.broadcast %cst_48 : f32 to vector<8x8xf32>
    %61 = arith.mulf %59, %60 : vector<8x8xf32>
    %cst_49 = arith.constant dense<0xFF800000> : vector<8xf32>
    %62 = vector.multi_reduction <maximumf>, %61, %cst_49 [1] : vector<8x8xf32> to vector<8xf32>
    %63 = vector.shape_cast %62 : vector<8xf32> to vector<8x1xf32>
    %64 = vector.broadcast %63 : vector<8x1xf32> to vector<8x8xf32>
    %65 = arith.subf %61, %64 : vector<8x8xf32>
    %66 = math.exp %65 : vector<8x8xf32>
    %cst_50 = arith.constant dense<0.000000e+00> : vector<8xf32>
    %67 = vector.multi_reduction <add>, %66, %cst_50 [1] : vector<8x8xf32> to vector<8xf32>
    %68 = vector.shape_cast %67 : vector<8xf32> to vector<8x1xf32>
    %69 = tpu.reciprocal %68 {approx = true} : vector<8x1xf32> -> vector<8x1xf32>
    %70 = vector.broadcast %69 : vector<8x1xf32> to vector<8x8xf32>
    %71 = arith.mulf %66, %70 : vector<8x8xf32>
    %72 = vector.extract_strided_slice %52 {offsets = [0, 0], sizes = [8, 8], strides = [1, 1]} : vector<8x32xf32> to vector<8x8xf32>
    %cst_51 = arith.constant dense<0.000000e+00> : vector<8x8xf32>
    %73 = tpu.matmul %71, %72, %cst_51 {dimension_numbers = #tpu.dot_dimension_numbers<[1], [0], [0], [1], [0, 0, 1, 1], [], []>} : vector<8x8xf32>, vector<8x8xf32>, vector<8x8xf32> -> vector<8x8xf32>
    %74 = vector.extract_strided_slice %54 {offsets = [0, 0], sizes = [8, 32], strides = [1, 1]} : vector<32x32xf32> to vector<8x32xf32>
    %cst_52 = arith.constant dense<0.000000e+00> : vector<8x32xf32>
    %75 = tpu.matmul %73, %74, %cst_52 {dimension_numbers = #tpu.dot_dimension_numbers<[1], [0], [0], [1], [0, 0, 1, 1], [], []>} : vector<8x8xf32>, vector<8x32xf32>, vector<8x32xf32> -> vector<8x32xf32>
    %76 = arith.addf %55, %75 : vector<8x32xf32>
    %77 = vector.extract_strided_slice %38 {offsets = [0, 8], sizes = [8, 8], strides = [1, 1]} : vector<8x32xf32> to vector<8x8xf32>
    %78 = vector.extract_strided_slice %45 {offsets = [0, 8], sizes = [8, 8], strides = [1, 1]} : vector<8x32xf32> to vector<8x8xf32>
    %79 = tpu.transpose %78, [1, 0] : vector<8x8xf32> -> vector<8x8xf32>
    %cst_53 = arith.constant dense<0.000000e+00> : vector<8x8xf32>
    %80 = tpu.matmul %77, %79, %cst_53 {dimension_numbers = #tpu.dot_dimension_numbers<[1], [0], [0], [1], [0, 0, 1, 1], [], []>} : vector<8x8xf32>, vector<8x8xf32>, vector<8x8xf32> -> vector<8x8xf32>
    %cst_54 = arith.constant 0.353553385 : f32
    %81 = vector.broadcast %cst_54 : f32 to vector<8x8xf32>
    %82 = arith.mulf %80, %81 : vector<8x8xf32>
    %cst_55 = arith.constant dense<0xFF800000> : vector<8xf32>
    %83 = vector.multi_reduction <maximumf>, %82, %cst_55 [1] : vector<8x8xf32> to vector<8xf32>
    %84 = vector.shape_cast %83 : vector<8xf32> to vector<8x1xf32>
    %85 = vector.broadcast %84 : vector<8x1xf32> to vector<8x8xf32>
    %86 = arith.subf %82, %85 : vector<8x8xf32>
    %87 = math.exp %86 : vector<8x8xf32>
    %cst_56 = arith.constant dense<0.000000e+00> : vector<8xf32>
    %88 = vector.multi_reduction <add>, %87, %cst_56 [1] : vector<8x8xf32> to vector<8xf32>
    %89 = vector.shape_cast %88 : vector<8xf32> to vector<8x1xf32>
    %90 = tpu.reciprocal %89 {approx = true} : vector<8x1xf32> -> vector<8x1xf32>
    %91 = vector.broadcast %90 : vector<8x1xf32> to vector<8x8xf32>
    %92 = arith.mulf %87, %91 : vector<8x8xf32>
    %93 = vector.extract_strided_slice %52 {offsets = [0, 8], sizes = [8, 8], strides = [1, 1]} : vector<8x32xf32> to vector<8x8xf32>
    %cst_57 = arith.constant dense<0.000000e+00> : vector<8x8xf32>
    %94 = tpu.matmul %92, %93, %cst_57 {dimension_numbers = #tpu.dot_dimension_numbers<[1], [0], [0], [1], [0, 0, 1, 1], [], []>} : vector<8x8xf32>, vector<8x8xf32>, vector<8x8xf32> -> vector<8x8xf32>
    %95 = vector.extract_strided_slice %54 {offsets = [8, 0], sizes = [8, 32], strides = [1, 1]} : vector<32x32xf32> to vector<8x32xf32>
    %cst_58 = arith.constant dense<0.000000e+00> : vector<8x32xf32>
    %96 = tpu.matmul %94, %95, %cst_58 {dimension_numbers = #tpu.dot_dimension_numbers<[1], [0], [0], [1], [0, 0, 1, 1], [], []>} : vector<8x8xf32>, vector<8x32xf32>, vector<8x32xf32> -> vector<8x32xf32>
    %97 = arith.addf %76, %96 : vector<8x32xf32>
    %98 = vector.extract_strided_slice %38 {offsets = [0, 16], sizes = [8, 8], strides = [1, 1]} : vector<8x32xf32> to vector<8x8xf32>
    %99 = vector.extract_strided_slice %45 {offsets = [0, 16], sizes = [8, 8], strides = [1, 1]} : vector<8x32xf32> to vector<8x8xf32>
    %100 = tpu.transpose %99, [1, 0] : vector<8x8xf32> -> vector<8x8xf32>
    %cst_59 = arith.constant dense<0.000000e+00> : vector<8x8xf32>
    %101 = tpu.matmul %98, %100, %cst_59 {dimension_numbers = #tpu.dot_dimension_numbers<[1], [0], [0], [1], [0, 0, 1, 1], [], []>} : vector<8x8xf32>, vector<8x8xf32>, vector<8x8xf32> -> vector<8x8xf32>
    %cst_60 = arith.constant 0.353553385 : f32
    %102 = vector.broadcast %cst_60 : f32 to vector<8x8xf32>
    %103 = arith.mulf %101, %102 : vector<8x8xf32>
    %cst_61 = arith.constant dense<0xFF800000> : vector<8xf32>
    %104 = vector.multi_reduction <maximumf>, %103, %cst_61 [1] : vector<8x8xf32> to vector<8xf32>
    %105 = vector.shape_cast %104 : vector<8xf32> to vector<8x1xf32>
    %106 = vector.broadcast %105 : vector<8x1xf32> to vector<8x8xf32>
    %107 = arith.subf %103, %106 : vector<8x8xf32>
    %108 = math.exp %107 : vector<8x8xf32>
    %cst_62 = arith.constant dense<0.000000e+00> : vector<8xf32>
    %109 = vector.multi_reduction <add>, %108, %cst_62 [1] : vector<8x8xf32> to vector<8xf32>
    %110 = vector.shape_cast %109 : vector<8xf32> to vector<8x1xf32>
    %111 = tpu.reciprocal %110 {approx = true} : vector<8x1xf32> -> vector<8x1xf32>
    %112 = vector.broadcast %111 : vector<8x1xf32> to vector<8x8xf32>
    %113 = arith.mulf %108, %112 : vector<8x8xf32>
    %114 = vector.extract_strided_slice %52 {offsets = [0, 16], sizes = [8, 8], strides = [1, 1]} : vector<8x32xf32> to vector<8x8xf32>
    %cst_63 = arith.constant dense<0.000000e+00> : vector<8x8xf32>
    %115 = tpu.matmul %113, %114, %cst_63 {dimension_numbers = #tpu.dot_dimension_numbers<[1], [0], [0], [1], [0, 0, 1, 1], [], []>} : vector<8x8xf32>, vector<8x8xf32>, vector<8x8xf32> -> vector<8x8xf32>
    %116 = vector.extract_strided_slice %54 {offsets = [16, 0], sizes = [8, 32], strides = [1, 1]} : vector<32x32xf32> to vector<8x32xf32>
    %cst_64 = arith.constant dense<0.000000e+00> : vector<8x32xf32>
    %117 = tpu.matmul %115, %116, %cst_64 {dimension_numbers = #tpu.dot_dimension_numbers<[1], [0], [0], [1], [0, 0, 1, 1], [], []>} : vector<8x8xf32>, vector<8x32xf32>, vector<8x32xf32> -> vector<8x32xf32>
    %118 = arith.addf %97, %117 : vector<8x32xf32>
    %119 = vector.extract_strided_slice %38 {offsets = [0, 24], sizes = [8, 8], strides = [1, 1]} : vector<8x32xf32> to vector<8x8xf32>
    %120 = vector.extract_strided_slice %45 {offsets = [0, 24], sizes = [8, 8], strides = [1, 1]} : vector<8x32xf32> to vector<8x8xf32>
    %121 = tpu.transpose %120, [1, 0] : vector<8x8xf32> -> vector<8x8xf32>
    %cst_65 = arith.constant dense<0.000000e+00> : vector<8x8xf32>
    %122 = tpu.matmul %119, %121, %cst_65 {dimension_numbers = #tpu.dot_dimension_numbers<[1], [0], [0], [1], [0, 0, 1, 1], [], []>} : vector<8x8xf32>, vector<8x8xf32>, vector<8x8xf32> -> vector<8x8xf32>
    %cst_66 = arith.constant 0.353553385 : f32
    %123 = vector.broadcast %cst_66 : f32 to vector<8x8xf32>
    %124 = arith.mulf %122, %123 : vector<8x8xf32>
    %cst_67 = arith.constant dense<0xFF800000> : vector<8xf32>
    %125 = vector.multi_reduction <maximumf>, %124, %cst_67 [1] : vector<8x8xf32> to vector<8xf32>
    %126 = vector.shape_cast %125 : vector<8xf32> to vector<8x1xf32>
    %127 = vector.broadcast %126 : vector<8x1xf32> to vector<8x8xf32>
    %128 = arith.subf %124, %127 : vector<8x8xf32>
    %129 = math.exp %128 : vector<8x8xf32>
    %cst_68 = arith.constant dense<0.000000e+00> : vector<8xf32>
    %130 = vector.multi_reduction <add>, %129, %cst_68 [1] : vector<8x8xf32> to vector<8xf32>
    %131 = vector.shape_cast %130 : vector<8xf32> to vector<8x1xf32>
    %132 = tpu.reciprocal %131 {approx = true} : vector<8x1xf32> -> vector<8x1xf32>
    %133 = vector.broadcast %132 : vector<8x1xf32> to vector<8x8xf32>
    %134 = arith.mulf %129, %133 : vector<8x8xf32>
    %135 = vector.extract_strided_slice %52 {offsets = [0, 24], sizes = [8, 8], strides = [1, 1]} : vector<8x32xf32> to vector<8x8xf32>
    %cst_69 = arith.constant dense<0.000000e+00> : vector<8x8xf32>
    %136 = tpu.matmul %134, %135, %cst_69 {dimension_numbers = #tpu.dot_dimension_numbers<[1], [0], [0], [1], [0, 0, 1, 1], [], []>} : vector<8x8xf32>, vector<8x8xf32>, vector<8x8xf32> -> vector<8x8xf32>
    %137 = vector.extract_strided_slice %54 {offsets = [24, 0], sizes = [8, 32], strides = [1, 1]} : vector<32x32xf32> to vector<8x32xf32>
    %cst_70 = arith.constant dense<0.000000e+00> : vector<8x32xf32>
    %138 = tpu.matmul %136, %137, %cst_70 {dimension_numbers = #tpu.dot_dimension_numbers<[1], [0], [0], [1], [0, 0, 1, 1], [], []>} : vector<8x8xf32>, vector<8x32xf32>, vector<8x32xf32> -> vector<8x32xf32>
    %139 = arith.addf %118, %138 : vector<8x32xf32>
    %c0_71 = arith.constant 0 : index
    %c3_72 = arith.constant 3 : index
    %c0_73 = arith.constant 0 : index
    %c0_74 = arith.constant 0 : index
    %140 = vector.load %arg7[%c0_71, %c3_72, %c0_73, %c0_74] : memref<3x4x1x32xf32, #tpu.memory_space<vmem>>, vector<1x1x1x32xf32>
    %141 = vector.shape_cast %140 : vector<1x1x1x32xf32> to vector<1x32xf32>
    %142 = vector.broadcast %141 : vector<1x32xf32> to vector<8x32xf32>
    %143 = arith.addf %139, %142 : vector<8x32xf32>
    %144 = arith.addf %31, %143 : vector<8x32xf32>
    %cst_75 = arith.constant dense<0.000000e+00> : vector<8xf32>
    %145 = vector.multi_reduction <add>, %144, %cst_75 [1] : vector<8x32xf32> to vector<8xf32>
    %146 = vector.shape_cast %145 : vector<8xf32> to vector<8x1xf32>
    %cst_76 = arith.constant 3.200000e+01 : f32
    %147 = vector.broadcast %cst_76 : f32 to vector<8x1xf32>
    %148 = arith.divf %146, %147 : vector<8x1xf32>
    %149 = vector.broadcast %148 : vector<8x1xf32> to vector<8x32xf32>
    %150 = arith.subf %144, %149 : vector<8x32xf32>
    %151 = arith.mulf %150, %150 : vector<8x32xf32>
    %cst_77 = arith.constant dense<0.000000e+00> : vector<8xf32>
    %152 = vector.multi_reduction <add>, %151, %cst_77 [1] : vector<8x32xf32> to vector<8xf32>
    %153 = vector.shape_cast %152 : vector<8xf32> to vector<8x1xf32>
    %cst_78 = arith.constant 3.200000e+01 : f32
    %154 = vector.broadcast %cst_78 : f32 to vector<8x1xf32>
    %155 = arith.divf %153, %154 : vector<8x1xf32>
    %156 = vector.broadcast %148 : vector<8x1xf32> to vector<8x32xf32>
    %157 = arith.subf %144, %156 : vector<8x32xf32>
    %cst_79 = arith.constant 9.99999974E-6 : f32
    %158 = vector.broadcast %cst_79 : f32 to vector<8x1xf32>
    %159 = arith.addf %155, %158 : vector<8x1xf32>
    %160 = math.rsqrt %159 : vector<8x1xf32>
    %161 = vector.broadcast %160 : vector<8x1xf32> to vector<8x32xf32>
    %162 = arith.mulf %157, %161 : vector<8x32xf32>
    %c1_80 = arith.constant 1 : index
    %c0_81 = arith.constant 0 : index
    %c0_82 = arith.constant 0 : index
    %163 = vector.load %arg4[%c1_80, %c0_81, %c0_82] : memref<4x1x32xf32, #tpu.memory_space<vmem>>, vector<1x1x32xf32>
    %164 = vector.shape_cast %163 : vector<1x1x32xf32> to vector<1x32xf32>
    %165 = vector.broadcast %164 : vector<1x32xf32> to vector<8x32xf32>
    %166 = arith.mulf %162, %165 : vector<8x32xf32>
    %c1_83 = arith.constant 1 : index
    %c0_84 = arith.constant 0 : index
    %c0_85 = arith.constant 0 : index
    %167 = vector.load %arg5[%c1_83, %c0_84, %c0_85] : memref<4x1x32xf32, #tpu.memory_space<vmem>>, vector<1x1x32xf32>
    %168 = vector.shape_cast %167 : vector<1x1x32xf32> to vector<1x32xf32>
    %169 = vector.broadcast %168 : vector<1x32xf32> to vector<8x32xf32>
    %170 = arith.addf %166, %169 : vector<8x32xf32>
    %c1_86 = arith.constant 1 : index
    %c0_87 = arith.constant 0 : index
    %c0_88 = arith.constant 0 : index
    %c0_89 = arith.constant 0 : index
    %171 = vector.load %arg6[%c1_86, %c0_87, %c0_88, %c0_89] : memref<3x4x32x32xf32, #tpu.memory_space<vmem>>, vector<1x1x32x32xf32>
    %172 = vector.shape_cast %171 : vector<1x1x32x32xf32> to vector<32x32xf32>
    %cst_90 = arith.constant dense<0.000000e+00> : vector<8x32xf32>
    %173 = tpu.matmul %170, %172, %cst_90 {dimension_numbers = #tpu.dot_dimension_numbers<[1], [0], [0], [1], [0, 0, 1, 1], [], []>} : vector<8x32xf32>, vector<32x32xf32>, vector<8x32xf32> -> vector<8x32xf32>
    %c1_91 = arith.constant 1 : index
    %c0_92 = arith.constant 0 : index
    %c0_93 = arith.constant 0 : index
    %c0_94 = arith.constant 0 : index
    %174 = vector.load %arg7[%c1_91, %c0_92, %c0_93, %c0_94] : memref<3x4x1x32xf32, #tpu.memory_space<vmem>>, vector<1x1x1x32xf32>
    %175 = vector.shape_cast %174 : vector<1x1x1x32xf32> to vector<1x32xf32>
    %176 = vector.broadcast %175 : vector<1x32xf32> to vector<8x32xf32>
    %177 = arith.addf %173, %176 : vector<8x32xf32>
    %c1_95 = arith.constant 1 : index
    %c1_96 = arith.constant 1 : index
    %c0_97 = arith.constant 0 : index
    %c0_98 = arith.constant 0 : index
    %178 = vector.load %arg6[%c1_95, %c1_96, %c0_97, %c0_98] : memref<3x4x32x32xf32, #tpu.memory_space<vmem>>, vector<1x1x32x32xf32>
    %179 = vector.shape_cast %178 : vector<1x1x32x32xf32> to vector<32x32xf32>
    %cst_99 = arith.constant dense<0.000000e+00> : vector<16x32xf32>
    %180 = tpu.matmul %1, %179, %cst_99 {dimension_numbers = #tpu.dot_dimension_numbers<[1], [0], [0], [1], [0, 0, 1, 1], [], []>} : vector<16x32xf32>, vector<32x32xf32>, vector<16x32xf32> -> vector<16x32xf32>
    %c1_100 = arith.constant 1 : index
    %c1_101 = arith.constant 1 : index
    %c0_102 = arith.constant 0 : index
    %c0_103 = arith.constant 0 : index
    %181 = vector.load %arg7[%c1_100, %c1_101, %c0_102, %c0_103] : memref<3x4x1x32xf32, #tpu.memory_space<vmem>>, vector<1x1x1x32xf32>
    %182 = vector.shape_cast %181 : vector<1x1x1x32xf32> to vector<1x32xf32>
    %183 = vector.broadcast %182 : vector<1x32xf32> to vector<16x32xf32>
    %184 = arith.addf %180, %183 : vector<16x32xf32>
    %c1_104 = arith.constant 1 : index
    %c2_105 = arith.constant 2 : index
    %c0_106 = arith.constant 0 : index
    %c0_107 = arith.constant 0 : index
    %185 = vector.load %arg6[%c1_104, %c2_105, %c0_106, %c0_107] : memref<3x4x32x32xf32, #tpu.memory_space<vmem>>, vector<1x1x32x32xf32>
    %186 = vector.shape_cast %185 : vector<1x1x32x32xf32> to vector<32x32xf32>
    %cst_108 = arith.constant dense<0.000000e+00> : vector<16x32xf32>
    %187 = tpu.matmul %1, %186, %cst_108 {dimension_numbers = #tpu.dot_dimension_numbers<[1], [0], [0], [1], [0, 0, 1, 1], [], []>} : vector<16x32xf32>, vector<32x32xf32>, vector<16x32xf32> -> vector<16x32xf32>
    %c1_109 = arith.constant 1 : index
    %c2_110 = arith.constant 2 : index
    %c0_111 = arith.constant 0 : index
    %c0_112 = arith.constant 0 : index
    %188 = vector.load %arg7[%c1_109, %c2_110, %c0_111, %c0_112] : memref<3x4x1x32xf32, #tpu.memory_space<vmem>>, vector<1x1x1x32xf32>
    %189 = vector.shape_cast %188 : vector<1x1x1x32xf32> to vector<1x32xf32>
    %190 = vector.broadcast %189 : vector<1x32xf32> to vector<16x32xf32>
    %191 = arith.addf %187, %190 : vector<16x32xf32>
    %c1_113 = arith.constant 1 : index
    %c3_114 = arith.constant 3 : index
    %c0_115 = arith.constant 0 : index
    %c0_116 = arith.constant 0 : index
    %192 = vector.load %arg6[%c1_113, %c3_114, %c0_115, %c0_116] : memref<3x4x32x32xf32, #tpu.memory_space<vmem>>, vector<1x1x32x32xf32>
    %193 = vector.shape_cast %192 : vector<1x1x32x32xf32> to vector<32x32xf32>
    %cst_117 = arith.constant 0.000000e+00 : f32
    %194 = vector.broadcast %cst_117 : f32 to vector<8x32xf32>
    %195 = vector.extract_strided_slice %177 {offsets = [0, 0], sizes = [8, 8], strides = [1, 1]} : vector<8x32xf32> to vector<8x8xf32>
    %196 = vector.extract_strided_slice %184 {offsets = [0, 0], sizes = [16, 8], strides = [1, 1]} : vector<16x32xf32> to vector<16x8xf32>
    %197 = tpu.transpose %196, [1, 0] : vector<16x8xf32> -> vector<8x16xf32>
    %cst_118 = arith.constant dense<0.000000e+00> : vector<8x16xf32>
    %198 = tpu.matmul %195, %197, %cst_118 {dimension_numbers = #tpu.dot_dimension_numbers<[1], [0], [0], [1], [0, 0, 1, 1], [], []>} : vector<8x8xf32>, vector<8x16xf32>, vector<8x16xf32> -> vector<8x16xf32>
    %cst_119 = arith.constant 0.353553385 : f32
    %199 = vector.broadcast %cst_119 : f32 to vector<8x16xf32>
    %200 = arith.mulf %198, %199 : vector<8x16xf32>
    %cst_120 = arith.constant dense<0xFF800000> : vector<8xf32>
    %201 = vector.multi_reduction <maximumf>, %200, %cst_120 [1] : vector<8x16xf32> to vector<8xf32>
    %202 = vector.shape_cast %201 : vector<8xf32> to vector<8x1xf32>
    %203 = vector.broadcast %202 : vector<8x1xf32> to vector<8x16xf32>
    %204 = arith.subf %200, %203 : vector<8x16xf32>
    %205 = math.exp %204 : vector<8x16xf32>
    %cst_121 = arith.constant dense<0.000000e+00> : vector<8xf32>
    %206 = vector.multi_reduction <add>, %205, %cst_121 [1] : vector<8x16xf32> to vector<8xf32>
    %207 = vector.shape_cast %206 : vector<8xf32> to vector<8x1xf32>
    %208 = tpu.reciprocal %207 {approx = true} : vector<8x1xf32> -> vector<8x1xf32>
    %209 = vector.broadcast %208 : vector<8x1xf32> to vector<8x16xf32>
    %210 = arith.mulf %205, %209 : vector<8x16xf32>
    %211 = vector.extract_strided_slice %191 {offsets = [0, 0], sizes = [16, 8], strides = [1, 1]} : vector<16x32xf32> to vector<16x8xf32>
    %cst_122 = arith.constant dense<0.000000e+00> : vector<8x8xf32>
    %212 = tpu.matmul %210, %211, %cst_122 {dimension_numbers = #tpu.dot_dimension_numbers<[1], [0], [0], [1], [0, 0, 1, 1], [], []>} : vector<8x16xf32>, vector<16x8xf32>, vector<8x8xf32> -> vector<8x8xf32>
    %213 = vector.extract_strided_slice %193 {offsets = [0, 0], sizes = [8, 32], strides = [1, 1]} : vector<32x32xf32> to vector<8x32xf32>
    %cst_123 = arith.constant dense<0.000000e+00> : vector<8x32xf32>
    %214 = tpu.matmul %212, %213, %cst_123 {dimension_numbers = #tpu.dot_dimension_numbers<[1], [0], [0], [1], [0, 0, 1, 1], [], []>} : vector<8x8xf32>, vector<8x32xf32>, vector<8x32xf32> -> vector<8x32xf32>
    %215 = arith.addf %194, %214 : vector<8x32xf32>
    %216 = vector.extract_strided_slice %177 {offsets = [0, 8], sizes = [8, 8], strides = [1, 1]} : vector<8x32xf32> to vector<8x8xf32>
    %217 = vector.extract_strided_slice %184 {offsets = [0, 8], sizes = [16, 8], strides = [1, 1]} : vector<16x32xf32> to vector<16x8xf32>
    %218 = tpu.transpose %217, [1, 0] : vector<16x8xf32> -> vector<8x16xf32>
    %cst_124 = arith.constant dense<0.000000e+00> : vector<8x16xf32>
    %219 = tpu.matmul %216, %218, %cst_124 {dimension_numbers = #tpu.dot_dimension_numbers<[1], [0], [0], [1], [0, 0, 1, 1], [], []>} : vector<8x8xf32>, vector<8x16xf32>, vector<8x16xf32> -> vector<8x16xf32>
    %cst_125 = arith.constant 0.353553385 : f32
    %220 = vector.broadcast %cst_125 : f32 to vector<8x16xf32>
    %221 = arith.mulf %219, %220 : vector<8x16xf32>
    %cst_126 = arith.constant dense<0xFF800000> : vector<8xf32>
    %222 = vector.multi_reduction <maximumf>, %221, %cst_126 [1] : vector<8x16xf32> to vector<8xf32>
    %223 = vector.shape_cast %222 : vector<8xf32> to vector<8x1xf32>
    %224 = vector.broadcast %223 : vector<8x1xf32> to vector<8x16xf32>
    %225 = arith.subf %221, %224 : vector<8x16xf32>
    %226 = math.exp %225 : vector<8x16xf32>
    %cst_127 = arith.constant dense<0.000000e+00> : vector<8xf32>
    %227 = vector.multi_reduction <add>, %226, %cst_127 [1] : vector<8x16xf32> to vector<8xf32>
    %228 = vector.shape_cast %227 : vector<8xf32> to vector<8x1xf32>
    %229 = tpu.reciprocal %228 {approx = true} : vector<8x1xf32> -> vector<8x1xf32>
    %230 = vector.broadcast %229 : vector<8x1xf32> to vector<8x16xf32>
    %231 = arith.mulf %226, %230 : vector<8x16xf32>
    %232 = vector.extract_strided_slice %191 {offsets = [0, 8], sizes = [16, 8], strides = [1, 1]} : vector<16x32xf32> to vector<16x8xf32>
    %cst_128 = arith.constant dense<0.000000e+00> : vector<8x8xf32>
    %233 = tpu.matmul %231, %232, %cst_128 {dimension_numbers = #tpu.dot_dimension_numbers<[1], [0], [0], [1], [0, 0, 1, 1], [], []>} : vector<8x16xf32>, vector<16x8xf32>, vector<8x8xf32> -> vector<8x8xf32>
    %234 = vector.extract_strided_slice %193 {offsets = [8, 0], sizes = [8, 32], strides = [1, 1]} : vector<32x32xf32> to vector<8x32xf32>
    %cst_129 = arith.constant dense<0.000000e+00> : vector<8x32xf32>
    %235 = tpu.matmul %233, %234, %cst_129 {dimension_numbers = #tpu.dot_dimension_numbers<[1], [0], [0], [1], [0, 0, 1, 1], [], []>} : vector<8x8xf32>, vector<8x32xf32>, vector<8x32xf32> -> vector<8x32xf32>
    %236 = arith.addf %215, %235 : vector<8x32xf32>
    %237 = vector.extract_strided_slice %177 {offsets = [0, 16], sizes = [8, 8], strides = [1, 1]} : vector<8x32xf32> to vector<8x8xf32>
    %238 = vector.extract_strided_slice %184 {offsets = [0, 16], sizes = [16, 8], strides = [1, 1]} : vector<16x32xf32> to vector<16x8xf32>
    %239 = tpu.transpose %238, [1, 0] : vector<16x8xf32> -> vector<8x16xf32>
    %cst_130 = arith.constant dense<0.000000e+00> : vector<8x16xf32>
    %240 = tpu.matmul %237, %239, %cst_130 {dimension_numbers = #tpu.dot_dimension_numbers<[1], [0], [0], [1], [0, 0, 1, 1], [], []>} : vector<8x8xf32>, vector<8x16xf32>, vector<8x16xf32> -> vector<8x16xf32>
    %cst_131 = arith.constant 0.353553385 : f32
    %241 = vector.broadcast %cst_131 : f32 to vector<8x16xf32>
    %242 = arith.mulf %240, %241 : vector<8x16xf32>
    %cst_132 = arith.constant dense<0xFF800000> : vector<8xf32>
    %243 = vector.multi_reduction <maximumf>, %242, %cst_132 [1] : vector<8x16xf32> to vector<8xf32>
    %244 = vector.shape_cast %243 : vector<8xf32> to vector<8x1xf32>
    %245 = vector.broadcast %244 : vector<8x1xf32> to vector<8x16xf32>
    %246 = arith.subf %242, %245 : vector<8x16xf32>
    %247 = math.exp %246 : vector<8x16xf32>
    %cst_133 = arith.constant dense<0.000000e+00> : vector<8xf32>
    %248 = vector.multi_reduction <add>, %247, %cst_133 [1] : vector<8x16xf32> to vector<8xf32>
    %249 = vector.shape_cast %248 : vector<8xf32> to vector<8x1xf32>
    %250 = tpu.reciprocal %249 {approx = true} : vector<8x1xf32> -> vector<8x1xf32>
    %251 = vector.broadcast %250 : vector<8x1xf32> to vector<8x16xf32>
    %252 = arith.mulf %247, %251 : vector<8x16xf32>
    %253 = vector.extract_strided_slice %191 {offsets = [0, 16], sizes = [16, 8], strides = [1, 1]} : vector<16x32xf32> to vector<16x8xf32>
    %cst_134 = arith.constant dense<0.000000e+00> : vector<8x8xf32>
    %254 = tpu.matmul %252, %253, %cst_134 {dimension_numbers = #tpu.dot_dimension_numbers<[1], [0], [0], [1], [0, 0, 1, 1], [], []>} : vector<8x16xf32>, vector<16x8xf32>, vector<8x8xf32> -> vector<8x8xf32>
    %255 = vector.extract_strided_slice %193 {offsets = [16, 0], sizes = [8, 32], strides = [1, 1]} : vector<32x32xf32> to vector<8x32xf32>
    %cst_135 = arith.constant dense<0.000000e+00> : vector<8x32xf32>
    %256 = tpu.matmul %254, %255, %cst_135 {dimension_numbers = #tpu.dot_dimension_numbers<[1], [0], [0], [1], [0, 0, 1, 1], [], []>} : vector<8x8xf32>, vector<8x32xf32>, vector<8x32xf32> -> vector<8x32xf32>
    %257 = arith.addf %236, %256 : vector<8x32xf32>
    %258 = vector.extract_strided_slice %177 {offsets = [0, 24], sizes = [8, 8], strides = [1, 1]} : vector<8x32xf32> to vector<8x8xf32>
    %259 = vector.extract_strided_slice %184 {offsets = [0, 24], sizes = [16, 8], strides = [1, 1]} : vector<16x32xf32> to vector<16x8xf32>
    %260 = tpu.transpose %259, [1, 0] : vector<16x8xf32> -> vector<8x16xf32>
    %cst_136 = arith.constant dense<0.000000e+00> : vector<8x16xf32>
    %261 = tpu.matmul %258, %260, %cst_136 {dimension_numbers = #tpu.dot_dimension_numbers<[1], [0], [0], [1], [0, 0, 1, 1], [], []>} : vector<8x8xf32>, vector<8x16xf32>, vector<8x16xf32> -> vector<8x16xf32>
    %cst_137 = arith.constant 0.353553385 : f32
    %262 = vector.broadcast %cst_137 : f32 to vector<8x16xf32>
    %263 = arith.mulf %261, %262 : vector<8x16xf32>
    %cst_138 = arith.constant dense<0xFF800000> : vector<8xf32>
    %264 = vector.multi_reduction <maximumf>, %263, %cst_138 [1] : vector<8x16xf32> to vector<8xf32>
    %265 = vector.shape_cast %264 : vector<8xf32> to vector<8x1xf32>
    %266 = vector.broadcast %265 : vector<8x1xf32> to vector<8x16xf32>
    %267 = arith.subf %263, %266 : vector<8x16xf32>
    %268 = math.exp %267 : vector<8x16xf32>
    %cst_139 = arith.constant dense<0.000000e+00> : vector<8xf32>
    %269 = vector.multi_reduction <add>, %268, %cst_139 [1] : vector<8x16xf32> to vector<8xf32>
    %270 = vector.shape_cast %269 : vector<8xf32> to vector<8x1xf32>
    %271 = tpu.reciprocal %270 {approx = true} : vector<8x1xf32> -> vector<8x1xf32>
    %272 = vector.broadcast %271 : vector<8x1xf32> to vector<8x16xf32>
    %273 = arith.mulf %268, %272 : vector<8x16xf32>
    %274 = vector.extract_strided_slice %191 {offsets = [0, 24], sizes = [16, 8], strides = [1, 1]} : vector<16x32xf32> to vector<16x8xf32>
    %cst_140 = arith.constant dense<0.000000e+00> : vector<8x8xf32>
    %275 = tpu.matmul %273, %274, %cst_140 {dimension_numbers = #tpu.dot_dimension_numbers<[1], [0], [0], [1], [0, 0, 1, 1], [], []>} : vector<8x16xf32>, vector<16x8xf32>, vector<8x8xf32> -> vector<8x8xf32>
    %276 = vector.extract_strided_slice %193 {offsets = [24, 0], sizes = [8, 32], strides = [1, 1]} : vector<32x32xf32> to vector<8x32xf32>
    %cst_141 = arith.constant dense<0.000000e+00> : vector<8x32xf32>
    %277 = tpu.matmul %275, %276, %cst_141 {dimension_numbers = #tpu.dot_dimension_numbers<[1], [0], [0], [1], [0, 0, 1, 1], [], []>} : vector<8x8xf32>, vector<8x32xf32>, vector<8x32xf32> -> vector<8x32xf32>
    %278 = arith.addf %257, %277 : vector<8x32xf32>
    %c1_142 = arith.constant 1 : index
    %c3_143 = arith.constant 3 : index
    %c0_144 = arith.constant 0 : index
    %c0_145 = arith.constant 0 : index
    %279 = vector.load %arg7[%c1_142, %c3_143, %c0_144, %c0_145] : memref<3x4x1x32xf32, #tpu.memory_space<vmem>>, vector<1x1x1x32xf32>
    %280 = vector.shape_cast %279 : vector<1x1x1x32xf32> to vector<1x32xf32>
    %281 = vector.broadcast %280 : vector<1x32xf32> to vector<8x32xf32>
    %282 = arith.addf %278, %281 : vector<8x32xf32>
    %283 = arith.addf %144, %282 : vector<8x32xf32>
    %cst_146 = arith.constant dense<0.000000e+00> : vector<8xf32>
    %284 = vector.multi_reduction <add>, %283, %cst_146 [1] : vector<8x32xf32> to vector<8xf32>
    %285 = vector.shape_cast %284 : vector<8xf32> to vector<8x1xf32>
    %cst_147 = arith.constant 3.200000e+01 : f32
    %286 = vector.broadcast %cst_147 : f32 to vector<8x1xf32>
    %287 = arith.divf %285, %286 : vector<8x1xf32>
    %288 = vector.broadcast %287 : vector<8x1xf32> to vector<8x32xf32>
    %289 = arith.subf %283, %288 : vector<8x32xf32>
    %290 = arith.mulf %289, %289 : vector<8x32xf32>
    %cst_148 = arith.constant dense<0.000000e+00> : vector<8xf32>
    %291 = vector.multi_reduction <add>, %290, %cst_148 [1] : vector<8x32xf32> to vector<8xf32>
    %292 = vector.shape_cast %291 : vector<8xf32> to vector<8x1xf32>
    %cst_149 = arith.constant 3.200000e+01 : f32
    %293 = vector.broadcast %cst_149 : f32 to vector<8x1xf32>
    %294 = arith.divf %292, %293 : vector<8x1xf32>
    %295 = vector.broadcast %287 : vector<8x1xf32> to vector<8x32xf32>
    %296 = arith.subf %283, %295 : vector<8x32xf32>
    %cst_150 = arith.constant 9.99999974E-6 : f32
    %297 = vector.broadcast %cst_150 : f32 to vector<8x1xf32>
    %298 = arith.addf %294, %297 : vector<8x1xf32>
    %299 = math.rsqrt %298 : vector<8x1xf32>
    %300 = vector.broadcast %299 : vector<8x1xf32> to vector<8x32xf32>
    %301 = arith.mulf %296, %300 : vector<8x32xf32>
    %c2_151 = arith.constant 2 : index
    %c0_152 = arith.constant 0 : index
    %c0_153 = arith.constant 0 : index
    %302 = vector.load %arg4[%c2_151, %c0_152, %c0_153] : memref<4x1x32xf32, #tpu.memory_space<vmem>>, vector<1x1x32xf32>
    %303 = vector.shape_cast %302 : vector<1x1x32xf32> to vector<1x32xf32>
    %304 = vector.broadcast %303 : vector<1x32xf32> to vector<8x32xf32>
    %305 = arith.mulf %301, %304 : vector<8x32xf32>
    %c2_154 = arith.constant 2 : index
    %c0_155 = arith.constant 0 : index
    %c0_156 = arith.constant 0 : index
    %306 = vector.load %arg5[%c2_154, %c0_155, %c0_156] : memref<4x1x32xf32, #tpu.memory_space<vmem>>, vector<1x1x32xf32>
    %307 = vector.shape_cast %306 : vector<1x1x32xf32> to vector<1x32xf32>
    %308 = vector.broadcast %307 : vector<1x32xf32> to vector<8x32xf32>
    %309 = arith.addf %305, %308 : vector<8x32xf32>
    %c0_157 = arith.constant 0 : index
    %c0_158 = arith.constant 0 : index
    %c0_159 = arith.constant 0 : index
    %310 = vector.load %arg8[%c0_157, %c0_158, %c0_159] : memref<2x32x128xf32, #tpu.memory_space<vmem>>, vector<1x32x128xf32>
    %311 = vector.shape_cast %310 : vector<1x32x128xf32> to vector<32x128xf32>
    %cst_160 = arith.constant dense<0.000000e+00> : vector<8x128xf32>
    %312 = tpu.matmul %309, %311, %cst_160 {dimension_numbers = #tpu.dot_dimension_numbers<[1], [0], [0], [1], [0, 0, 1, 1], [], []>} : vector<8x32xf32>, vector<32x128xf32>, vector<8x128xf32> -> vector<8x128xf32>
    %c0_161 = arith.constant 0 : index
    %c0_162 = arith.constant 0 : index
    %c0_163 = arith.constant 0 : index
    %313 = vector.load %arg9[%c0_161, %c0_162, %c0_163] : memref<2x1x128xf32, #tpu.memory_space<vmem>>, vector<1x1x128xf32>
    %314 = vector.shape_cast %313 : vector<1x1x128xf32> to vector<1x128xf32>
    %315 = vector.broadcast %314 : vector<1x128xf32> to vector<8x128xf32>
    %316 = arith.addf %312, %315 : vector<8x128xf32>
    %cst_164 = arith.constant 5.000000e-01 : f32
    %317 = vector.broadcast %cst_164 : f32 to vector<8x128xf32>
    %318 = arith.mulf %316, %317 : vector<8x128xf32>
    %cst_165 = arith.constant 0.707106769 : f32
    %319 = vector.broadcast %cst_165 : f32 to vector<8x128xf32>
    %320 = arith.mulf %316, %319 : vector<8x128xf32>
    %cst_166 = arith.constant 0.000000e+00 : f32
    %321 = vector.broadcast %cst_166 : f32 to vector<8x128xf32>
    %322 = arith.cmpf oge, %320, %321 : vector<8x128xf32>
    %cst_167 = arith.constant 1.000000e+00 : f32
    %cst_168 = arith.constant -1.000000e+00 : f32
    %323 = vector.broadcast %cst_167 : f32 to vector<8x128xf32>
    %324 = vector.broadcast %cst_168 : f32 to vector<8x128xf32>
    %325 = arith.select %322, %323, %324 : vector<8x128xi1>, vector<8x128xf32>
    %326 = math.absf %320 : vector<8x128xf32>
    %cst_169 = arith.constant 0.327591091 : f32
    %327 = vector.broadcast %cst_169 : f32 to vector<8x128xf32>
    %328 = arith.mulf %327, %326 : vector<8x128xf32>
    %cst_170 = arith.constant 1.000000e+00 : f32
    %329 = vector.broadcast %cst_170 : f32 to vector<8x128xf32>
    %330 = arith.addf %329, %328 : vector<8x128xf32>
    %cst_171 = arith.constant 1.000000e+00 : f32
    %331 = vector.broadcast %cst_171 : f32 to vector<8x128xf32>
    %332 = arith.divf %331, %330 : vector<8x128xf32>
    %cst_172 = arith.constant 1.06140542 : f32
    %333 = vector.broadcast %cst_172 : f32 to vector<8x128xf32>
    %334 = arith.mulf %333, %332 : vector<8x128xf32>
    %cst_173 = arith.constant -1.45315206 : f32
    %335 = vector.broadcast %cst_173 : f32 to vector<8x128xf32>
    %336 = arith.addf %334, %335 : vector<8x128xf32>
    %337 = arith.mulf %336, %332 : vector<8x128xf32>
    %cst_174 = arith.constant 1.42141378 : f32
    %338 = vector.broadcast %cst_174 : f32 to vector<8x128xf32>
    %339 = arith.addf %337, %338 : vector<8x128xf32>
    %340 = arith.mulf %339, %332 : vector<8x128xf32>
    %cst_175 = arith.constant -0.284496725 : f32
    %341 = vector.broadcast %cst_175 : f32 to vector<8x128xf32>
    %342 = arith.addf %340, %341 : vector<8x128xf32>
    %343 = arith.mulf %342, %332 : vector<8x128xf32>
    %cst_176 = arith.constant 0.254829586 : f32
    %344 = vector.broadcast %cst_176 : f32 to vector<8x128xf32>
    %345 = arith.addf %343, %344 : vector<8x128xf32>
    %346 = arith.mulf %345, %332 : vector<8x128xf32>
    %cst_177 = arith.constant 0.000000e+00 : f32
    %347 = vector.broadcast %cst_177 : f32 to vector<8x128xf32>
    %348 = arith.subf %347, %326 : vector<8x128xf32>
    %349 = arith.mulf %348, %326 : vector<8x128xf32>
    %350 = math.exp %349 : vector<8x128xf32>
    %351 = arith.mulf %346, %350 : vector<8x128xf32>
    %cst_178 = arith.constant 1.000000e+00 : f32
    %352 = vector.broadcast %cst_178 : f32 to vector<8x128xf32>
    %353 = arith.subf %352, %351 : vector<8x128xf32>
    %354 = arith.mulf %325, %353 : vector<8x128xf32>
    %cst_179 = arith.constant 1.000000e+00 : f32
    %355 = vector.broadcast %cst_179 : f32 to vector<8x128xf32>
    %356 = arith.addf %355, %354 : vector<8x128xf32>
    %357 = arith.mulf %318, %356 : vector<8x128xf32>
    %c0_180 = arith.constant 0 : index
    %c0_181 = arith.constant 0 : index
    %c0_182 = arith.constant 0 : index
    %358 = vector.load %arg10[%c0_180, %c0_181, %c0_182] : memref<2x128x32xf32, #tpu.memory_space<vmem>>, vector<1x128x32xf32>
    %359 = vector.shape_cast %358 : vector<1x128x32xf32> to vector<128x32xf32>
    %cst_183 = arith.constant dense<0.000000e+00> : vector<8x32xf32>
    %360 = tpu.matmul %357, %359, %cst_183 {dimension_numbers = #tpu.dot_dimension_numbers<[1], [0], [0], [1], [0, 0, 1, 1], [], []>} : vector<8x128xf32>, vector<128x32xf32>, vector<8x32xf32> -> vector<8x32xf32>
    %c0_184 = arith.constant 0 : index
    %c0_185 = arith.constant 0 : index
    %c0_186 = arith.constant 0 : index
    %361 = vector.load %arg11[%c0_184, %c0_185, %c0_186] : memref<2x1x32xf32, #tpu.memory_space<vmem>>, vector<1x1x32xf32>
    %362 = vector.shape_cast %361 : vector<1x1x32xf32> to vector<1x32xf32>
    %363 = vector.broadcast %362 : vector<1x32xf32> to vector<8x32xf32>
    %364 = arith.addf %360, %363 : vector<8x32xf32>
    %365 = arith.addf %283, %364 : vector<8x32xf32>
    %c2_187 = arith.constant 2 : index
    %c0_188 = arith.constant 0 : index
    %c0_189 = arith.constant 0 : index
    %c0_190 = arith.constant 0 : index
    %366 = vector.load %arg6[%c2_187, %c0_188, %c0_189, %c0_190] : memref<3x4x32x32xf32, #tpu.memory_space<vmem>>, vector<1x1x32x32xf32>
    %367 = vector.shape_cast %366 : vector<1x1x32x32xf32> to vector<32x32xf32>
    %cst_191 = arith.constant dense<0.000000e+00> : vector<8x32xf32>
    %368 = tpu.matmul %309, %367, %cst_191 {dimension_numbers = #tpu.dot_dimension_numbers<[1], [0], [0], [1], [0, 0, 1, 1], [], []>} : vector<8x32xf32>, vector<32x32xf32>, vector<8x32xf32> -> vector<8x32xf32>
    %c2_192 = arith.constant 2 : index
    %c0_193 = arith.constant 0 : index
    %c0_194 = arith.constant 0 : index
    %c0_195 = arith.constant 0 : index
    %369 = vector.load %arg7[%c2_192, %c0_193, %c0_194, %c0_195] : memref<3x4x1x32xf32, #tpu.memory_space<vmem>>, vector<1x1x1x32xf32>
    %370 = vector.shape_cast %369 : vector<1x1x1x32xf32> to vector<1x32xf32>
    %371 = vector.broadcast %370 : vector<1x32xf32> to vector<8x32xf32>
    %372 = arith.addf %368, %371 : vector<8x32xf32>
    %c2_196 = arith.constant 2 : index
    %c1_197 = arith.constant 1 : index
    %c0_198 = arith.constant 0 : index
    %c0_199 = arith.constant 0 : index
    %373 = vector.load %arg6[%c2_196, %c1_197, %c0_198, %c0_199] : memref<3x4x32x32xf32, #tpu.memory_space<vmem>>, vector<1x1x32x32xf32>
    %374 = vector.shape_cast %373 : vector<1x1x32x32xf32> to vector<32x32xf32>
    %cst_200 = arith.constant dense<0.000000e+00> : vector<8x32xf32>
    %375 = tpu.matmul %5, %374, %cst_200 {dimension_numbers = #tpu.dot_dimension_numbers<[1], [0], [0], [1], [0, 0, 1, 1], [], []>} : vector<8x32xf32>, vector<32x32xf32>, vector<8x32xf32> -> vector<8x32xf32>
    %c2_201 = arith.constant 2 : index
    %c1_202 = arith.constant 1 : index
    %c0_203 = arith.constant 0 : index
    %c0_204 = arith.constant 0 : index
    %376 = vector.load %arg7[%c2_201, %c1_202, %c0_203, %c0_204] : memref<3x4x1x32xf32, #tpu.memory_space<vmem>>, vector<1x1x1x32xf32>
    %377 = vector.shape_cast %376 : vector<1x1x1x32xf32> to vector<1x32xf32>
    %378 = vector.broadcast %377 : vector<1x32xf32> to vector<8x32xf32>
    %379 = arith.addf %375, %378 : vector<8x32xf32>
    %c2_205 = arith.constant 2 : index
    %c2_206 = arith.constant 2 : index
    %c0_207 = arith.constant 0 : index
    %c0_208 = arith.constant 0 : index
    %380 = vector.load %arg6[%c2_205, %c2_206, %c0_207, %c0_208] : memref<3x4x32x32xf32, #tpu.memory_space<vmem>>, vector<1x1x32x32xf32>
    %381 = vector.shape_cast %380 : vector<1x1x32x32xf32> to vector<32x32xf32>
    %cst_209 = arith.constant dense<0.000000e+00> : vector<8x32xf32>
    %382 = tpu.matmul %5, %381, %cst_209 {dimension_numbers = #tpu.dot_dimension_numbers<[1], [0], [0], [1], [0, 0, 1, 1], [], []>} : vector<8x32xf32>, vector<32x32xf32>, vector<8x32xf32> -> vector<8x32xf32>
    %c2_210 = arith.constant 2 : index
    %c2_211 = arith.constant 2 : index
    %c0_212 = arith.constant 0 : index
    %c0_213 = arith.constant 0 : index
    %383 = vector.load %arg7[%c2_210, %c2_211, %c0_212, %c0_213] : memref<3x4x1x32xf32, #tpu.memory_space<vmem>>, vector<1x1x1x32xf32>
    %384 = vector.shape_cast %383 : vector<1x1x1x32xf32> to vector<1x32xf32>
    %385 = vector.broadcast %384 : vector<1x32xf32> to vector<8x32xf32>
    %386 = arith.addf %382, %385 : vector<8x32xf32>
    %c2_214 = arith.constant 2 : index
    %c3_215 = arith.constant 3 : index
    %c0_216 = arith.constant 0 : index
    %c0_217 = arith.constant 0 : index
    %387 = vector.load %arg6[%c2_214, %c3_215, %c0_216, %c0_217] : memref<3x4x32x32xf32, #tpu.memory_space<vmem>>, vector<1x1x32x32xf32>
    %388 = vector.shape_cast %387 : vector<1x1x32x32xf32> to vector<32x32xf32>
    %cst_218 = arith.constant 0.000000e+00 : f32
    %389 = vector.broadcast %cst_218 : f32 to vector<8x32xf32>
    %390 = vector.extract_strided_slice %372 {offsets = [0, 0], sizes = [8, 8], strides = [1, 1]} : vector<8x32xf32> to vector<8x8xf32>
    %391 = vector.extract_strided_slice %379 {offsets = [0, 0], sizes = [8, 8], strides = [1, 1]} : vector<8x32xf32> to vector<8x8xf32>
    %392 = tpu.transpose %391, [1, 0] : vector<8x8xf32> -> vector<8x8xf32>
    %cst_219 = arith.constant dense<0.000000e+00> : vector<8x8xf32>
    %393 = tpu.matmul %390, %392, %cst_219 {dimension_numbers = #tpu.dot_dimension_numbers<[1], [0], [0], [1], [0, 0, 1, 1], [], []>} : vector<8x8xf32>, vector<8x8xf32>, vector<8x8xf32> -> vector<8x8xf32>
    %cst_220 = arith.constant 0.353553385 : f32
    %394 = vector.broadcast %cst_220 : f32 to vector<8x8xf32>
    %395 = arith.mulf %393, %394 : vector<8x8xf32>
    %cst_221 = arith.constant dense<0xFF800000> : vector<8xf32>
    %396 = vector.multi_reduction <maximumf>, %395, %cst_221 [1] : vector<8x8xf32> to vector<8xf32>
    %397 = vector.shape_cast %396 : vector<8xf32> to vector<8x1xf32>
    %398 = vector.broadcast %397 : vector<8x1xf32> to vector<8x8xf32>
    %399 = arith.subf %395, %398 : vector<8x8xf32>
    %400 = math.exp %399 : vector<8x8xf32>
    %cst_222 = arith.constant dense<0.000000e+00> : vector<8xf32>
    %401 = vector.multi_reduction <add>, %400, %cst_222 [1] : vector<8x8xf32> to vector<8xf32>
    %402 = vector.shape_cast %401 : vector<8xf32> to vector<8x1xf32>
    %403 = tpu.reciprocal %402 {approx = true} : vector<8x1xf32> -> vector<8x1xf32>
    %404 = vector.broadcast %403 : vector<8x1xf32> to vector<8x8xf32>
    %405 = arith.mulf %400, %404 : vector<8x8xf32>
    %406 = vector.extract_strided_slice %386 {offsets = [0, 0], sizes = [8, 8], strides = [1, 1]} : vector<8x32xf32> to vector<8x8xf32>
    %cst_223 = arith.constant dense<0.000000e+00> : vector<8x8xf32>
    %407 = tpu.matmul %405, %406, %cst_223 {dimension_numbers = #tpu.dot_dimension_numbers<[1], [0], [0], [1], [0, 0, 1, 1], [], []>} : vector<8x8xf32>, vector<8x8xf32>, vector<8x8xf32> -> vector<8x8xf32>
    %408 = vector.extract_strided_slice %388 {offsets = [0, 0], sizes = [8, 32], strides = [1, 1]} : vector<32x32xf32> to vector<8x32xf32>
    %cst_224 = arith.constant dense<0.000000e+00> : vector<8x32xf32>
    %409 = tpu.matmul %407, %408, %cst_224 {dimension_numbers = #tpu.dot_dimension_numbers<[1], [0], [0], [1], [0, 0, 1, 1], [], []>} : vector<8x8xf32>, vector<8x32xf32>, vector<8x32xf32> -> vector<8x32xf32>
    %410 = arith.addf %389, %409 : vector<8x32xf32>
    %411 = vector.extract_strided_slice %372 {offsets = [0, 8], sizes = [8, 8], strides = [1, 1]} : vector<8x32xf32> to vector<8x8xf32>
    %412 = vector.extract_strided_slice %379 {offsets = [0, 8], sizes = [8, 8], strides = [1, 1]} : vector<8x32xf32> to vector<8x8xf32>
    %413 = tpu.transpose %412, [1, 0] : vector<8x8xf32> -> vector<8x8xf32>
    %cst_225 = arith.constant dense<0.000000e+00> : vector<8x8xf32>
    %414 = tpu.matmul %411, %413, %cst_225 {dimension_numbers = #tpu.dot_dimension_numbers<[1], [0], [0], [1], [0, 0, 1, 1], [], []>} : vector<8x8xf32>, vector<8x8xf32>, vector<8x8xf32> -> vector<8x8xf32>
    %cst_226 = arith.constant 0.353553385 : f32
    %415 = vector.broadcast %cst_226 : f32 to vector<8x8xf32>
    %416 = arith.mulf %414, %415 : vector<8x8xf32>
    %cst_227 = arith.constant dense<0xFF800000> : vector<8xf32>
    %417 = vector.multi_reduction <maximumf>, %416, %cst_227 [1] : vector<8x8xf32> to vector<8xf32>
    %418 = vector.shape_cast %417 : vector<8xf32> to vector<8x1xf32>
    %419 = vector.broadcast %418 : vector<8x1xf32> to vector<8x8xf32>
    %420 = arith.subf %416, %419 : vector<8x8xf32>
    %421 = math.exp %420 : vector<8x8xf32>
    %cst_228 = arith.constant dense<0.000000e+00> : vector<8xf32>
    %422 = vector.multi_reduction <add>, %421, %cst_228 [1] : vector<8x8xf32> to vector<8xf32>
    %423 = vector.shape_cast %422 : vector<8xf32> to vector<8x1xf32>
    %424 = tpu.reciprocal %423 {approx = true} : vector<8x1xf32> -> vector<8x1xf32>
    %425 = vector.broadcast %424 : vector<8x1xf32> to vector<8x8xf32>
    %426 = arith.mulf %421, %425 : vector<8x8xf32>
    %427 = vector.extract_strided_slice %386 {offsets = [0, 8], sizes = [8, 8], strides = [1, 1]} : vector<8x32xf32> to vector<8x8xf32>
    %cst_229 = arith.constant dense<0.000000e+00> : vector<8x8xf32>
    %428 = tpu.matmul %426, %427, %cst_229 {dimension_numbers = #tpu.dot_dimension_numbers<[1], [0], [0], [1], [0, 0, 1, 1], [], []>} : vector<8x8xf32>, vector<8x8xf32>, vector<8x8xf32> -> vector<8x8xf32>
    %429 = vector.extract_strided_slice %388 {offsets = [8, 0], sizes = [8, 32], strides = [1, 1]} : vector<32x32xf32> to vector<8x32xf32>
    %cst_230 = arith.constant dense<0.000000e+00> : vector<8x32xf32>
    %430 = tpu.matmul %428, %429, %cst_230 {dimension_numbers = #tpu.dot_dimension_numbers<[1], [0], [0], [1], [0, 0, 1, 1], [], []>} : vector<8x8xf32>, vector<8x32xf32>, vector<8x32xf32> -> vector<8x32xf32>
    %431 = arith.addf %410, %430 : vector<8x32xf32>
    %432 = vector.extract_strided_slice %372 {offsets = [0, 16], sizes = [8, 8], strides = [1, 1]} : vector<8x32xf32> to vector<8x8xf32>
    %433 = vector.extract_strided_slice %379 {offsets = [0, 16], sizes = [8, 8], strides = [1, 1]} : vector<8x32xf32> to vector<8x8xf32>
    %434 = tpu.transpose %433, [1, 0] : vector<8x8xf32> -> vector<8x8xf32>
    %cst_231 = arith.constant dense<0.000000e+00> : vector<8x8xf32>
    %435 = tpu.matmul %432, %434, %cst_231 {dimension_numbers = #tpu.dot_dimension_numbers<[1], [0], [0], [1], [0, 0, 1, 1], [], []>} : vector<8x8xf32>, vector<8x8xf32>, vector<8x8xf32> -> vector<8x8xf32>
    %cst_232 = arith.constant 0.353553385 : f32
    %436 = vector.broadcast %cst_232 : f32 to vector<8x8xf32>
    %437 = arith.mulf %435, %436 : vector<8x8xf32>
    %cst_233 = arith.constant dense<0xFF800000> : vector<8xf32>
    %438 = vector.multi_reduction <maximumf>, %437, %cst_233 [1] : vector<8x8xf32> to vector<8xf32>
    %439 = vector.shape_cast %438 : vector<8xf32> to vector<8x1xf32>
    %440 = vector.broadcast %439 : vector<8x1xf32> to vector<8x8xf32>
    %441 = arith.subf %437, %440 : vector<8x8xf32>
    %442 = math.exp %441 : vector<8x8xf32>
    %cst_234 = arith.constant dense<0.000000e+00> : vector<8xf32>
    %443 = vector.multi_reduction <add>, %442, %cst_234 [1] : vector<8x8xf32> to vector<8xf32>
    %444 = vector.shape_cast %443 : vector<8xf32> to vector<8x1xf32>
    %445 = tpu.reciprocal %444 {approx = true} : vector<8x1xf32> -> vector<8x1xf32>
    %446 = vector.broadcast %445 : vector<8x1xf32> to vector<8x8xf32>
    %447 = arith.mulf %442, %446 : vector<8x8xf32>
    %448 = vector.extract_strided_slice %386 {offsets = [0, 16], sizes = [8, 8], strides = [1, 1]} : vector<8x32xf32> to vector<8x8xf32>
    %cst_235 = arith.constant dense<0.000000e+00> : vector<8x8xf32>
    %449 = tpu.matmul %447, %448, %cst_235 {dimension_numbers = #tpu.dot_dimension_numbers<[1], [0], [0], [1], [0, 0, 1, 1], [], []>} : vector<8x8xf32>, vector<8x8xf32>, vector<8x8xf32> -> vector<8x8xf32>
    %450 = vector.extract_strided_slice %388 {offsets = [16, 0], sizes = [8, 32], strides = [1, 1]} : vector<32x32xf32> to vector<8x32xf32>
    %cst_236 = arith.constant dense<0.000000e+00> : vector<8x32xf32>
    %451 = tpu.matmul %449, %450, %cst_236 {dimension_numbers = #tpu.dot_dimension_numbers<[1], [0], [0], [1], [0, 0, 1, 1], [], []>} : vector<8x8xf32>, vector<8x32xf32>, vector<8x32xf32> -> vector<8x32xf32>
    %452 = arith.addf %431, %451 : vector<8x32xf32>
    %453 = vector.extract_strided_slice %372 {offsets = [0, 24], sizes = [8, 8], strides = [1, 1]} : vector<8x32xf32> to vector<8x8xf32>
    %454 = vector.extract_strided_slice %379 {offsets = [0, 24], sizes = [8, 8], strides = [1, 1]} : vector<8x32xf32> to vector<8x8xf32>
    %455 = tpu.transpose %454, [1, 0] : vector<8x8xf32> -> vector<8x8xf32>
    %cst_237 = arith.constant dense<0.000000e+00> : vector<8x8xf32>
    %456 = tpu.matmul %453, %455, %cst_237 {dimension_numbers = #tpu.dot_dimension_numbers<[1], [0], [0], [1], [0, 0, 1, 1], [], []>} : vector<8x8xf32>, vector<8x8xf32>, vector<8x8xf32> -> vector<8x8xf32>
    %cst_238 = arith.constant 0.353553385 : f32
    %457 = vector.broadcast %cst_238 : f32 to vector<8x8xf32>
    %458 = arith.mulf %456, %457 : vector<8x8xf32>
    %cst_239 = arith.constant dense<0xFF800000> : vector<8xf32>
    %459 = vector.multi_reduction <maximumf>, %458, %cst_239 [1] : vector<8x8xf32> to vector<8xf32>
    %460 = vector.shape_cast %459 : vector<8xf32> to vector<8x1xf32>
    %461 = vector.broadcast %460 : vector<8x1xf32> to vector<8x8xf32>
    %462 = arith.subf %458, %461 : vector<8x8xf32>
    %463 = math.exp %462 : vector<8x8xf32>
    %cst_240 = arith.constant dense<0.000000e+00> : vector<8xf32>
    %464 = vector.multi_reduction <add>, %463, %cst_240 [1] : vector<8x8xf32> to vector<8xf32>
    %465 = vector.shape_cast %464 : vector<8xf32> to vector<8x1xf32>
    %466 = tpu.reciprocal %465 {approx = true} : vector<8x1xf32> -> vector<8x1xf32>
    %467 = vector.broadcast %466 : vector<8x1xf32> to vector<8x8xf32>
    %468 = arith.mulf %463, %467 : vector<8x8xf32>
    %469 = vector.extract_strided_slice %386 {offsets = [0, 24], sizes = [8, 8], strides = [1, 1]} : vector<8x32xf32> to vector<8x8xf32>
    %cst_241 = arith.constant dense<0.000000e+00> : vector<8x8xf32>
    %470 = tpu.matmul %468, %469, %cst_241 {dimension_numbers = #tpu.dot_dimension_numbers<[1], [0], [0], [1], [0, 0, 1, 1], [], []>} : vector<8x8xf32>, vector<8x8xf32>, vector<8x8xf32> -> vector<8x8xf32>
    %471 = vector.extract_strided_slice %388 {offsets = [24, 0], sizes = [8, 32], strides = [1, 1]} : vector<32x32xf32> to vector<8x32xf32>
    %cst_242 = arith.constant dense<0.000000e+00> : vector<8x32xf32>
    %472 = tpu.matmul %470, %471, %cst_242 {dimension_numbers = #tpu.dot_dimension_numbers<[1], [0], [0], [1], [0, 0, 1, 1], [], []>} : vector<8x8xf32>, vector<8x32xf32>, vector<8x32xf32> -> vector<8x32xf32>
    %473 = arith.addf %452, %472 : vector<8x32xf32>
    %c2_243 = arith.constant 2 : index
    %c3_244 = arith.constant 3 : index
    %c0_245 = arith.constant 0 : index
    %c0_246 = arith.constant 0 : index
    %474 = vector.load %arg7[%c2_243, %c3_244, %c0_245, %c0_246] : memref<3x4x1x32xf32, #tpu.memory_space<vmem>>, vector<1x1x1x32xf32>
    %475 = vector.shape_cast %474 : vector<1x1x1x32xf32> to vector<1x32xf32>
    %476 = vector.broadcast %475 : vector<1x32xf32> to vector<8x32xf32>
    %477 = arith.addf %473, %476 : vector<8x32xf32>
    %478 = arith.addf %283, %477 : vector<8x32xf32>
    %cst_247 = arith.constant dense<0.000000e+00> : vector<8xf32>
    %479 = vector.multi_reduction <add>, %478, %cst_247 [1] : vector<8x32xf32> to vector<8xf32>
    %480 = vector.shape_cast %479 : vector<8xf32> to vector<8x1xf32>
    %cst_248 = arith.constant 3.200000e+01 : f32
    %481 = vector.broadcast %cst_248 : f32 to vector<8x1xf32>
    %482 = arith.divf %480, %481 : vector<8x1xf32>
    %483 = vector.broadcast %482 : vector<8x1xf32> to vector<8x32xf32>
    %484 = arith.subf %478, %483 : vector<8x32xf32>
    %485 = arith.mulf %484, %484 : vector<8x32xf32>
    %cst_249 = arith.constant dense<0.000000e+00> : vector<8xf32>
    %486 = vector.multi_reduction <add>, %485, %cst_249 [1] : vector<8x32xf32> to vector<8xf32>
    %487 = vector.shape_cast %486 : vector<8xf32> to vector<8x1xf32>
    %cst_250 = arith.constant 3.200000e+01 : f32
    %488 = vector.broadcast %cst_250 : f32 to vector<8x1xf32>
    %489 = arith.divf %487, %488 : vector<8x1xf32>
    %490 = vector.broadcast %482 : vector<8x1xf32> to vector<8x32xf32>
    %491 = arith.subf %478, %490 : vector<8x32xf32>
    %cst_251 = arith.constant 9.99999974E-6 : f32
    %492 = vector.broadcast %cst_251 : f32 to vector<8x1xf32>
    %493 = arith.addf %489, %492 : vector<8x1xf32>
    %494 = math.rsqrt %493 : vector<8x1xf32>
    %495 = vector.broadcast %494 : vector<8x1xf32> to vector<8x32xf32>
    %496 = arith.mulf %491, %495 : vector<8x32xf32>
    %c3_252 = arith.constant 3 : index
    %c0_253 = arith.constant 0 : index
    %c0_254 = arith.constant 0 : index
    %497 = vector.load %arg4[%c3_252, %c0_253, %c0_254] : memref<4x1x32xf32, #tpu.memory_space<vmem>>, vector<1x1x32xf32>
    %498 = vector.shape_cast %497 : vector<1x1x32xf32> to vector<1x32xf32>
    %499 = vector.broadcast %498 : vector<1x32xf32> to vector<8x32xf32>
    %500 = arith.mulf %496, %499 : vector<8x32xf32>
    %c3_255 = arith.constant 3 : index
    %c0_256 = arith.constant 0 : index
    %c0_257 = arith.constant 0 : index
    %501 = vector.load %arg5[%c3_255, %c0_256, %c0_257] : memref<4x1x32xf32, #tpu.memory_space<vmem>>, vector<1x1x32xf32>
    %502 = vector.shape_cast %501 : vector<1x1x32xf32> to vector<1x32xf32>
    %503 = vector.broadcast %502 : vector<1x32xf32> to vector<8x32xf32>
    %504 = arith.addf %500, %503 : vector<8x32xf32>
    %c1_258 = arith.constant 1 : index
    %c0_259 = arith.constant 0 : index
    %c0_260 = arith.constant 0 : index
    %505 = vector.load %arg8[%c1_258, %c0_259, %c0_260] : memref<2x32x128xf32, #tpu.memory_space<vmem>>, vector<1x32x128xf32>
    %506 = vector.shape_cast %505 : vector<1x32x128xf32> to vector<32x128xf32>
    %cst_261 = arith.constant dense<0.000000e+00> : vector<8x128xf32>
    %507 = tpu.matmul %504, %506, %cst_261 {dimension_numbers = #tpu.dot_dimension_numbers<[1], [0], [0], [1], [0, 0, 1, 1], [], []>} : vector<8x32xf32>, vector<32x128xf32>, vector<8x128xf32> -> vector<8x128xf32>
    %c1_262 = arith.constant 1 : index
    %c0_263 = arith.constant 0 : index
    %c0_264 = arith.constant 0 : index
    %508 = vector.load %arg9[%c1_262, %c0_263, %c0_264] : memref<2x1x128xf32, #tpu.memory_space<vmem>>, vector<1x1x128xf32>
    %509 = vector.shape_cast %508 : vector<1x1x128xf32> to vector<1x128xf32>
    %510 = vector.broadcast %509 : vector<1x128xf32> to vector<8x128xf32>
    %511 = arith.addf %507, %510 : vector<8x128xf32>
    %cst_265 = arith.constant 5.000000e-01 : f32
    %512 = vector.broadcast %cst_265 : f32 to vector<8x128xf32>
    %513 = arith.mulf %511, %512 : vector<8x128xf32>
    %cst_266 = arith.constant 0.707106769 : f32
    %514 = vector.broadcast %cst_266 : f32 to vector<8x128xf32>
    %515 = arith.mulf %511, %514 : vector<8x128xf32>
    %cst_267 = arith.constant 0.000000e+00 : f32
    %516 = vector.broadcast %cst_267 : f32 to vector<8x128xf32>
    %517 = arith.cmpf oge, %515, %516 : vector<8x128xf32>
    %cst_268 = arith.constant 1.000000e+00 : f32
    %cst_269 = arith.constant -1.000000e+00 : f32
    %518 = vector.broadcast %cst_268 : f32 to vector<8x128xf32>
    %519 = vector.broadcast %cst_269 : f32 to vector<8x128xf32>
    %520 = arith.select %517, %518, %519 : vector<8x128xi1>, vector<8x128xf32>
    %521 = math.absf %515 : vector<8x128xf32>
    %cst_270 = arith.constant 0.327591091 : f32
    %522 = vector.broadcast %cst_270 : f32 to vector<8x128xf32>
    %523 = arith.mulf %522, %521 : vector<8x128xf32>
    %cst_271 = arith.constant 1.000000e+00 : f32
    %524 = vector.broadcast %cst_271 : f32 to vector<8x128xf32>
    %525 = arith.addf %524, %523 : vector<8x128xf32>
    %cst_272 = arith.constant 1.000000e+00 : f32
    %526 = vector.broadcast %cst_272 : f32 to vector<8x128xf32>
    %527 = arith.divf %526, %525 : vector<8x128xf32>
    %cst_273 = arith.constant 1.06140542 : f32
    %528 = vector.broadcast %cst_273 : f32 to vector<8x128xf32>
    %529 = arith.mulf %528, %527 : vector<8x128xf32>
    %cst_274 = arith.constant -1.45315206 : f32
    %530 = vector.broadcast %cst_274 : f32 to vector<8x128xf32>
    %531 = arith.addf %529, %530 : vector<8x128xf32>
    %532 = arith.mulf %531, %527 : vector<8x128xf32>
    %cst_275 = arith.constant 1.42141378 : f32
    %533 = vector.broadcast %cst_275 : f32 to vector<8x128xf32>
    %534 = arith.addf %532, %533 : vector<8x128xf32>
    %535 = arith.mulf %534, %527 : vector<8x128xf32>
    %cst_276 = arith.constant -0.284496725 : f32
    %536 = vector.broadcast %cst_276 : f32 to vector<8x128xf32>
    %537 = arith.addf %535, %536 : vector<8x128xf32>
    %538 = arith.mulf %537, %527 : vector<8x128xf32>
    %cst_277 = arith.constant 0.254829586 : f32
    %539 = vector.broadcast %cst_277 : f32 to vector<8x128xf32>
    %540 = arith.addf %538, %539 : vector<8x128xf32>
    %541 = arith.mulf %540, %527 : vector<8x128xf32>
    %cst_278 = arith.constant 0.000000e+00 : f32
    %542 = vector.broadcast %cst_278 : f32 to vector<8x128xf32>
    %543 = arith.subf %542, %521 : vector<8x128xf32>
    %544 = arith.mulf %543, %521 : vector<8x128xf32>
    %545 = math.exp %544 : vector<8x128xf32>
    %546 = arith.mulf %541, %545 : vector<8x128xf32>
    %cst_279 = arith.constant 1.000000e+00 : f32
    %547 = vector.broadcast %cst_279 : f32 to vector<8x128xf32>
    %548 = arith.subf %547, %546 : vector<8x128xf32>
    %549 = arith.mulf %520, %548 : vector<8x128xf32>
    %cst_280 = arith.constant 1.000000e+00 : f32
    %550 = vector.broadcast %cst_280 : f32 to vector<8x128xf32>
    %551 = arith.addf %550, %549 : vector<8x128xf32>
    %552 = arith.mulf %513, %551 : vector<8x128xf32>
    %c1_281 = arith.constant 1 : index
    %c0_282 = arith.constant 0 : index
    %c0_283 = arith.constant 0 : index
    %553 = vector.load %arg10[%c1_281, %c0_282, %c0_283] : memref<2x128x32xf32, #tpu.memory_space<vmem>>, vector<1x128x32xf32>
    %554 = vector.shape_cast %553 : vector<1x128x32xf32> to vector<128x32xf32>
    %cst_284 = arith.constant dense<0.000000e+00> : vector<8x32xf32>
    %555 = tpu.matmul %552, %554, %cst_284 {dimension_numbers = #tpu.dot_dimension_numbers<[1], [0], [0], [1], [0, 0, 1, 1], [], []>} : vector<8x128xf32>, vector<128x32xf32>, vector<8x32xf32> -> vector<8x32xf32>
    %c1_285 = arith.constant 1 : index
    %c0_286 = arith.constant 0 : index
    %c0_287 = arith.constant 0 : index
    %556 = vector.load %arg11[%c1_285, %c0_286, %c0_287] : memref<2x1x32xf32, #tpu.memory_space<vmem>>, vector<1x1x32xf32>
    %557 = vector.shape_cast %556 : vector<1x1x32xf32> to vector<1x32xf32>
    %558 = vector.broadcast %557 : vector<1x32xf32> to vector<8x32xf32>
    %559 = arith.addf %555, %558 : vector<8x32xf32>
    %560 = arith.addf %478, %559 : vector<8x32xf32>
    %c0_288 = arith.constant 0 : index
    %c0_289 = arith.constant 0 : index
    %c0_290 = arith.constant 0 : index
    %561 = vector.load %arg12[%c0_288, %c0_289, %c0_290] : memref<1x8x32xf32, #tpu.memory_space<vmem>>, vector<1x8x32xf32>
    %562 = vector.shape_cast %561 : vector<1x8x32xf32> to vector<8x32xf32>
    %563 = vector.shape_cast %478 : vector<8x32xf32> to vector<1x8x32xf32>
    tpu.vector_store %arg12[%c0_288, %c0_289, %c0_290], %563 {strides = array<i32>} : memref<1x8x32xf32, #tpu.memory_space<vmem>>, vector<1x8x32xf32>,
    %c0_291 = arith.constant 0 : index
    %c0_292 = arith.constant 0 : index
    %c0_293 = arith.constant 0 : index
    %564 = vector.load %arg13[%c0_291, %c0_292, %c0_293] : memref<1x8x32xf32, #tpu.memory_space<vmem>>, vector<1x8x32xf32>
    %565 = vector.shape_cast %564 : vector<1x8x32xf32> to vector<8x32xf32>
    %566 = vector.shape_cast %365 : vector<8x32xf32> to vector<1x8x32xf32>
    tpu.vector_store %arg13[%c0_291, %c0_292, %c0_293], %566 {strides = array<i32>} : memref<1x8x32xf32, #tpu.memory_space<vmem>>, vector<1x8x32xf32>,
    %c0_294 = arith.constant 0 : index
    %c0_295 = arith.constant 0 : index
    %c0_296 = arith.constant 0 : index
    %567 = vector.load %arg14[%c0_294, %c0_295, %c0_296] : memref<1x8x32xf32, #tpu.memory_space<vmem>>, vector<1x8x32xf32>
    %568 = vector.shape_cast %567 : vector<1x8x32xf32> to vector<8x32xf32>
    %569 = vector.shape_cast %560 : vector<8x32xf32> to vector<1x8x32xf32>
    tpu.vector_store %arg14[%c0_294, %c0_295, %c0_296], %569 {strides = array<i32>} : memref<1x8x32xf32, #tpu.memory_space<vmem>>, vector<1x8x32xf32>,
    return
  }
  func.func @transform_0(%arg0: i32) -> (i32, i32, i32) {
    %c0_i32 = arith.constant 0 : i32
    %c0_i32_0 = arith.constant 0 : i32
    %c0_i32_1 = arith.constant 0 : i32
    return %arg0, %c0_i32, %c0_i32_0 : i32, i32, i32
  }
  func.func @transform_1(%arg0: i32) -> (i32, i32, i32) {
    %c0_i32 = arith.constant 0 : i32
    %c0_i32_0 = arith.constant 0 : i32
    %c0_i32_1 = arith.constant 0 : i32
    return %arg0, %c0_i32, %c0_i32_0 : i32, i32, i32
  }
  func.func @transform_2(%arg0: i32) -> (i32, i32, i32) {
    %c0_i32 = arith.constant 0 : i32
    %c0_i32_0 = arith.constant 0 : i32
    %c0_i32_1 = arith.constant 0 : i32
    return %arg0, %c0_i32, %c0_i32_0 : i32, i32, i32
  }
  func.func @transform_3(%arg0: i32) -> (i32, i32, i32) {
    %c0_i32 = arith.constant 0 : i32
    %c0_i32_0 = arith.constant 0 : i32
    %c0_i32_1 = arith.constant 0 : i32
    %c0_i32_2 = arith.constant 0 : i32
    return %c0_i32, %c0_i32_0, %c0_i32_1 : i32, i32, i32
  }
  func.func @transform_4(%arg0: i32) -> (i32, i32, i32) {
    %c0_i32 = arith.constant 0 : i32
    %c0_i32_0 = arith.constant 0 : i32
    %c0_i32_1 = arith.constant 0 : i32
    %c0_i32_2 = arith.constant 0 : i32
    return %c0_i32, %c0_i32_0, %c0_i32_1 : i32, i32, i32
  }
  func.func @transform_5(%arg0: i32) -> (i32, i32, i32, i32) {
    %c0_i32 = arith.constant 0 : i32
    %c0_i32_0 = arith.constant 0 : i32
    %c0_i32_1 = arith.constant 0 : i32
    %c0_i32_2 = arith.constant 0 : i32
    %c0_i32_3 = arith.constant 0 : i32
    return %c0_i32, %c0_i32_0, %c0_i32_1, %c0_i32_2 : i32, i32, i32, i32
  }
  func.func @transform_6(%arg0: i32) -> (i32, i32, i32, i32) {
    %c0_i32 = arith.constant 0 : i32
    %c0_i32_0 = arith.constant 0 : i32
    %c0_i32_1 = arith.constant 0 : i32
    %c0_i32_2 = arith.constant 0 : i32
    %c0_i32_3 = arith.constant 0 : i32
    return %c0_i32, %c0_i32_0, %c0_i32_1, %c0_i32_2 : i32, i32, i32, i32
  }
  func.func @transform_7(%arg0: i32) -> (i32, i32, i32) {
    %c0_i32 = arith.constant 0 : i32
    %c0_i32_0 = arith.constant 0 : i32
    %c0_i32_1 = arith.constant 0 : i32
    %c0_i32_2 = arith.constant 0 : i32
    return %c0_i32, %c0_i32_0, %c0_i32_1 : i32, i32, i32
  }
  func.func @transform_8(%arg0: i32) -> (i32, i32, i32) {
    %c0_i32 = arith.constant 0 : i32
    %c0_i32_0 = arith.constant 0 : i32
    %c0_i32_1 = arith.constant 0 : i32
    %c0_i32_2 = arith.constant 0 : i32
    return %c0_i32, %c0_i32_0, %c0_i32_1 : i32, i32, i32
  }
  func.func @transform_9(%arg0: i32) -> (i32, i32, i32) {
    %c0_i32 = arith.constant 0 : i32
    %c0_i32_0 = arith.constant 0 : i32
    %c0_i32_1 = arith.constant 0 : i32
    %c0_i32_2 = arith.constant 0 : i32
    return %c0_i32, %c0_i32_0, %c0_i32_1 : i32, i32, i32
  }
  func.func @transform_10(%arg0: i32) -> (i32, i32, i32) {
    %c0_i32 = arith.constant 0 : i32
    %c0_i32_0 = arith.constant 0 : i32
    %c0_i32_1 = arith.constant 0 : i32
    %c0_i32_2 = arith.constant 0 : i32
    return %c0_i32, %c0_i32_0, %c0_i32_1 : i32, i32, i32
  }
  func.func @transform_11(%arg0: i32) -> (i32, i32, i32) {
    %c0_i32 = arith.constant 0 : i32
    %c0_i32_0 = arith.constant 0 : i32
    %c0_i32_1 = arith.constant 0 : i32
    return %arg0, %c0_i32, %c0_i32_0 : i32, i32, i32
  }
  func.func @transform_12(%arg0: i32) -> (i32, i32, i32) {
    %c0_i32 = arith.constant 0 : i32
    %c0_i32_0 = arith.constant 0 : i32
    %c0_i32_1 = arith.constant 0 : i32
    return %arg0, %c0_i32, %c0_i32_0 : i32, i32, i32
  }
  func.func @transform_13(%arg0: i32) -> (i32, i32, i32) {
    %c0_i32 = arith.constant 0 : i32
    %c0_i32_0 = arith.constant 0 : i32
    %c0_i32_1 = arith.constant 0 : i32
    return %arg0, %c0_i32, %c0_i32_0 : i32, i32, i32
  }
}

</mosaic_0001>

<llo_original>
// kernel: dual_attention_forward.1
$region0: #{dual_attention_forward.1}
  #allocation0 [shape = 'u32[]', space=smem, size = 0x4, offset = 0x4, fixed_abs, tag = 'smem constant byte address 0x4 - core index']
  #allocation1 [shape = 'u32[144,128]{1,0:T(1,128)}', space=vmem, size = 0x12000, scoped, tag = 'internal scratch']
  %s0 = inlined_call_operand.vmem [shape: f32[2,16,32], index: 0, kind: input, shape index: {}]
  %s1 = inlined_call_operand.vmem [shape: f32[2,8,32], index: 1, kind: input, shape index: {}]
  %s2 = inlined_call_operand.vmem [shape: f32[2,8,32], index: 2, kind: input, shape index: {}]
  %s3 = inlined_call_operand.vmem [shape: f32[4,1,32], index: 3, kind: input, shape index: {}]
  %s4 = inlined_call_operand.vmem [shape: f32[4,1,32], index: 4, kind: input, shape index: {}]
  %s5 = inlined_call_operand.vmem [shape: f32[3,4,32,32], index: 5, kind: input, shape index: {}]
  %s6 = inlined_call_operand.vmem [shape: f32[3,4,1,32], index: 6, kind: input, shape index: {}]
  %s7 = inlined_call_operand.vmem [shape: f32[2,32,128], index: 7, kind: input, shape index: {}]
  %s8 = inlined_call_operand.vmem [shape: f32[2,1,128], index: 8, kind: input, shape index: {}]
  %s9 = inlined_call_operand.vmem [shape: f32[2,128,32], index: 9, kind: input, shape index: {}]
  %s10 = inlined_call_operand.vmem [shape: f32[2,1,32], index: 10, kind: input, shape index: {}]
  %s11 = inlined_call_operand.hbm [shape: f32[2,8,32], index: 11, kind: output, shape index: {0}]
  %s12 = inlined_call_operand.hbm [shape: f32[2,8,32], index: 12, kind: output, shape index: {1}]
  %s13 = inlined_call_operand.hbm [shape: f32[2,8,32], index: 13, kind: output, shape index: {2}]
  %14 = xla_tuple %s11, %s12, %s13
  %s15 = sld [smem:[#allocation0]]
  $region93: #{dual_attention_forward.1} parent=0
    _
  %s17 = ssub.s32 1, %s15
  %s18 = scalar_select 0, %s17, %s15
  $region1: #{dual_attention_forward.1} parent=0
    #allocation2 [shape = 'u8[8192]{0}', space=vmem, size = 0x2000, scoped, tag = 'output window, operand 0']
    #allocation3 [shape = 's32[2]{0}', space=sflag, size = 0x8, scoped, tag = 'scoped memory for dual_attention_forward.1']
    #allocation4 [shape = 'u8[8192]{0}', space=vmem, size = 0x2000, scoped, tag = 'output window, operand 1']
    #allocation5 [shape = 's32[2]{0}', space=sflag, size = 0x8, scoped, tag = 'scoped memory for dual_attention_forward.1']
    #allocation6 [shape = 'u8[8192]{0}', space=vmem, size = 0x2000, scoped, tag = 'output window, operand 2']
    %19 = vsyncpa [#allocation3], 0
    %s20 = scalar_lea.sflag [#allocation3], 1
    %21 = vsyncpa %s20, 0
    %22 = vsyncpa [#allocation5], 0
    %s23 = scalar_lea.sflag [#allocation5], 1
    %24 = vsyncpa %s23, 0
    loop: start=0, step=1, limit=4
    $region2: #{dual_attention_forward.1} parent=1 // loop_pre_header
      _
    $region3: #{dual_attention_forward.1} parent=1 // loop_header
      %s26 = sphi 0, %s30
      %p27 = scmp.ge.s32.totalorder %s26, 4
      %s36 = sphi 0, %s38
      %s39 = sphi 0, %s36
      %s40 = sphi 0, %s39
      %s56 = sphi 0, %s40
      %s62 = sphi 0, %s64
      %s65 = sphi 0, %s62
      %s66 = sphi 0, %s65
      %s82 = sphi 0, %s66
      %s88 = sphi 0, %s90
      %s91 = sphi 0, %s88
      %s92 = sphi 0, %s91
      %s108 = sphi 0, %s92
      %s112 = sphi 0, %s112
      %s114 = sphi 0, %s112
      %s115 = sphi 0, %s114
      %s129 = sphi 0, %s115
      %s133 = sphi 0, %s133
      %s135 = sphi 0, %s133
      %s136 = sphi 0, %s135
      %s150 = sphi 0, %s136
      %s154 = sphi 0, %s154
      %s156 = sphi 0, %s154
      %s157 = sphi 0, %s156
      %s171 = sphi 0, %s157
      %s175 = sphi 0, %s175
      %s177 = sphi 0, %s175
      %s178 = sphi 0, %s177
      %s192 = sphi 0, %s178
      %s196 = sphi 0, %s196
      %s198 = sphi 0, %s196
      %s199 = sphi 0, %s198
      %s213 = sphi 0, %s199
      %s217 = sphi 0, %s217
      %s219 = sphi 0, %s217
      %s220 = sphi 0, %s219
      %s234 = sphi 0, %s220
      %s238 = sphi 0, %s238
      %s240 = sphi 0, %s238
      %s241 = sphi 0, %s240
      %s255 = sphi 0, %s241
      %s259 = sphi 0, %s259
      %s261 = sphi 0, %s259
      %s262 = sphi 0, %s261
      %s276 = sphi 0, %s262
      %s282 = sphi 0, %s284
      %s285 = sphi 0, %s282
      %s286 = sphi 0, %s285
      %s302 = sphi 0, %s286
      %s308 = sphi 0, %s310
      %s311 = sphi 0, %s308
      %s312 = sphi 0, %s311
      %s328 = sphi 0, %s312
      %s334 = sphi 0, %s336
      %s337 = sphi 0, %s334
      %s338 = sphi 0, %s337
      %s354 = sphi 0, %s338
    $region4: #{dual_attention_forward.1} parent=1 // loop_header_branch
      %29 = sbr.rel (%p27) target = $region8
    $region5: #{dual_attention_forward.1} parent=1 // loop_body
      %s31 = ssub.s32 %s26, 1
      %s32 = ssub.s32 %s26, 2
      %s33 = sadd.s32 %s26, 1
      %s34 = ssub.s32 %s26, %s33
      %p35 = scmp.eq.s32.totalorder %s34, 0
      %s37 = sadd.s32 %s36, 1
      %s38 = scalar_select %p35, %s36, %s37
      %p41 = pneg %p35
      %p42 = scmp.eq.s32.totalorder %s26, 1
      %p43 = por %p41, %p42
      %p44 = scmp.ne.s32.totalorder %s36, %s39
      %p45 = scmp.eq.s32.totalorder %s26, 0
      %p46 = por %p44, %p45
      %p47 = scmp.ne.s32.totalorder %s36, %s39
      %p48 = scmp.eq.s32.totalorder %s31, 1
      %p49 = por %p47, %p48
      %p50 = scmp.ne.s32.totalorder %s39, %s40
      %p51 = scmp.eq.s32.totalorder %s31, 0
      %p52 = por %p50, %p51
      %p53 = scmp.ne.s32.totalorder %s39, %s40
      %p54 = scmp.eq.s32.totalorder %s32, 1
      %p55 = por %p53, %p54
      %p57 = scmp.ne.s32.totalorder %s40, %s56
      %p58 = scmp.eq.s32.totalorder %s32, 0
      %p59 = por %p57, %p58
      %s60 = ssub.s32 %s26, %s33
      %p61 = scmp.eq.s32.totalorder %s60, 0
      %s63 = sadd.s32 %s62, 1
      %s64 = scalar_select %p61, %s62, %s63
      %p67 = pneg %p61
      %p68 = scmp.eq.s32.totalorder %s26, 1
      %p69 = por %p67, %p68
      %p70 = scmp.ne.s32.totalorder %s62, %s65
      %p71 = scmp.eq.s32.totalorder %s26, 0
      %p72 = por %p70, %p71
      %p73 = scmp.ne.s32.totalorder %s62, %s65
      %p74 = scmp.eq.s32.totalorder %s31, 1
      %p75 = por %p73, %p74
      %p76 = scmp.ne.s32.totalorder %s65, %s66
      %p77 = scmp.eq.s32.totalorder %s31, 0
      %p78 = por %p76, %p77
      %p79 = scmp.ne.s32.totalorder %s65, %s66
      %p80 = scmp.eq.s32.totalorder %s32, 1
      %p81 = por %p79, %p80
      %p83 = scmp.ne.s32.totalorder %s66, %s82
      %p84 = scmp.eq.s32.totalorder %s32, 0
      %p85 = por %p83, %p84
      %s86 = ssub.s32 %s26, %s33
      %p87 = scmp.eq.s32.totalorder %s86, 0
      %s89 = sadd.s32 %s88, 1
      %s90 = scalar_select %p87, %s88, %s89
      %p93 = pneg %p87
      %p94 = scmp.eq.s32.totalorder %s26, 1
      %p95 = por %p93, %p94
      %p96 = scmp.ne.s32.totalorder %s88, %s91
      %p97 = scmp.eq.s32.totalorder %s26, 0
      %p98 = por %p96, %p97
      %p99 = scmp.ne.s32.totalorder %s88, %s91
      %p100 = scmp.eq.s32.totalorder %s31, 1
      %p101 = por %p99, %p100
      %p102 = scmp.ne.s32.totalorder %s91, %s92
      %p103 = scmp.eq.s32.totalorder %s31, 0
      %p104 = por %p102, %p103
      %p105 = scmp.ne.s32.totalorder %s91, %s92
      %p106 = scmp.eq.s32.totalorder %s32, 1
      %p107 = por %p105, %p106
      %p109 = scmp.ne.s32.totalorder %s92, %s108
      %p110 = scmp.eq.s32.totalorder %s32, 0
      %p111 = por %p109, %p110
      %s113 = sadd.s32 %s112, 1
      %p116 = scmp.eq.s32.totalorder %s26, 1
      %p117 = scmp.ne.s32.totalorder %s112, %s114
      %p118 = scmp.eq.s32.totalorder %s26, 0
      %p119 = por %p117, %p118
      %p120 = scmp.ne.s32.totalorder %s112, %s114
      %p121 = scmp.eq.s32.totalorder %s31, 1
      %p122 = por %p120, %p121
      %p123 = scmp.ne.s32.totalorder %s114, %s115
      %p124 = scmp.eq.s32.totalorder %s31, 0
      %p125 = por %p123, %p124
      %p126 = scmp.ne.s32.totalorder %s114, %s115
      %p127 = scmp.eq.s32.totalorder %s32, 1
      %p128 = por %p126, %p127
      %p130 = scmp.ne.s32.totalorder %s115, %s129
      %p131 = scmp.eq.s32.totalorder %s32, 0
      %p132 = por %p130, %p131
      %s134 = sadd.s32 %s133, 1
      %p137 = scmp.eq.s32.totalorder %s26, 1
      %p138 = scmp.ne.s32.totalorder %s133, %s135
      %p139 = scmp.eq.s32.totalorder %s26, 0
      %p140 = por %p138, %p139
      %p141 = scmp.ne.s32.totalorder %s133, %s135
      %p142 = scmp.eq.s32.totalorder %s31, 1
      %p143 = por %p141, %p142
      %p144 = scmp.ne.s32.totalorder %s135, %s136
      %p145 = scmp.eq.s32.totalorder %s31, 0
      %p146 = por %p144, %p145
      %p147 = scmp.ne.s32.totalorder %s135, %s136
      %p148 = scmp.eq.s32.totalorder %s32, 1
      %p149 = por %p147, %p148
      %p151 = scmp.ne.s32.totalorder %s136, %s150
      %p152 = scmp.eq.s32.totalorder %s32, 0
      %p153 = por %p151, %p152
      %s155 = sadd.s32 %s154, 1
      %p158 = scmp.eq.s32.totalorder %s26, 1
      %p159 = scmp.ne.s32.totalorder %s154, %s156
      %p160 = scmp.eq.s32.totalorder %s26, 0
      %p161 = por %p159, %p160
      %p162 = scmp.ne.s32.totalorder %s154, %s156
      %p163 = scmp.eq.s32.totalorder %s31, 1
      %p164 = por %p162, %p163
      %p165 = scmp.ne.s32.totalorder %s156, %s157
      %p166 = scmp.eq.s32.totalorder %s31, 0
      %p167 = por %p165, %p166
      %p168 = scmp.ne.s32.totalorder %s156, %s157
      %p169 = scmp.eq.s32.totalorder %s32, 1
      %p170 = por %p168, %p169
      %p172 = scmp.ne.s32.totalorder %s157, %s171
      %p173 = scmp.eq.s32.totalorder %s32, 0
      %p174 = por %p172, %p173
      %s176 = sadd.s32 %s175, 1
      %p179 = scmp.eq.s32.totalorder %s26, 1
      %p180 = scmp.ne.s32.totalorder %s175, %s177
      %p181 = scmp.eq.s32.totalorder %s26, 0
      %p182 = por %p180, %p181
      %p183 = scmp.ne.s32.totalorder %s175, %s177
      %p184 = scmp.eq.s32.totalorder %s31, 1
      %p185 = por %p183, %p184
      %p186 = scmp.ne.s32.totalorder %s177, %s178
      %p187 = scmp.eq.s32.totalorder %s31, 0
      %p188 = por %p186, %p187
      %p189 = scmp.ne.s32.totalorder %s177, %s178
      %p190 = scmp.eq.s32.totalorder %s32, 1
      %p191 = por %p189, %p190
      %p193 = scmp.ne.s32.totalorder %s178, %s192
      %p194 = scmp.eq.s32.totalorder %s32, 0
      %p195 = por %p193, %p194
      %s197 = sadd.s32 %s196, 1
      %p200 = scmp.eq.s32.totalorder %s26, 1
      %p201 = scmp.ne.s32.totalorder %s196, %s198
      %p202 = scmp.eq.s32.totalorder %s26, 0
      %p203 = por %p201, %p202
      %p204 = scmp.ne.s32.totalorder %s196, %s198
      %p205 = scmp.eq.s32.totalorder %s31, 1
      %p206 = por %p204, %p205
      %p207 = scmp.ne.s32.totalorder %s198, %s199
      %p208 = scmp.eq.s32.totalorder %s31, 0
      %p209 = por %p207, %p208
      %p210 = scmp.ne.s32.totalorder %s198, %s199
      %p211 = scmp.eq.s32.totalorder %s32, 1
      %p212 = por %p210, %p211
      %p214 = scmp.ne.s32.totalorder %s199, %s213
      %p215 = scmp.eq.s32.totalorder %s32, 0
      %p216 = por %p214, %p215
      %s218 = sadd.s32 %s217, 1
      %p221 = scmp.eq.s32.totalorder %s26, 1
      %p222 = scmp.ne.s32.totalorder %s217, %s219
      %p223 = scmp.eq.s32.totalorder %s26, 0
      %p224 = por %p222, %p223
      %p225 = scmp.ne.s32.totalorder %s217, %s219
      %p226 = scmp.eq.s32.totalorder %s31, 1
      %p227 = por %p225, %p226
      %p228 = scmp.ne.s32.totalorder %s219, %s220
      %p229 = scmp.eq.s32.totalorder %s31, 0
      %p230 = por %p228, %p229
      %p231 = scmp.ne.s32.totalorder %s219, %s220
      %p232 = scmp.eq.s32.totalorder %s32, 1
      %p233 = por %p231, %p232
      %p235 = scmp.ne.s32.totalorder %s220, %s234
      %p236 = scmp.eq.s32.totalorder %s32, 0
      %p237 = por %p235, %p236
      %s239 = sadd.s32 %s238, 1
      %p242 = scmp.eq.s32.totalorder %s26, 1
      %p243 = scmp.ne.s32.totalorder %s238, %s240
      %p244 = scmp.eq.s32.totalorder %s26, 0
      %p245 = por %p243, %p244
      %p246 = scmp.ne.s32.totalorder %s238, %s240
      %p247 = scmp.eq.s32.totalorder %s31, 1
      %p248 = por %p246, %p247
      %p249 = scmp.ne.s32.totalorder %s240, %s241
      %p250 = scmp.eq.s32.totalorder %s31, 0
      %p251 = por %p249, %p250
      %p252 = scmp.ne.s32.totalorder %s240, %s241
      %p253 = scmp.eq.s32.totalorder %s32, 1
      %p254 = por %p252, %p253
      %p256 = scmp.ne.s32.totalorder %s241, %s255
      %p257 = scmp.eq.s32.totalorder %s32, 0
      %p258 = por %p256, %p257
      %s260 = sadd.s32 %s259, 1
      %p263 = scmp.eq.s32.totalorder %s26, 1
      %p264 = scmp.ne.s32.totalorder %s259, %s261
      %p265 = scmp.eq.s32.totalorder %s26, 0
      %p266 = por %p264, %p265
      %p267 = scmp.ne.s32.totalorder %s259, %s261
      %p268 = scmp.eq.s32.totalorder %s31, 1
      %p269 = por %p267, %p268
      %p270 = scmp.ne.s32.totalorder %s261, %s262
      %p271 = scmp.eq.s32.totalorder %s31, 0
      %p272 = por %p270, %p271
      %p273 = scmp.ne.s32.totalorder %s261, %s262
      %p274 = scmp.eq.s32.totalorder %s32, 1
      %p275 = por %p273, %p274
      %p277 = scmp.ne.s32.totalorder %s262, %s276
      %p278 = scmp.eq.s32.totalorder %s32, 0
      %p279 = por %p277, %p278
      %s280 = ssub.s32 %s26, %s33
      %p281 = scmp.eq.s32.totalorder %s280, 0
      %s283 = sadd.s32 %s282, 1
      %s284 = scalar_select %p281, %s282, %s283
      %p287 = pneg %p281
      %p288 = scmp.eq.s32.totalorder %s26, 1
      %p289 = por %p287, %p288
      %p290 = scmp.ne.s32.totalorder %s282, %s285
      %p291 = scmp.eq.s32.totalorder %s26, 0
      %p292 = por %p290, %p291
      %p293 = scmp.ne.s32.totalorder %s282, %s285
      %p294 = scmp.eq.s32.totalorder %s31, 1
      %p295 = por %p293, %p294
      %p296 = scmp.ne.s32.totalorder %s285, %s286
      %p297 = scmp.eq.s32.totalorder %s31, 0
      %p298 = por %p296, %p297
      %p299 = scmp.ne.s32.totalorder %s285, %s286
      %p300 = scmp.eq.s32.totalorder %s32, 1
      %p301 = por %p299, %p300
      %p303 = scmp.ne.s32.totalorder %s286, %s302
      %p304 = scmp.eq.s32.totalorder %s32, 0
      %p305 = por %p303, %p304
      %s306 = ssub.s32 %s26, %s33
      %p307 = scmp.eq.s32.totalorder %s306, 0
      %s309 = sadd.s32 %s308, 1
      %s310 = scalar_select %p307, %s308, %s309
      %p313 = pneg %p307
      %p314 = scmp.eq.s32.totalorder %s26, 1
      %p315 = por %p313, %p314
      %p316 = scmp.ne.s32.totalorder %s308, %s311
      %p317 = scmp.eq.s32.totalorder %s26, 0
      %p318 = por %p316, %p317
      %p319 = scmp.ne.s32.totalorder %s308, %s311
      %p320 = scmp.eq.s32.totalorder %s31, 1
      %p321 = por %p319, %p320
      %p322 = scmp.ne.s32.totalorder %s311, %s312
      %p323 = scmp.eq.s32.totalorder %s31, 0
      %p324 = por %p322, %p323
      %p325 = scmp.ne.s32.totalorder %s311, %s312
      %p326 = scmp.eq.s32.totalorder %s32, 1
      %p327 = por %p325, %p326
      %p329 = scmp.ne.s32.totalorder %s312, %s328
      %p330 = scmp.eq.s32.totalorder %s32, 0
      %p331 = por %p329, %p330
      %s332 = ssub.s32 %s26, %s33
      %p333 = scmp.eq.s32.totalorder %s332, 0
      %s335 = sadd.s32 %s334, 1
      %s336 = scalar_select %p333, %s334, %s335
      %p339 = pneg %p333
      %p340 = scmp.eq.s32.totalorder %s26, 1
      %p341 = por %p339, %p340
      %p342 = scmp.ne.s32.totalorder %s334, %s337
      %p343 = scmp.eq.s32.totalorder %s26, 0
      %p344 = por %p342, %p343
      %p345 = scmp.ne.s32.totalorder %s334, %s337
      %p346 = scmp.eq.s32.totalorder %s31, 1
      %p347 = por %p345, %p346
      %p348 = scmp.ne.s32.totalorder %s337, %s338
      %p349 = scmp.eq.s32.totalorder %s31, 0
      %p350 = por %p348, %p349
      %p351 = scmp.ne.s32.totalorder %s337, %s338
      %p352 = scmp.eq.s32.totalorder %s32, 1
      %p353 = por %p351, %p352
      %p355 = scmp.ne.s32.totalorder %s338, %s354
      %p356 = scmp.eq.s32.totalorder %s32, 0
      %p357 = por %p355, %p356
      %p358 = scmp.le.s32.totalorder 1, %s26
      %p359 = scmp.lt.s32.totalorder %s26, 3
      %p360 = pnand %p358, %p359
      %p361 = pneg %p360
      // Predicated region
      $region9: #{dual_attention_forward.1} parent=5 // pred_check
        _
      $region10: #{dual_attention_forward.1} parent=5 // pred_check_branch
        %363 = sbr.rel (%p360) target = $region12
      $region11: #{dual_attention_forward.1} parent=5 // pred_region
        %s364 = ssub.s32 %s26, 1
        // Predicated region
        $region13: #{dual_attention_forward.1} parent=11 // pred_check
          %p365 = pneg %p125
        $region14: #{dual_attention_forward.1} parent=11 // pred_check_branch
          %367 = sbr.rel (%p365) target = $region16
        $region15: #{dual_attention_forward.1} parent=11 // pred_region
          _
        $region16: #{dual_attention_forward.1} parent=11 // pred_fallthru
          _
        // Predicated region
        $region17: #{dual_attention_forward.1} parent=11 // pred_check
          %p368 = pneg %p146
        $region18: #{dual_attention_forward.1} parent=11 // pred_check_branch
          %370 = sbr.rel (%p368) target = $region20
        $region19: #{dual_attention_forward.1} parent=11 // pred_region
          _
        $region20: #{dual_attention_forward.1} parent=11 // pred_fallthru
          _
        // Predicated region
        $region21: #{dual_attention_forward.1} parent=11 // pred_check
          %p371 = pneg %p167
        $region22: #{dual_attention_forward.1} parent=11 // pred_check_branch
          %373 = sbr.rel (%p371) target = $region24
        $region23: #{dual_attention_forward.1} parent=11 // pred_region
          _
        $region24: #{dual_attention_forward.1} parent=11 // pred_fallthru
          _
        // Predicated region
        $region25: #{dual_attention_forward.1} parent=11 // pred_check
          %p374 = pneg %p188
        $region26: #{dual_attention_forward.1} parent=11 // pred_check_branch
          %376 = sbr.rel (%p374) target = $region28
        $region27: #{dual_attention_forward.1} parent=11 // pred_region
          _
        $region28: #{dual_attention_forward.1} parent=11 // pred_fallthru
          _
        // Predicated region
        $region29: #{dual_attention_forward.1} parent=11 // pred_check
          %p377 = pneg %p209
        $region30: #{dual_attention_forward.1} parent=11 // pred_check_branch
          %379 = sbr.rel (%p377) target = $region32
        $region31: #{dual_attention_forward.1} parent=11 // pred_region
          _
        $region32: #{dual_attention_forward.1} parent=11 // pred_fallthru
          _
        // Predicated region
        $region33: #{dual_attention_forward.1} parent=11 // pred_check
          %p380 = pneg %p230
        $region34: #{dual_attention_forward.1} parent=11 // pred_check_branch
          %382 = sbr.rel (%p380) target = $region36
        $region35: #{dual_attention_forward.1} parent=11 // pred_region
          _
        $region36: #{dual_attention_forward.1} parent=11 // pred_fallthru
          _
        // Predicated region
        $region37: #{dual_attention_forward.1} parent=11 // pred_check
          %p383 = pneg %p251
        $region38: #{dual_attention_forward.1} parent=11 // pred_check_branch
          %385 = sbr.rel (%p383) target = $region40
        $region39: #{dual_attention_forward.1} parent=11 // pred_region
          _
        $region40: #{dual_attention_forward.1} parent=11 // pred_fallthru
          _
        // Predicated region
        $region41: #{dual_attention_forward.1} parent=11 // pred_check
          %p386 = pneg %p272
        $region42: #{dual_attention_forward.1} parent=11 // pred_check_branch
          %388 = sbr.rel (%p386) target = $region44
        $region43: #{dual_attention_forward.1} parent=11 // pred_region
          _
        $region44: #{dual_attention_forward.1} parent=11 // pred_fallthru
          _
      $region12: #{dual_attention_forward.1} parent=5 // pred_fallthru
        _
      %p389 = scmp.lt.s32.totalorder %s26, 2
      // Predicated region
      $region45: #{dual_attention_forward.1} parent=5 // pred_check
        %p390 = pneg %p389
      $region46: #{dual_attention_forward.1} parent=5 // pred_check_branch
        %392 = sbr.rel (%p390) target = $region48
      $region47: #{dual_attention_forward.1} parent=5 // pred_region
        // Predicated region
        $region49: #{dual_attention_forward.1} parent=47 // pred_check
          %p393 = pneg %p46
        $region50: #{dual_attention_forward.1} parent=47 // pred_check_branch
          %395 = sbr.rel (%p393) target = $region52
        $region51: #{dual_attention_forward.1} parent=47 // pred_region
          %p396 = scmp.lt.s32.totalorder %s26, 1
          %s397 = scalar_select %p396, %s26, 1
          %s398 = smul.addr %s397, 2
          %s399 = smul.addr %s398, 8
          %s400 = scalar_lea.vmem %s0, %s399
        $region52: #{dual_attention_forward.1} parent=47 // pred_fallthru
          _
        // Predicated region
        $region53: #{dual_attention_forward.1} parent=47 // pred_check
          %p401 = pneg %p72
        $region54: #{dual_attention_forward.1} parent=47 // pred_check_branch
          %403 = sbr.rel (%p401) target = $region56
        $region55: #{dual_attention_forward.1} parent=47 // pred_region
          %p404 = scmp.lt.s32.totalorder %s26, 1
          %s405 = scalar_select %p404, %s26, 1
          %s406 = smul.addr %s405, 8
          %s407 = scalar_lea.vmem %s1, %s406
        $region56: #{dual_attention_forward.1} parent=47 // pred_fallthru
          _
        // Predicated region
        $region57: #{dual_attention_forward.1} parent=47 // pred_check
          %p408 = pneg %p98
        $region58: #{dual_attention_forward.1} parent=47 // pred_check_branch
          %410 = sbr.rel (%p408) target = $region60
        $region59: #{dual_attention_forward.1} parent=47 // pred_region
          %p411 = scmp.lt.s32.totalorder %s26, 1
          %s412 = scalar_select %p411, %s26, 1
          %s413 = smul.addr %s412, 8
          %s414 = scalar_lea.vmem %s2, %s413
        $region60: #{dual_attention_forward.1} parent=47 // pred_fallthru
          _
      $region48: #{dual_attention_forward.1} parent=5 // pred_fallthru
        _
      %p415 = scmp.le.s32.totalorder 1, %s26
      %p416 = scmp.lt.s32.totalorder %s26, 3
      %p417 = pnand %p415, %p416
      %p418 = pneg %p417
      // Predicated region
      $region61: #{dual_attention_forward.1} parent=5 // pred_check
        _
      $region62: #{dual_attention_forward.1} parent=5 // pred_check_branch
        %420 = sbr.rel (%p417) target = $region64
      $region63: #{dual_attention_forward.1} parent=5 // pred_region
        %s421 = ssub.s32 %s26, 1
        %p422 = scmp.lt.s32.totalorder %s31, 1
        %s423 = scalar_select %p422, %s31, 1
        %s424 = smul.addr %s423, 2
        %s425 = smul.addr %s424, 8
        %s426 = scalar_lea.vmem %s0, %s425
        %p427 = pneg %p52
        %p428 = pneg %p49
        %p429 = scmp.lt.s32.totalorder %s31, 1
        %s430 = scalar_select %p429, %s31, 1
        %s431 = smul.addr %s430, 8
        %s432 = scalar_lea.vmem %s1, %s431
        %p433 = pneg %p78
        %p434 = pneg %p75
        %p435 = scmp.lt.s32.totalorder %s31, 1
        %s436 = scalar_select %p435, %s31, 1
        %s437 = smul.addr %s436, 8
        %s438 = scalar_lea.vmem %s2, %s437
        %p439 = pneg %p104
        %p440 = pneg %p101
        %p441 = pneg %p125
        %p442 = pneg %p122
        %p443 = pneg %p146
        %p444 = pneg %p143
        %p445 = pneg %p167
        %p446 = pneg %p164
        %p447 = pneg %p188
        %p448 = pneg %p185
        %p449 = pneg %p209
        %p450 = pneg %p206
        %p451 = pneg %p230
        %p452 = pneg %p227
        %p453 = pneg %p251
        %p454 = pneg %p248
        %p455 = pneg %p272
        %p456 = pneg %p269
        %p457 = pneg %p298
        %p458 = pneg %p295
        %s459 = sand.u32 %s285, 1
        %s460 = scalar_lea.sflag [#allocation3], %s459
        %s461 = sand.u32 %s285, 1
        %s462 = smul.addr %s461, 8
        %s463 = scalar_lea.vmem [#allocation2], %s462
        %p464 = pneg %p324
        %p465 = pneg %p321
        %s466 = sand.u32 %s31, 1
        %s467 = scalar_lea.sflag [#allocation5], %s466
        %s468 = sand.u32 %s311, 1
        %s469 = smul.addr %s468, 8
        %s470 = scalar_lea.vmem [#allocation4], %s469
        %p471 = pneg %p350
        %p472 = pneg %p347
        %s473 = sand.u32 %s31, 1
        %s474 = scalar_lea.sflag [#allocation5], %s473
        %s475 = sand.u32 %s337, 1
        %s476 = smul.addr %s475, 8
        %s477 = scalar_lea.vmem [#allocation6], %s476
        %p478 = scmp.lt.s32.totalorder %s31, 1
        %s479 = scalar_select %p478, %s31, 1
        %s480 = smul.addr %s479, 2
        %s481 = smul.addr %s480, 8
        %s482 = scalar_lea.vmem %s0, %s481
        %p483 = scmp.lt.s32.totalorder %s31, 1
        %s484 = scalar_select %p483, %s31, 1
        %s485 = smul.addr %s484, 8
        %s486 = scalar_lea.vmem %s1, %s485
        %p487 = scmp.lt.s32.totalorder %s31, 1
        %s488 = scalar_select %p487, %s31, 1
        %s489 = smul.addr %s488, 8
        %s490 = scalar_lea.vmem %s2, %s489
        %v491 = vld [vmem:[%s482] sm:$0xff]
        %v492 = vld [vmem:[%s482 + $0x8] sm:$0xff]
        %v493 = vld [vmem:[%s486] sm:$0xff]
        %v494 = vld [vmem:[%s490] sm:$0xff]
        %vm495 = vcmask 261120
        %v496 = vsel %vm495, %v493, 0.0
        %497 = vadd.xlane.f32.xlu0 %v496
        %v498 = vpop.xlane.xlu0 %497
        %v499 = vrcp.pop 32.0
        %v500 = vmul.f32 %v498, %v499
        %v501 = vsub.f32 %v493, %v500
        %v502 = vmul.f32 %v501, %v501
        %v503 = vsel %vm495, %v502, 0.0
        %504 = vadd.xlane.f32.xlu0 %v503
        %v505 = vpop.xlane.xlu0 %504
        %v506 = vmul.f32 %v505, %v499
        %v507 = vadd.f32 %v506, 1e-05
        %v508 = vrsqrt.pop %v507
        %v509 = vmul.f32 %v501, %v508
        %v510 = vld [vmem:[%s3] sm:$0x1]
        %v512 = vlaneseq
        %v513 = vshrl.u32 %v512, 7
        %v514 = vsub.s32 0, %v513
        %v515 = vrot.slane %v510, %v514
        %v517 = vmul.f32 %v509, %v515
        %v518 = vld [vmem:[%s4] sm:$0x1]
        %v520 = vlaneseq
        %v521 = vshrl.u32 %v520, 7
        %v522 = vsub.s32 0, %v521
        %v523 = vrot.slane %v518, %v522
        %v525 = vadd.f32 %v517, %v523
        %v526 = vld [vmem:[%s5] sm:$0xff]
        %v527 = vld [vmem:[%s5 + $0x8] sm:$0xff]
        %v528 = vld [vmem:[%s5 + $0x10] sm:$0xff]
        %v529 = vld [vmem:[%s5 + $0x18] sm:$0xff]
        %v530 = vld [vmem:[%s6] sm:$0x1]
        %v532 = vlaneseq
        %v533 = vshrl.u32 %v532, 7
        %v534 = vsub.s32 0, %v533
        %v535 = vrot.slane %v530, %v534
        %v538 = vsel %vm495, %v525, 0
        %540 = vmatprep.subr.mxu0 0.0
        %541 = vmatpush1.msra.mxu0 0.0
        %542 = vmatprep.subr.mxu0 0.0
        %543 = vmatpush1.msra.mxu0 0.0
        %544 = vmatprep.subr.mxu0 0.0
        %545 = vmatpush1.msra.mxu0 0.0
        %546 = vmatprep.subr.mxu0 0.0
        %547 = vmatpush1.msra.mxu0 0.0
        %548 = vmatprep.subr.mxu0 0.0
        %549 = vmatpush1.msra.mxu0 0.0
        %550 = vmatprep.subr.mxu0 0.0
        %551 = vmatpush1.msra.mxu0 0.0
        %552 = vmatprep.subr.mxu0 0.0
        %553 = vmatpush1.msra.mxu0 0.0
        %554 = vmatprep.subr.mxu0 0.0
        %555 = vmatpush1.msra.mxu0 0.0
        %556 = vmatprep.subr.mxu0 0.0
        %557 = vmatpush1.msra.mxu0 0.0
        %558 = vmatprep.subr.mxu0 0.0
        %559 = vmatpush1.msra.mxu0 0.0
        %560 = vmatprep.subr.mxu0 0.0
        %561 = vmatpush1.msra.mxu0 0.0
        %562 = vmatprep.subr.mxu0 0.0
        %563 = vmatpush1.msra.mxu0 0.0
        %564 = vmatprep.subr.mxu0 0.0
        %565 = vmatpush1.msra.mxu0 %v529
        %566 = vmatprep.subr.mxu0 0.0
        %567 = vmatpush1.msra.mxu0 %v528
        %568 = vmatprep.subr.mxu0 0.0
        %569 = vmatpush1.msra.mxu0 %v527
        %570 = vmatprep.subr.mxu0 0.0
        %571 = vmatpush1.msra.mxu0 %v526
        %572 = vmatprep.subr.mxu0 0.0
        %573 = vmatpush2.msra.mxu0 0.0
        %574 = vmatprep.subr.mxu0 0.0
        %575 = vmatpush2.msra.mxu0 0.0
        %576 = vmatprep.subr.mxu0 0.0
        %577 = vmatpush2.msra.mxu0 0.0
        %578 = vmatprep.subr.mxu0 0.0
        %579 = vmatpush2.msra.mxu0 0.0
        %580 = vmatprep.subr.mxu0 0.0
        %581 = vmatpush2.msra.mxu0 0.0
        %582 = vmatprep.subr.mxu0 0.0
        %583 = vmatpush2.msra.mxu0 0.0
        %584 = vmatprep.subr.mxu0 0.0
        %585 = vmatpush2.msra.mxu0 0.0
        %586 = vmatprep.subr.mxu0 0.0
        %587 = vmatpush2.msra.mxu0 0.0
        %588 = vmatprep.subr.mxu0 0.0
        %589 = vmatpush2.msra.mxu0 0.0
        %590 = vmatprep.subr.mxu0 0.0
        %591 = vmatpush2.msra.mxu0 0.0
        %592 = vmatprep.subr.mxu0 0.0
        %593 = vmatpush2.msra.mxu0 0.0
        %594 = vmatprep.subr.mxu0 0.0
        %595 = vmatpush2.msra.mxu0 0.0
        %596 = vmatprep.subr.mxu0 0.0
        %597 = vmatpush2.msra.mxu0 0.0
        %598 = vmatprep.subr.mxu0 0.0
        %599 = vmatpush2.msra.mxu0 0.0
        %600 = vmatprep.subr.mxu0 0.0
        %601 = vmatpush2.msra.mxu0 0.0
        %602 = vmatprep.subr.mxu0 0.0
        %603 = vmatpush2.msra.mxu0 0.0
        %604 = vmatprep.mubr.f32.mxu0 0.0
        %605 = vmatmul.mubr.f32.gmra.mxu0 %v538
        %v606 = vpop.f32.mrf.mxu0
        %v607 = vadd.f32 %v535, %v606
        %v608 = vpop.f32.mrf.mxu0
        %609 = vdwg.mxu0
        %s610 = scalar_lea.vmem %s5, 32
        %v611 = vld [vmem:[%s610] sm:$0xff]
        %v612 = vld [vmem:[%s610 + $0x8] sm:$0xff]
        %v613 = vld [vmem:[%s610 + $0x10] sm:$0xff]
        %v614 = vld [vmem:[%s610 + $0x18] sm:$0xff]
        %s615 = scalar_lea.vmem %s6, 1
        %v616 = vld [vmem:[%s615] sm:$0x1]
        %v618 = vlaneseq
        %v619 = vshrl.u32 %v618, 7
        %v620 = vsub.s32 0, %v619
        %v621 = vrot.slane %v616, %v620
        %623 = vmatprep.subr.mxu0 0.0
        %624 = vmatpush1.msra.mxu0 0.0
        %625 = vmatprep.subr.mxu0 0.0
        %626 = vmatpush1.msra.mxu0 0.0
        %627 = vmatprep.subr.mxu0 0.0
        %628 = vmatpush1.msra.mxu0 0.0
        %629 = vmatprep.subr.mxu0 0.0
        %630 = vmatpush1.msra.mxu0 0.0
        %631 = vmatprep.subr.mxu0 0.0
        %632 = vmatpush1.msra.mxu0 0.0
        %633 = vmatprep.subr.mxu0 0.0
        %634 = vmatpush1.msra.mxu0 0.0
        %635 = vmatprep.subr.mxu0 0.0
        %636 = vmatpush1.msra.mxu0 0.0
        %637 = vmatprep.subr.mxu0 0.0
        %638 = vmatpush1.msra.mxu0 0.0
        %639 = vmatprep.subr.mxu0 0.0
        %640 = vmatpush1.msra.mxu0 0.0
        %641 = vmatprep.subr.mxu0 0.0
        %642 = vmatpush1.msra.mxu0 0.0
        %643 = vmatprep.subr.mxu0 0.0
        %644 = vmatpush1.msra.mxu0 0.0
        %645 = vmatprep.subr.mxu0 0.0
        %646 = vmatpush1.msra.mxu0 0.0
        %647 = vmatprep.subr.mxu0 0.0
        %648 = vmatpush1.msra.mxu0 %v614
        %649 = vmatprep.subr.mxu0 0.0
        %650 = vmatpush1.msra.mxu0 %v613
        %651 = vmatprep.subr.mxu0 0.0
        %652 = vmatpush1.msra.mxu0 %v612
        %653 = vmatprep.subr.mxu0 0.0
        %654 = vmatpush1.msra.mxu0 %v611
        %655 = vmatprep.subr.mxu0 0.0
        %656 = vmatpush2.msra.mxu0 0.0
        %657 = vmatprep.subr.mxu0 0.0
        %658 = vmatpush2.msra.mxu0 0.0
        %659 = vmatprep.subr.mxu0 0.0
        %660 = vmatpush2.msra.mxu0 0.0
        %661 = vmatprep.subr.mxu0 0.0
        %662 = vmatpush2.msra.mxu0 0.0
        %663 = vmatprep.subr.mxu0 0.0
        %664 = vmatpush2.msra.mxu0 0.0
        %665 = vmatprep.subr.mxu0 0.0
        %666 = vmatpush2.msra.mxu0 0.0
        %667 = vmatprep.subr.mxu0 0.0
        %668 = vmatpush2.msra.mxu0 0.0
        %669 = vmatprep.subr.mxu0 0.0
        %670 = vmatpush2.msra.mxu0 0.0
        %671 = vmatprep.subr.mxu0 0.0
        %672 = vmatpush2.msra.mxu0 0.0
        %673 = vmatprep.subr.mxu0 0.0
        %674 = vmatpush2.msra.mxu0 0.0
        %675 = vmatprep.subr.mxu0 0.0
        %676 = vmatpush2.msra.mxu0 0.0
        %677 = vmatprep.subr.mxu0 0.0
        %678 = vmatpush2.msra.mxu0 0.0
        %679 = vmatprep.subr.mxu0 0.0
        %680 = vmatpush2.msra.mxu0 0.0
        %681 = vmatprep.subr.mxu0 0.0
        %682 = vmatpush2.msra.mxu0 0.0
        %683 = vmatprep.subr.mxu0 0.0
        %684 = vmatpush2.msra.mxu0 0.0
        %685 = vmatprep.subr.mxu0 0.0
        %686 = vmatpush2.msra.mxu0 0.0
        %687 = vmatprep.mubr.f32.mxu0 0.0
        %688 = vmatmul.mubr.f32.gmra.mxu0 %v538
        %v689 = vpop.f32.mrf.mxu0
        %v690 = vadd.f32 %v621, %v689
        %v691 = vpop.f32.mrf.mxu0
        %692 = vdwg.mxu0
        %s693 = scalar_lea.vmem %s5, 64
        %v694 = vld [vmem:[%s693] sm:$0xff]
        %v695 = vld [vmem:[%s693 + $0x8] sm:$0xff]
        %v696 = vld [vmem:[%s693 + $0x10] sm:$0xff]
        %v697 = vld [vmem:[%s693 + $0x18] sm:$0xff]
        %s698 = scalar_lea.vmem %s6, 2
        %v699 = vld [vmem:[%s698] sm:$0x1]
        %v701 = vlaneseq
        %v702 = vshrl.u32 %v701, 7
        %v703 = vsub.s32 0, %v702
        %v704 = vrot.slane %v699, %v703
        %706 = vmatprep.subr.mxu0 0.0
        %707 = vmatpush1.msra.mxu0 0.0
        %708 = vmatprep.subr.mxu0 0.0
        %709 = vmatpush1.msra.mxu0 0.0
        %710 = vmatprep.subr.mxu0 0.0
        %711 = vmatpush1.msra.mxu0 0.0
        %712 = vmatprep.subr.mxu0 0.0
        %713 = vmatpush1.msra.mxu0 0.0
        %714 = vmatprep.subr.mxu0 0.0
        %715 = vmatpush1.msra.mxu0 0.0
        %716 = vmatprep.subr.mxu0 0.0
        %717 = vmatpush1.msra.mxu0 0.0
        %718 = vmatprep.subr.mxu0 0.0
        %719 = vmatpush1.msra.mxu0 0.0
        %720 = vmatprep.subr.mxu0 0.0
        %721 = vmatpush1.msra.mxu0 0.0
        %722 = vmatprep.subr.mxu0 0.0
        %723 = vmatpush1.msra.mxu0 0.0
        %724 = vmatprep.subr.mxu0 0.0
        %725 = vmatpush1.msra.mxu0 0.0
        %726 = vmatprep.subr.mxu0 0.0
        %727 = vmatpush1.msra.mxu0 0.0
        %728 = vmatprep.subr.mxu0 0.0
        %729 = vmatpush1.msra.mxu0 0.0
        %730 = vmatprep.subr.mxu0 0.0
        %731 = vmatpush1.msra.mxu0 %v697
        %732 = vmatprep.subr.mxu0 0.0
        %733 = vmatpush1.msra.mxu0 %v696
        %734 = vmatprep.subr.mxu0 0.0
        %735 = vmatpush1.msra.mxu0 %v695
        %736 = vmatprep.subr.mxu0 0.0
        %737 = vmatpush1.msra.mxu0 %v694
        %738 = vmatprep.subr.mxu0 0.0
        %739 = vmatpush2.msra.mxu0 0.0
        %740 = vmatprep.subr.mxu0 0.0
        %741 = vmatpush2.msra.mxu0 0.0
        %742 = vmatprep.subr.mxu0 0.0
        %743 = vmatpush2.msra.mxu0 0.0
        %744 = vmatprep.subr.mxu0 0.0
        %745 = vmatpush2.msra.mxu0 0.0
        %746 = vmatprep.subr.mxu0 0.0
        %747 = vmatpush2.msra.mxu0 0.0
        %748 = vmatprep.subr.mxu0 0.0
        %749 = vmatpush2.msra.mxu0 0.0
        %750 = vmatprep.subr.mxu0 0.0
        %751 = vmatpush2.msra.mxu0 0.0
        %752 = vmatprep.subr.mxu0 0.0
        %753 = vmatpush2.msra.mxu0 0.0
        %754 = vmatprep.subr.mxu0 0.0
        %755 = vmatpush2.msra.mxu0 0.0
        %756 = vmatprep.subr.mxu0 0.0
        %757 = vmatpush2.msra.mxu0 0.0
        %758 = vmatprep.subr.mxu0 0.0
        %759 = vmatpush2.msra.mxu0 0.0
        %760 = vmatprep.subr.mxu0 0.0
        %761 = vmatpush2.msra.mxu0 0.0
        %762 = vmatprep.subr.mxu0 0.0
        %763 = vmatpush2.msra.mxu0 0.0
        %764 = vmatprep.subr.mxu0 0.0
        %765 = vmatpush2.msra.mxu0 0.0
        %766 = vmatprep.subr.mxu0 0.0
        %767 = vmatpush2.msra.mxu0 0.0
        %768 = vmatprep.subr.mxu0 0.0
        %769 = vmatpush2.msra.mxu0 0.0
        %770 = vmatprep.mubr.f32.mxu0 0.0
        %771 = vmatmul.mubr.f32.gmra.mxu0 %v538
        %v772 = vpop.f32.mrf.mxu0
        %v773 = vadd.f32 %v704, %v772
        %v774 = vpop.f32.mrf.mxu0
        %775 = vdwg.mxu0
        %s776 = scalar_lea.vmem %s5, 96
        %v777 = vld [vmem:[%s776] sm:$0xff]
        %v778 = vld [vmem:[%s776 + $0x8] sm:$0xff]
        %v779 = vld [vmem:[%s776 + $0x10] sm:$0xff]
        %v780 = vld [vmem:[%s776 + $0x18] sm:$0xff]
        %vm781 = vcmask 64512
        %v783 = vsel %vm781, %v607, 0
        %v786 = vsel %vm781, %v690, 0
        %788 = vmatprep.subr.mxu0 0.0
        %789 = vmatpush1.xpose.msra.mxu0 0.0
        %790 = vmatprep.subr.mxu0 0.0
        %791 = vmatpush1.xpose.msra.mxu0 0.0
        %792 = vmatprep.subr.mxu0 0.0
        %793 = vmatpush1.xpose.msra.mxu0 0.0
        %794 = vmatprep.subr.mxu0 0.0
        %795 = vmatpush1.xpose.msra.mxu0 0.0
        %796 = vmatprep.subr.mxu0 0.0
        %797 = vmatpush1.xpose.msra.mxu0 0.0
        %798 = vmatprep.subr.mxu0 0.0
        %799 = vmatpush1.xpose.msra.mxu0 0.0
        %800 = vmatprep.subr.mxu0 0.0
        %801 = vmatpush1.xpose.msra.mxu0 0.0
        %802 = vmatprep.subr.mxu0 0.0
        %803 = vmatpush1.xpose.msra.mxu0 0.0
        %804 = vmatprep.subr.mxu0 0.0
        %805 = vmatpush1.xpose.msra.mxu0 0.0
        %806 = vmatprep.subr.mxu0 0.0
        %807 = vmatpush1.xpose.msra.mxu0 0.0
        %808 = vmatprep.subr.mxu0 0.0
        %809 = vmatpush1.xpose.msra.mxu0 0.0
        %810 = vmatprep.subr.mxu0 0.0
        %811 = vmatpush1.xpose.msra.mxu0 0.0
        %812 = vmatprep.subr.mxu0 0.0
        %813 = vmatpush1.xpose.msra.mxu0 0.0
        %814 = vmatprep.subr.mxu0 0.0
        %815 = vmatpush1.xpose.msra.mxu0 0.0
        %816 = vmatprep.subr.mxu0 0.0
        %817 = vmatpush1.xpose.msra.mxu0 0.0
        %818 = vmatprep.subr.mxu0 0.0
        %819 = vmatpush1.xpose.msra.mxu0 %v786
        %820 = vmatprep.subr.mxu0 0.0
        %821 = vmatpush2.xpose.msra.mxu0 0.0
        %822 = vmatprep.subr.mxu0 0.0
        %823 = vmatpush2.xpose.msra.mxu0 0.0
        %824 = vmatprep.subr.mxu0 0.0
        %825 = vmatpush2.xpose.msra.mxu0 0.0
        %826 = vmatprep.subr.mxu0 0.0
        %827 = vmatpush2.xpose.msra.mxu0 0.0
        %828 = vmatprep.subr.mxu0 0.0
        %829 = vmatpush2.xpose.msra.mxu0 0.0
        %830 = vmatprep.subr.mxu0 0.0
        %831 = vmatpush2.xpose.msra.mxu0 0.0
        %832 = vmatprep.subr.mxu0 0.0
        %833 = vmatpush2.xpose.msra.mxu0 0.0
        %834 = vmatprep.subr.mxu0 0.0
        %835 = vmatpush2.xpose.msra.mxu0 0.0
        %836 = vmatprep.subr.mxu0 0.0
        %837 = vmatpush2.xpose.msra.mxu0 0.0
        %838 = vmatprep.subr.mxu0 0.0
        %839 = vmatpush2.xpose.msra.mxu0 0.0
        %840 = vmatprep.subr.mxu0 0.0
        %841 = vmatpush2.xpose.msra.mxu0 0.0
        %842 = vmatprep.subr.mxu0 0.0
        %843 = vmatpush2.xpose.msra.mxu0 0.0
        %844 = vmatprep.subr.mxu0 0.0
        %845 = vmatpush2.xpose.msra.mxu0 0.0
        %846 = vmatprep.subr.mxu0 0.0
        %847 = vmatpush2.xpose.msra.mxu0 0.0
        %848 = vmatprep.subr.mxu0 0.0
        %849 = vmatpush2.xpose.msra.mxu0 0.0
        %850 = vmatprep.subr.mxu0 0.0
        %851 = vmatpush2.xpose.msra.mxu0 0.0
        %852 = vmatprep.mubr.f32.mxu0 0.0
        %853 = vmatmul.mubr.f32.gmra.mxu0 %v783
        %v854 = vpop.f32.mrf.mxu0
        %v855 = vadd.f32 0.0, %v854
        %v856 = vpop.f32.mrf.mxu0
        %857 = vdwg.mxu0
        %v858 = vmul.f32 %v855, 0.35355338
        %v859 = vsel %vm781, %v858, -inf
        %860 = vmax.xlane.f32.xlu0 %v859
        %v861 = vpop.xlane.xlu0 %860
        %v862 = vsub.f32 %v858, %v861
        %v863 = vmul.f32 %v862, 1.442695
        %v864 = vpow.pop %v863
        %v865 = vsel %vm781, %v864, 0.0
        %866 = vadd.xlane.f32.xlu0 %v865
        %v867 = vpop.xlane.xlu0 %866
        %v868 = vrcp.pop %v867
        %v869 = vmul.f32 %v864, %v868
        %v871 = vsel %vm781, %v869, 0
        %873 = vmatprep.subr.mxu0 0.0
        %874 = vmatpush1.msra.mxu0 0.0
        %875 = vmatprep.subr.mxu0 0.0
        %876 = vmatpush1.msra.mxu0 0.0
        %877 = vmatprep.subr.mxu0 0.0
        %878 = vmatpush1.msra.mxu0 0.0
        %879 = vmatprep.subr.mxu0 0.0
        %880 = vmatpush1.msra.mxu0 0.0
        %881 = vmatprep.subr.mxu0 0.0
        %882 = vmatpush1.msra.mxu0 0.0
        %883 = vmatprep.subr.mxu0 0.0
        %884 = vmatpush1.msra.mxu0 0.0
        %885 = vmatprep.subr.mxu0 0.0
        %886 = vmatpush1.msra.mxu0 0.0
        %887 = vmatprep.subr.mxu0 0.0
        %888 = vmatpush1.msra.mxu0 0.0
        %889 = vmatprep.subr.mxu0 0.0
        %890 = vmatpush1.msra.mxu0 0.0
        %891 = vmatprep.subr.mxu0 0.0
        %892 = vmatpush1.msra.mxu0 0.0
        %893 = vmatprep.subr.mxu0 0.0
        %894 = vmatpush1.msra.mxu0 0.0
        %895 = vmatprep.subr.mxu0 0.0
        %896 = vmatpush1.msra.mxu0 0.0
        %897 = vmatprep.subr.mxu0 0.0
        %898 = vmatpush1.msra.mxu0 0.0
        %899 = vmatprep.subr.mxu0 0.0
        %900 = vmatpush1.msra.mxu0 0.0
        %901 = vmatprep.subr.mxu0 0.0
        %902 = vmatpush1.msra.mxu0 0.0
        %903 = vmatprep.subr.mxu0 0.0
        %904 = vmatpush1.msra.mxu0 %v773
        %905 = vmatprep.subr.mxu0 0.0
        %906 = vmatpush2.msra.mxu0 0.0
        %907 = vmatprep.subr.mxu0 0.0
        %908 = vmatpush2.msra.mxu0 0.0
        %909 = vmatprep.subr.mxu0 0.0
        %910 = vmatpush2.msra.mxu0 0.0
        %911 = vmatprep.subr.mxu0 0.0
        %912 = vmatpush2.msra.mxu0 0.0
        %913 = vmatprep.subr.mxu0 0.0
        %914 = vmatpush2.msra.mxu0 0.0
        %915 = vmatprep.subr.mxu0 0.0
        %916 = vmatpush2.msra.mxu0 0.0
        %917 = vmatprep.subr.mxu0 0.0
        %918 = vmatpush2.msra.mxu0 0.0
        %919 = vmatprep.subr.mxu0 0.0
        %920 = vmatpush2.msra.mxu0 0.0
        %921 = vmatprep.subr.mxu0 0.0
        %922 = vmatpush2.msra.mxu0 0.0
        %923 = vmatprep.subr.mxu0 0.0
        %924 = vmatpush2.msra.mxu0 0.0
        %925 = vmatprep.subr.mxu0 0.0
        %926 = vmatpush2.msra.mxu0 0.0
        %927 = vmatprep.subr.mxu0 0.0
        %928 = vmatpush2.msra.mxu0 0.0
        %929 = vmatprep.subr.mxu0 0.0
        %930 = vmatpush2.msra.mxu0 0.0
        %931 = vmatprep.subr.mxu0 0.0
        %932 = vmatpush2.msra.mxu0 0.0
        %933 = vmatprep.subr.mxu0 0.0
        %934 = vmatpush2.msra.mxu0 0.0
        %935 = vmatprep.subr.mxu0 0.0
        %936 = vmatpush2.msra.mxu0 0.0
        %937 = vmatprep.mubr.f32.mxu0 0.0
        %938 = vmatmul.mubr.f32.gmra.mxu0 %v871
        %v939 = vpop.f32.mrf.mxu0
        %v940 = vadd.f32 0.0, %v939
        %v941 = vpop.f32.mrf.mxu0
        %942 = vdwg.mxu0
        %943 = vrot.lane.b32.xlu0 %v607, 120
        %v944 = vpop.permute.xlu0 %943
        %945 = vrot.lane.b32.xlu0 %v690, 120
        %v946 = vpop.permute.xlu0 %945
        %v947 = vsel %vm781, %v944, 0
        %v949 = vsel %vm781, %v946, 0
        %951 = vmatprep.subr.mxu0 0.0
        %952 = vmatpush1.xpose.msra.mxu0 0.0
        %953 = vmatprep.subr.mxu0 0.0
        %954 = vmatpush1.xpose.msra.mxu0 0.0
        %955 = vmatprep.subr.mxu0 0.0
        %956 = vmatpush1.xpose.msra.mxu0 0.0
        %957 = vmatprep.subr.mxu0 0.0
        %958 = vmatpush1.xpose.msra.mxu0 0.0
        %959 = vmatprep.subr.mxu0 0.0
        %960 = vmatpush1.xpose.msra.mxu0 0.0
        %961 = vmatprep.subr.mxu0 0.0
        %962 = vmatpush1.xpose.msra.mxu0 0.0
        %963 = vmatprep.subr.mxu0 0.0
        %964 = vmatpush1.xpose.msra.mxu0 0.0
        %965 = vmatprep.subr.mxu0 0.0
        %966 = vmatpush1.xpose.msra.mxu0 0.0
        %967 = vmatprep.subr.mxu0 0.0
        %968 = vmatpush1.xpose.msra.mxu0 0.0
        %969 = vmatprep.subr.mxu0 0.0
        %970 = vmatpush1.xpose.msra.mxu0 0.0
        %971 = vmatprep.subr.mxu0 0.0
        %972 = vmatpush1.xpose.msra.mxu0 0.0
        %973 = vmatprep.subr.mxu0 0.0
        %974 = vmatpush1.xpose.msra.mxu0 0.0
        %975 = vmatprep.subr.mxu0 0.0
        %976 = vmatpush1.xpose.msra.mxu0 0.0
        %977 = vmatprep.subr.mxu0 0.0
        %978 = vmatpush1.xpose.msra.mxu0 0.0
        %979 = vmatprep.subr.mxu0 0.0
        %980 = vmatpush1.xpose.msra.mxu0 0.0
        %981 = vmatprep.subr.mxu0 0.0
        %982 = vmatpush1.xpose.msra.mxu0 %v949
        %983 = vmatprep.subr.mxu0 0.0
        %984 = vmatpush2.xpose.msra.mxu0 0.0
        %985 = vmatprep.subr.mxu0 0.0
        %986 = vmatpush2.xpose.msra.mxu0 0.0
        %987 = vmatprep.subr.mxu0 0.0
        %988 = vmatpush2.xpose.msra.mxu0 0.0
        %989 = vmatprep.subr.mxu0 0.0
        %990 = vmatpush2.xpose.msra.mxu0 0.0
        %991 = vmatprep.subr.mxu0 0.0
        %992 = vmatpush2.xpose.msra.mxu0 0.0
        %993 = vmatprep.subr.mxu0 0.0
        %994 = vmatpush2.xpose.msra.mxu0 0.0
        %995 = vmatprep.subr.mxu0 0.0
        %996 = vmatpush2.xpose.msra.mxu0 0.0
        %997 = vmatprep.subr.mxu0 0.0
        %998 = vmatpush2.xpose.msra.mxu0 0.0
        %999 = vmatprep.subr.mxu0 0.0
        %1000 = vmatpush2.xpose.msra.mxu0 0.0
        %1001 = vmatprep.subr.mxu0 0.0
        %1002 = vmatpush2.xpose.msra.mxu0 0.0
        %1003 = vmatprep.subr.mxu0 0.0
        %1004 = vmatpush2.xpose.msra.mxu0 0.0
        %1005 = vmatprep.subr.mxu0 0.0
        %1006 = vmatpush2.xpose.msra.mxu0 0.0
        %1007 = vmatprep.subr.mxu0 0.0
        %1008 = vmatpush2.xpose.msra.mxu0 0.0
        %1009 = vmatprep.subr.mxu0 0.0
        %1010 = vmatpush2.xpose.msra.mxu0 0.0
        %1011 = vmatprep.subr.mxu0 0.0
        %1012 = vmatpush2.xpose.msra.mxu0 0.0
        %1013 = vmatprep.subr.mxu0 0.0
        %1014 = vmatpush2.xpose.msra.mxu0 0.0
        %1015 = vmatprep.mubr.f32.mxu0 0.0
        %1016 = vmatmul.mubr.f32.gmra.mxu0 %v947
        %v1017 = vpop.f32.mrf.mxu0
        %v1018 = vadd.f32 0.0, %v1017
        %v1019 = vpop.f32.mrf.mxu0
        %1020 = vdwg.mxu0
        %v1021 = vmul.f32 %v1018, 0.35355338
        %v1022 = vsel %vm781, %v1021, -inf
        %1023 = vmax.xlane.f32.xlu0 %v1022
        %v1024 = vpop.xlane.xlu0 %1023
        %v1025 = vsub.f32 %v1021, %v1024
        %v1026 = vmul.f32 %v1025, 1.442695
        %v1027 = vpow.pop %v1026
        %v1028 = vsel %vm781, %v1027, 0.0
        %1029 = vadd.xlane.f32.xlu0 %v1028
        %v1030 = vpop.xlane.xlu0 %1029
        %v1031 = vrcp.pop %v1030
        %v1032 = vmul.f32 %v1027, %v1031
        %1034 = vrot.lane.b32.xlu0 %v773, 120
        %v1035 = vpop.permute.xlu0 %1034
        %v1038 = vsel %vm781, %v1032, 0
        %1040 = vmatprep.subr.mxu0 0.0
        %1041 = vmatpush1.msra.mxu0 0.0
        %1042 = vmatprep.subr.mxu0 0.0
        %1043 = vmatpush1.msra.mxu0 0.0
        %1044 = vmatprep.subr.mxu0 0.0
        %1045 = vmatpush1.msra.mxu0 0.0
        %1046 = vmatprep.subr.mxu0 0.0
        %1047 = vmatpush1.msra.mxu0 0.0
        %1048 = vmatprep.subr.mxu0 0.0
        %1049 = vmatpush1.msra.mxu0 0.0
        %1050 = vmatprep.subr.mxu0 0.0
        %1051 = vmatpush1.msra.mxu0 0.0
        %1052 = vmatprep.subr.mxu0 0.0
        %1053 = vmatpush1.msra.mxu0 0.0
        %1054 = vmatprep.subr.mxu0 0.0
        %1055 = vmatpush1.msra.mxu0 0.0
        %1056 = vmatprep.subr.mxu0 0.0
        %1057 = vmatpush1.msra.mxu0 0.0
        %1058 = vmatprep.subr.mxu0 0.0
        %1059 = vmatpush1.msra.mxu0 0.0
        %1060 = vmatprep.subr.mxu0 0.0
        %1061 = vmatpush1.msra.mxu0 0.0
        %1062 = vmatprep.subr.mxu0 0.0
        %1063 = vmatpush1.msra.mxu0 0.0
        %1064 = vmatprep.subr.mxu0 0.0
        %1065 = vmatpush1.msra.mxu0 0.0
        %1066 = vmatprep.subr.mxu0 0.0
        %1067 = vmatpush1.msra.mxu0 0.0
        %1068 = vmatprep.subr.mxu0 0.0
        %1069 = vmatpush1.msra.mxu0 0.0
        %1070 = vmatprep.subr.mxu0 0.0
        %1071 = vmatpush1.msra.mxu0 %v1035
        %1072 = vmatprep.subr.mxu0 0.0
        %1073 = vmatpush2.msra.mxu0 0.0
        %1074 = vmatprep.subr.mxu0 0.0
        %1075 = vmatpush2.msra.mxu0 0.0
        %1076 = vmatprep.subr.mxu0 0.0
        %1077 = vmatpush2.msra.mxu0 0.0
        %1078 = vmatprep.subr.mxu0 0.0
        %1079 = vmatpush2.msra.mxu0 0.0
        %1080 = vmatprep.subr.mxu0 0.0
        %1081 = vmatpush2.msra.mxu0 0.0
        %1082 = vmatprep.subr.mxu0 0.0
        %1083 = vmatpush2.msra.mxu0 0.0
        %1084 = vmatprep.subr.mxu0 0.0
        %1085 = vmatpush2.msra.mxu0 0.0
        %1086 = vmatprep.subr.mxu0 0.0
        %1087 = vmatpush2.msra.mxu0 0.0
        %1088 = vmatprep.subr.mxu0 0.0
        %1089 = vmatpush2.msra.mxu0 0.0
        %1090 = vmatprep.subr.mxu0 0.0
        %1091 = vmatpush2.msra.mxu0 0.0
        %1092 = vmatprep.subr.mxu0 0.0
        %1093 = vmatpush2.msra.mxu0 0.0
        %1094 = vmatprep.subr.mxu0 0.0
        %1095 = vmatpush2.msra.mxu0 0.0
        %1096 = vmatprep.subr.mxu0 0.0
        %1097 = vmatpush2.msra.mxu0 0.0
        %1098 = vmatprep.subr.mxu0 0.0
        %1099 = vmatpush2.msra.mxu0 0.0
        %1100 = vmatprep.subr.mxu0 0.0
        %1101 = vmatpush2.msra.mxu0 0.0
        %1102 = vmatprep.subr.mxu0 0.0
        %1103 = vmatpush2.msra.mxu0 0.0
        %1104 = vmatprep.mubr.f32.mxu0 0.0
        %1105 = vmatmul.mubr.f32.gmra.mxu0 %v1038
        %v1106 = vpop.f32.mrf.mxu0
        %v1107 = vadd.f32 0.0, %v1106
        %v1108 = vpop.f32.mrf.mxu0
        %1109 = vdwg.mxu0
        %v1111 = vsel %vm781, %v1107, 0
        %1113 = vmatprep.subr.mxu0 0.0
        %1114 = vmatpush1.msra.mxu0 0.0
        %1115 = vmatprep.subr.mxu0 0.0
        %1116 = vmatpush1.msra.mxu0 0.0
        %1117 = vmatprep.subr.mxu0 0.0
        %1118 = vmatpush1.msra.mxu0 0.0
        %1119 = vmatprep.subr.mxu0 0.0
        %1120 = vmatpush1.msra.mxu0 0.0
        %1121 = vmatprep.subr.mxu0 0.0
        %1122 = vmatpush1.msra.mxu0 0.0
        %1123 = vmatprep.subr.mxu0 0.0
        %1124 = vmatpush1.msra.mxu0 0.0
        %1125 = vmatprep.subr.mxu0 0.0
        %1126 = vmatpush1.msra.mxu0 0.0
        %1127 = vmatprep.subr.mxu0 0.0
        %1128 = vmatpush1.msra.mxu0 0.0
        %1129 = vmatprep.subr.mxu0 0.0
        %1130 = vmatpush1.msra.mxu0 0.0
        %1131 = vmatprep.subr.mxu0 0.0
        %1132 = vmatpush1.msra.mxu0 0.0
        %1133 = vmatprep.subr.mxu0 0.0
        %1134 = vmatpush1.msra.mxu0 0.0
        %1135 = vmatprep.subr.mxu0 0.0
        %1136 = vmatpush1.msra.mxu0 0.0
        %1137 = vmatprep.subr.mxu0 0.0
        %1138 = vmatpush1.msra.mxu0 0.0
        %1139 = vmatprep.subr.mxu0 0.0
        %1140 = vmatpush1.msra.mxu0 0.0
        %1141 = vmatprep.subr.mxu0 0.0
        %1142 = vmatpush1.msra.mxu0 0.0
        %1143 = vmatprep.subr.mxu0 0.0
        %1144 = vmatpush1.msra.mxu0 %v778
        %1145 = vmatprep.subr.mxu0 0.0
        %1146 = vmatpush2.msra.mxu0 0.0
        %1147 = vmatprep.subr.mxu0 0.0
        %1148 = vmatpush2.msra.mxu0 0.0
        %1149 = vmatprep.subr.mxu0 0.0
        %1150 = vmatpush2.msra.mxu0 0.0
        %1151 = vmatprep.subr.mxu0 0.0
        %1152 = vmatpush2.msra.mxu0 0.0
        %1153 = vmatprep.subr.mxu0 0.0
        %1154 = vmatpush2.msra.mxu0 0.0
        %1155 = vmatprep.subr.mxu0 0.0
        %1156 = vmatpush2.msra.mxu0 0.0
        %1157 = vmatprep.subr.mxu0 0.0
        %1158 = vmatpush2.msra.mxu0 0.0
        %1159 = vmatprep.subr.mxu0 0.0
        %1160 = vmatpush2.msra.mxu0 0.0
        %1161 = vmatprep.subr.mxu0 0.0
        %1162 = vmatpush2.msra.mxu0 0.0
        %1163 = vmatprep.subr.mxu0 0.0
        %1164 = vmatpush2.msra.mxu0 0.0
        %1165 = vmatprep.subr.mxu0 0.0
        %1166 = vmatpush2.msra.mxu0 0.0
        %1167 = vmatprep.subr.mxu0 0.0
        %1168 = vmatpush2.msra.mxu0 0.0
        %1169 = vmatprep.subr.mxu0 0.0
        %1170 = vmatpush2.msra.mxu0 0.0
        %1171 = vmatprep.subr.mxu0 0.0
        %1172 = vmatpush2.msra.mxu0 0.0
        %1173 = vmatprep.subr.mxu0 0.0
        %1174 = vmatpush2.msra.mxu0 0.0
        %1175 = vmatprep.subr.mxu0 0.0
        %1176 = vmatpush2.msra.mxu0 0.0
        %1177 = vmatprep.mubr.f32.mxu0 0.0
        %1178 = vmatmul.mubr.f32.gmra.mxu0 %v1111
        %v1179 = vpop.f32.mrf.mxu0
        %v1180 = vadd.f32 0.0, %v1179
        %v1181 = vpop.f32.mrf.mxu0
        %1182 = vdwg.mxu0
        %v1184 = vsel %vm781, %v940, 0
        %1186 = vmatprep.subr.mxu0 0.0
        %1187 = vmatpush1.msra.mxu0 0.0
        %1188 = vmatprep.subr.mxu0 0.0
        %1189 = vmatpush1.msra.mxu0 0.0
        %1190 = vmatprep.subr.mxu0 0.0
        %1191 = vmatpush1.msra.mxu0 0.0
        %1192 = vmatprep.subr.mxu0 0.0
        %1193 = vmatpush1.msra.mxu0 0.0
        %1194 = vmatprep.subr.mxu0 0.0
        %1195 = vmatpush1.msra.mxu0 0.0
        %1196 = vmatprep.subr.mxu0 0.0
        %1197 = vmatpush1.msra.mxu0 0.0
        %1198 = vmatprep.subr.mxu0 0.0
        %1199 = vmatpush1.msra.mxu0 0.0
        %1200 = vmatprep.subr.mxu0 0.0
        %1201 = vmatpush1.msra.mxu0 0.0
        %1202 = vmatprep.subr.mxu0 0.0
        %1203 = vmatpush1.msra.mxu0 0.0
        %1204 = vmatprep.subr.mxu0 0.0
        %1205 = vmatpush1.msra.mxu0 0.0
        %1206 = vmatprep.subr.mxu0 0.0
        %1207 = vmatpush1.msra.mxu0 0.0
        %1208 = vmatprep.subr.mxu0 0.0
        %1209 = vmatpush1.msra.mxu0 0.0
        %1210 = vmatprep.subr.mxu0 0.0
        %1211 = vmatpush1.msra.mxu0 0.0
        %1212 = vmatprep.subr.mxu0 0.0
        %1213 = vmatpush1.msra.mxu0 0.0
        %1214 = vmatprep.subr.mxu0 0.0
        %1215 = vmatpush1.msra.mxu0 0.0
        %1216 = vmatprep.subr.mxu0 0.0
        %1217 = vmatpush1.msra.mxu0 %v777
        %1218 = vmatprep.subr.mxu0 0.0
        %1219 = vmatpush2.msra.mxu0 0.0
        %1220 = vmatprep.subr.mxu0 0.0
        %1221 = vmatpush2.msra.mxu0 0.0
        %1222 = vmatprep.subr.mxu0 0.0
        %1223 = vmatpush2.msra.mxu0 0.0
        %1224 = vmatprep.subr.mxu0 0.0
        %1225 = vmatpush2.msra.mxu0 0.0
        %1226 = vmatprep.subr.mxu0 0.0
        %1227 = vmatpush2.msra.mxu0 0.0
        %1228 = vmatprep.subr.mxu0 0.0
        %1229 = vmatpush2.msra.mxu0 0.0
        %1230 = vmatprep.subr.mxu0 0.0
        %1231 = vmatpush2.msra.mxu0 0.0
        %1232 = vmatprep.subr.mxu0 0.0
        %1233 = vmatpush2.msra.mxu0 0.0
        %1234 = vmatprep.subr.mxu0 0.0
        %1235 = vmatpush2.msra.mxu0 0.0
        %1236 = vmatprep.subr.mxu0 0.0
        %1237 = vmatpush2.msra.mxu0 0.0
        %1238 = vmatprep.subr.mxu0 0.0
        %1239 = vmatpush2.msra.mxu0 0.0
        %1240 = vmatprep.subr.mxu0 0.0
        %1241 = vmatpush2.msra.mxu0 0.0
        %1242 = vmatprep.subr.mxu0 0.0
        %1243 = vmatpush2.msra.mxu0 0.0
        %1244 = vmatprep.subr.mxu0 0.0
        %1245 = vmatpush2.msra.mxu0 0.0
        %1246 = vmatprep.subr.mxu0 0.0
        %1247 = vmatpush2.msra.mxu0 0.0
        %1248 = vmatprep.subr.mxu0 0.0
        %1249 = vmatpush2.msra.mxu0 0.0
        %1250 = vmatprep.mubr.f32.mxu0 0.0
        %1251 = vmatmul.mubr.f32.gmra.mxu0 %v1184
        %v1252 = vpop.f32.mrf.mxu0
        %v1253 = vadd.f32 %v1180, %v1252
        %v1254 = vpop.f32.mrf.mxu0
        %1255 = vdwg.mxu0
        %1256 = vrot.lane.b32.xlu0 %v607, 112
        %v1257 = vpop.permute.xlu0 %1256
        %1258 = vrot.lane.b32.xlu0 %v690, 112
        %v1259 = vpop.permute.xlu0 %1258
        %v1260 = vsel %vm781, %v1257, 0
        %v1262 = vsel %vm781, %v1259, 0
        %1264 = vmatprep.subr.mxu0 0.0
        %1265 = vmatpush1.xpose.msra.mxu0 0.0
        %1266 = vmatprep.subr.mxu0 0.0
        %1267 = vmatpush1.xpose.msra.mxu0 0.0
        %1268 = vmatprep.subr.mxu0 0.0
        %1269 = vmatpush1.xpose.msra.mxu0 0.0
        %1270 = vmatprep.subr.mxu0 0.0
        %1271 = vmatpush1.xpose.msra.mxu0 0.0
        %1272 = vmatprep.subr.mxu0 0.0
        %1273 = vmatpush1.xpose.msra.mxu0 0.0
        %1274 = vmatprep.subr.mxu0 0.0
        %1275 = vmatpush1.xpose.msra.mxu0 0.0
        %1276 = vmatprep.subr.mxu0 0.0
        %1277 = vmatpush1.xpose.msra.mxu0 0.0
        %1278 = vmatprep.subr.mxu0 0.0
        %1279 = vmatpush1.xpose.msra.mxu0 0.0
        %1280 = vmatprep.subr.mxu0 0.0
        %1281 = vmatpush1.xpose.msra.mxu0 0.0
        %1282 = vmatprep.subr.mxu0 0.0
        %1283 = vmatpush1.xpose.msra.mxu0 0.0
        %1284 = vmatprep.subr.mxu0 0.0
        %1285 = vmatpush1.xpose.msra.mxu0 0.0
        %1286 = vmatprep.subr.mxu0 0.0
        %1287 = vmatpush1.xpose.msra.mxu0 0.0
        %1288 = vmatprep.subr.mxu0 0.0
        %1289 = vmatpush1.xpose.msra.mxu0 0.0
        %1290 = vmatprep.subr.mxu0 0.0
        %1291 = vmatpush1.xpose.msra.mxu0 0.0
        %1292 = vmatprep.subr.mxu0 0.0
        %1293 = vmatpush1.xpose.msra.mxu0 0.0
        %1294 = vmatprep.subr.mxu0 0.0
        %1295 = vmatpush1.xpose.msra.mxu0 %v1262
        %1296 = vmatprep.subr.mxu0 0.0
        %1297 = vmatpush2.xpose.msra.mxu0 0.0
        %1298 = vmatprep.subr.mxu0 0.0
        %1299 = vmatpush2.xpose.msra.mxu0 0.0
        %1300 = vmatprep.subr.mxu0 0.0
        %1301 = vmatpush2.xpose.msra.mxu0 0.0
        %1302 = vmatprep.subr.mxu0 0.0
        %1303 = vmatpush2.xpose.msra.mxu0 0.0
        %1304 = vmatprep.subr.mxu0 0.0
        %1305 = vmatpush2.xpose.msra.mxu0 0.0
        %1306 = vmatprep.subr.mxu0 0.0
        %1307 = vmatpush2.xpose.msra.mxu0 0.0
        %1308 = vmatprep.subr.mxu0 0.0
        %1309 = vmatpush2.xpose.msra.mxu0 0.0
        %1310 = vmatprep.subr.mxu0 0.0
        %1311 = vmatpush2.xpose.msra.mxu0 0.0
        %1312 = vmatprep.subr.mxu0 0.0
        %1313 = vmatpush2.xpose.msra.mxu0 0.0
        %1314 = vmatprep.subr.mxu0 0.0
        %1315 = vmatpush2.xpose.msra.mxu0 0.0
        %1316 = vmatprep.subr.mxu0 0.0
        %1317 = vmatpush2.xpose.msra.mxu0 0.0
        %1318 = vmatprep.subr.mxu0 0.0
        %1319 = vmatpush2.xpose.msra.mxu0 0.0
        %1320 = vmatprep.subr.mxu0 0.0
        %1321 = vmatpush2.xpose.msra.mxu0 0.0
        %1322 = vmatprep.subr.mxu0 0.0
        %1323 = vmatpush2.xpose.msra.mxu0 0.0
        %1324 = vmatprep.subr.mxu0 0.0
        %1325 = vmatpush2.xpose.msra.mxu0 0.0
        %1326 = vmatprep.subr.mxu0 0.0
        %1327 = vmatpush2.xpose.msra.mxu0 0.0
        %1328 = vmatprep.mubr.f32.mxu0 0.0
        %1329 = vmatmul.mubr.f32.gmra.mxu0 %v1260
        %v1330 = vpop.f32.mrf.mxu0
        %v1331 = vadd.f32 0.0, %v1330
        %v1332 = vpop.f32.mrf.mxu0
        %1333 = vdwg.mxu0
        %v1334 = vmul.f32 %v1331, 0.35355338
        %v1335 = vsel %vm781, %v1334, -inf
        %1336 = vmax.xlane.f32.xlu0 %v1335
        %v1337 = vpop.xlane.xlu0 %1336
        %v1338 = vsub.f32 %v1334, %v1337
        %v1339 = vmul.f32 %v1338, 1.442695
        %v1340 = vpow.pop %v1339
        %v1341 = vsel %vm781, %v1340, 0.0
        %1342 = vadd.xlane.f32.xlu0 %v1341
        %v1343 = vpop.xlane.xlu0 %1342
        %v1344 = vrcp.pop %v1343
        %v1345 = vmul.f32 %v1340, %v1344
        %1346 = vrot.lane.b32.xlu0 %v773, 112
        %v1347 = vpop.permute.xlu0 %1346
        %v1350 = vsel %vm781, %v1345, 0
        %1352 = vmatprep.subr.mxu0 0.0
        %1353 = vmatpush1.msra.mxu0 0.0
        %1354 = vmatprep.subr.mxu0 0.0
        %1355 = vmatpush1.msra.mxu0 0.0
        %1356 = vmatprep.subr.mxu0 0.0
        %1357 = vmatpush1.msra.mxu0 0.0
        %1358 = vmatprep.subr.mxu0 0.0
        %1359 = vmatpush1.msra.mxu0 0.0
        %1360 = vmatprep.subr.mxu0 0.0
        %1361 = vmatpush1.msra.mxu0 0.0
        %1362 = vmatprep.subr.mxu0 0.0
        %1363 = vmatpush1.msra.mxu0 0.0
        %1364 = vmatprep.subr.mxu0 0.0
        %1365 = vmatpush1.msra.mxu0 0.0
        %1366 = vmatprep.subr.mxu0 0.0
        %1367 = vmatpush1.msra.mxu0 0.0
        %1368 = vmatprep.subr.mxu0 0.0
        %1369 = vmatpush1.msra.mxu0 0.0
        %1370 = vmatprep.subr.mxu0 0.0
        %1371 = vmatpush1.msra.mxu0 0.0
        %1372 = vmatprep.subr.mxu0 0.0
        %1373 = vmatpush1.msra.mxu0 0.0
        %1374 = vmatprep.subr.mxu0 0.0
        %1375 = vmatpush1.msra.mxu0 0.0
        %1376 = vmatprep.subr.mxu0 0.0
        %1377 = vmatpush1.msra.mxu0 0.0
        %1378 = vmatprep.subr.mxu0 0.0
        %1379 = vmatpush1.msra.mxu0 0.0
        %1380 = vmatprep.subr.mxu0 0.0
        %1381 = vmatpush1.msra.mxu0 0.0
        %1382 = vmatprep.subr.mxu0 0.0
        %1383 = vmatpush1.msra.mxu0 %v1347
        %1384 = vmatprep.subr.mxu0 0.0
        %1385 = vmatpush2.msra.mxu0 0.0
        %1386 = vmatprep.subr.mxu0 0.0
        %1387 = vmatpush2.msra.mxu0 0.0
        %1388 = vmatprep.subr.mxu0 0.0
        %1389 = vmatpush2.msra.mxu0 0.0
        %1390 = vmatprep.subr.mxu0 0.0
        %1391 = vmatpush2.msra.mxu0 0.0
        %1392 = vmatprep.subr.mxu0 0.0
        %1393 = vmatpush2.msra.mxu0 0.0
        %1394 = vmatprep.subr.mxu0 0.0
        %1395 = vmatpush2.msra.mxu0 0.0
        %1396 = vmatprep.subr.mxu0 0.0
        %1397 = vmatpush2.msra.mxu0 0.0
        %1398 = vmatprep.subr.mxu0 0.0
        %1399 = vmatpush2.msra.mxu0 0.0
        %1400 = vmatprep.subr.mxu0 0.0
        %1401 = vmatpush2.msra.mxu0 0.0
        %1402 = vmatprep.subr.mxu0 0.0
        %1403 = vmatpush2.msra.mxu0 0.0
        %1404 = vmatprep.subr.mxu0 0.0
        %1405 = vmatpush2.msra.mxu0 0.0
        %1406 = vmatprep.subr.mxu0 0.0
        %1407 = vmatpush2.msra.mxu0 0.0
        %1408 = vmatprep.subr.mxu0 0.0
        %1409 = vmatpush2.msra.mxu0 0.0
        %1410 = vmatprep.subr.mxu0 0.0
        %1411 = vmatpush2.msra.mxu0 0.0
        %1412 = vmatprep.subr.mxu0 0.0
        %1413 = vmatpush2.msra.mxu0 0.0
        %1414 = vmatprep.subr.mxu0 0.0
        %1415 = vmatpush2.msra.mxu0 0.0
        %1416 = vmatprep.mubr.f32.mxu0 0.0
        %1417 = vmatmul.mubr.f32.gmra.mxu0 %v1350
        %v1418 = vpop.f32.mrf.mxu0
        %v1419 = vadd.f32 0.0, %v1418
        %v1420 = vpop.f32.mrf.mxu0
        %1421 = vdwg.mxu0
        %v1423 = vsel %vm781, %v1419, 0
        %1425 = vmatprep.subr.mxu0 0.0
        %1426 = vmatpush1.msra.mxu0 0.0
        %1427 = vmatprep.subr.mxu0 0.0
        %1428 = vmatpush1.msra.mxu0 0.0
        %1429 = vmatprep.subr.mxu0 0.0
        %1430 = vmatpush1.msra.mxu0 0.0
        %1431 = vmatprep.subr.mxu0 0.0
        %1432 = vmatpush1.msra.mxu0 0.0
        %1433 = vmatprep.subr.mxu0 0.0
        %1434 = vmatpush1.msra.mxu0 0.0
        %1435 = vmatprep.subr.mxu0 0.0
        %1436 = vmatpush1.msra.mxu0 0.0
        %1437 = vmatprep.subr.mxu0 0.0
        %1438 = vmatpush1.msra.mxu0 0.0
        %1439 = vmatprep.subr.mxu0 0.0
        %1440 = vmatpush1.msra.mxu0 0.0
        %1441 = vmatprep.subr.mxu0 0.0
        %1442 = vmatpush1.msra.mxu0 0.0
        %1443 = vmatprep.subr.mxu0 0.0
        %1444 = vmatpush1.msra.mxu0 0.0
        %1445 = vmatprep.subr.mxu0 0.0
        %1446 = vmatpush1.msra.mxu0 0.0
        %1447 = vmatprep.subr.mxu0 0.0
        %1448 = vmatpush1.msra.mxu0 0.0
        %1449 = vmatprep.subr.mxu0 0.0
        %1450 = vmatpush1.msra.mxu0 0.0
        %1451 = vmatprep.subr.mxu0 0.0
        %1452 = vmatpush1.msra.mxu0 0.0
        %1453 = vmatprep.subr.mxu0 0.0
        %1454 = vmatpush1.msra.mxu0 0.0
        %1455 = vmatprep.subr.mxu0 0.0
        %1456 = vmatpush1.msra.mxu0 %v779
        %1457 = vmatprep.subr.mxu0 0.0
        %1458 = vmatpush2.msra.mxu0 0.0
        %1459 = vmatprep.subr.mxu0 0.0
        %1460 = vmatpush2.msra.mxu0 0.0
        %1461 = vmatprep.subr.mxu0 0.0
        %1462 = vmatpush2.msra.mxu0 0.0
        %1463 = vmatprep.subr.mxu0 0.0
        %1464 = vmatpush2.msra.mxu0 0.0
        %1465 = vmatprep.subr.mxu0 0.0
        %1466 = vmatpush2.msra.mxu0 0.0
        %1467 = vmatprep.subr.mxu0 0.0
        %1468 = vmatpush2.msra.mxu0 0.0
        %1469 = vmatprep.subr.mxu0 0.0
        %1470 = vmatpush2.msra.mxu0 0.0
        %1471 = vmatprep.subr.mxu0 0.0
        %1472 = vmatpush2.msra.mxu0 0.0
        %1473 = vmatprep.subr.mxu0 0.0
        %1474 = vmatpush2.msra.mxu0 0.0
        %1475 = vmatprep.subr.mxu0 0.0
        %1476 = vmatpush2.msra.mxu0 0.0
        %1477 = vmatprep.subr.mxu0 0.0
        %1478 = vmatpush2.msra.mxu0 0.0
        %1479 = vmatprep.subr.mxu0 0.0
        %1480 = vmatpush2.msra.mxu0 0.0
        %1481 = vmatprep.subr.mxu0 0.0
        %1482 = vmatpush2.msra.mxu0 0.0
        %1483 = vmatprep.subr.mxu0 0.0
        %1484 = vmatpush2.msra.mxu0 0.0
        %1485 = vmatprep.subr.mxu0 0.0
        %1486 = vmatpush2.msra.mxu0 0.0
        %1487 = vmatprep.subr.mxu0 0.0
        %1488 = vmatpush2.msra.mxu0 0.0
        %1489 = vmatprep.mubr.f32.mxu0 0.0
        %1490 = vmatmul.mubr.f32.gmra.mxu0 %v1423
        %v1491 = vpop.f32.mrf.mxu0
        %v1492 = vadd.f32 0.0, %v1491
        %v1493 = vpop.f32.mrf.mxu0
        %1494 = vdwg.mxu0
        %v1495 = vadd.f32 %v1253, %v1492
        %1496 = vrot.lane.b32.xlu0 %v607, 104
        %v1497 = vpop.permute.xlu0 %1496
        %1498 = vrot.lane.b32.xlu0 %v690, 104
        %v1499 = vpop.permute.xlu0 %1498
        %v1500 = vsel %vm781, %v1497, 0
        %v1502 = vsel %vm781, %v1499, 0
        %1504 = vmatprep.subr.mxu0 0.0
        %1505 = vmatpush1.xpose.msra.mxu0 0.0
        %1506 = vmatprep.subr.mxu0 0.0
        %1507 = vmatpush1.xpose.msra.mxu0 0.0
        %1508 = vmatprep.subr.mxu0 0.0
        %1509 = vmatpush1.xpose.msra.mxu0 0.0
        %1510 = vmatprep.subr.mxu0 0.0
        %1511 = vmatpush1.xpose.msra.mxu0 0.0
        %1512 = vmatprep.subr.mxu0 0.0
        %1513 = vmatpush1.xpose.msra.mxu0 0.0
        %1514 = vmatprep.subr.mxu0 0.0
        %1515 = vmatpush1.xpose.msra.mxu0 0.0
        %1516 = vmatprep.subr.mxu0 0.0
        %1517 = vmatpush1.xpose.msra.mxu0 0.0
        %1518 = vmatprep.subr.mxu0 0.0
        %1519 = vmatpush1.xpose.msra.mxu0 0.0
        %1520 = vmatprep.subr.mxu0 0.0
        %1521 = vmatpush1.xpose.msra.mxu0 0.0
        %1522 = vmatprep.subr.mxu0 0.0
        %1523 = vmatpush1.xpose.msra.mxu0 0.0
        %1524 = vmatprep.subr.mxu0 0.0
        %1525 = vmatpush1.xpose.msra.mxu0 0.0
        %1526 = vmatprep.subr.mxu0 0.0
        %1527 = vmatpush1.xpose.msra.mxu0 0.0
        %1528 = vmatprep.subr.mxu0 0.0
        %1529 = vmatpush1.xpose.msra.mxu0 0.0
        %1530 = vmatprep.subr.mxu0 0.0
        %1531 = vmatpush1.xpose.msra.mxu0 0.0
        %1532 = vmatprep.subr.mxu0 0.0
        %1533 = vmatpush1.xpose.msra.mxu0 0.0
        %1534 = vmatprep.subr.mxu0 0.0
        %1535 = vmatpush1.xpose.msra.mxu0 %v1502
        %1536 = vmatprep.subr.mxu0 0.0
        %1537 = vmatpush2.xpose.msra.mxu0 0.0
        %1538 = vmatprep.subr.mxu0 0.0
        %1539 = vmatpush2.xpose.msra.mxu0 0.0
        %1540 = vmatprep.subr.mxu0 0.0
        %1541 = vmatpush2.xpose.msra.mxu0 0.0
        %1542 = vmatprep.subr.mxu0 0.0
        %1543 = vmatpush2.xpose.msra.mxu0 0.0
        %1544 = vmatprep.subr.mxu0 0.0
        %1545 = vmatpush2.xpose.msra.mxu0 0.0
        %1546 = vmatprep.subr.mxu0 0.0
        %1547 = vmatpush2.xpose.msra.mxu0 0.0
        %1548 = vmatprep.subr.mxu0 0.0
        %1549 = vmatpush2.xpose.msra.mxu0 0.0
        %1550 = vmatprep.subr.mxu0 0.0
        %1551 = vmatpush2.xpose.msra.mxu0 0.0
        %1552 = vmatprep.subr.mxu0 0.0
        %1553 = vmatpush2.xpose.msra.mxu0 0.0
        %1554 = vmatprep.subr.mxu0 0.0
        %1555 = vmatpush2.xpose.msra.mxu0 0.0
        %1556 = vmatprep.subr.mxu0 0.0
        %1557 = vmatpush2.xpose.msra.mxu0 0.0
        %1558 = vmatprep.subr.mxu0 0.0
        %1559 = vmatpush2.xpose.msra.mxu0 0.0
        %1560 = vmatprep.subr.mxu0 0.0
        %1561 = vmatpush2.xpose.msra.mxu0 0.0
        %1562 = vmatprep.subr.mxu0 0.0
        %1563 = vmatpush2.xpose.msra.mxu0 0.0
        %1564 = vmatprep.subr.mxu0 0.0
        %1565 = vmatpush2.xpose.msra.mxu0 0.0
        %1566 = vmatprep.subr.mxu0 0.0
        %1567 = vmatpush2.xpose.msra.mxu0 0.0
        %1568 = vmatprep.mubr.f32.mxu0 0.0
        %1569 = vmatmul.mubr.f32.gmra.mxu0 %v1500
        %v1570 = vpop.f32.mrf.mxu0
        %v1571 = vadd.f32 0.0, %v1570
        %v1572 = vpop.f32.mrf.mxu0
        %1573 = vdwg.mxu0
        %v1574 = vmul.f32 %v1571, 0.35355338
        %v1575 = vsel %vm781, %v1574, -inf
        %1576 = vmax.xlane.f32.xlu0 %v1575
        %v1577 = vpop.xlane.xlu0 %1576
        %v1578 = vsub.f32 %v1574, %v1577
        %v1579 = vmul.f32 %v1578, 1.442695
        %v1580 = vpow.pop %v1579
        %v1581 = vsel %vm781, %v1580, 0.0
        %1582 = vadd.xlane.f32.xlu0 %v1581
        %v1583 = vpop.xlane.xlu0 %1582
        %v1584 = vrcp.pop %v1583
        %v1585 = vmul.f32 %v1580, %v1584
        %1586 = vrot.lane.b32.xlu0 %v773, 104
        %v1587 = vpop.permute.xlu0 %1586
        %v1590 = vsel %vm781, %v1585, 0
        %1592 = vmatprep.subr.mxu0 0.0
        %1593 = vmatpush1.msra.mxu0 0.0
        %1594 = vmatprep.subr.mxu0 0.0
        %1595 = vmatpush1.msra.mxu0 0.0
        %1596 = vmatprep.subr.mxu0 0.0
        %1597 = vmatpush1.msra.mxu0 0.0
        %1598 = vmatprep.subr.mxu0 0.0
        %1599 = vmatpush1.msra.mxu0 0.0
        %1600 = vmatprep.subr.mxu0 0.0
        %1601 = vmatpush1.msra.mxu0 0.0
        %1602 = vmatprep.subr.mxu0 0.0
        %1603 = vmatpush1.msra.mxu0 0.0
        %1604 = vmatprep.subr.mxu0 0.0
        %1605 = vmatpush1.msra.mxu0 0.0
        %1606 = vmatprep.subr.mxu0 0.0
        %1607 = vmatpush1.msra.mxu0 0.0
        %1608 = vmatprep.subr.mxu0 0.0
        %1609 = vmatpush1.msra.mxu0 0.0
        %1610 = vmatprep.subr.mxu0 0.0
        %1611 = vmatpush1.msra.mxu0 0.0
        %1612 = vmatprep.subr.mxu0 0.0
        %1613 = vmatpush1.msra.mxu0 0.0
        %1614 = vmatprep.subr.mxu0 0.0
        %1615 = vmatpush1.msra.mxu0 0.0
        %1616 = vmatprep.subr.mxu0 0.0
        %1617 = vmatpush1.msra.mxu0 0.0
        %1618 = vmatprep.subr.mxu0 0.0
        %1619 = vmatpush1.msra.mxu0 0.0
        %1620 = vmatprep.subr.mxu0 0.0
        %1621 = vmatpush1.msra.mxu0 0.0
        %1622 = vmatprep.subr.mxu0 0.0
        %1623 = vmatpush1.msra.mxu0 %v1587
        %1624 = vmatprep.subr.mxu0 0.0
        %1625 = vmatpush2.msra.mxu0 0.0
        %1626 = vmatprep.subr.mxu0 0.0
        %1627 = vmatpush2.msra.mxu0 0.0
        %1628 = vmatprep.subr.mxu0 0.0
        %1629 = vmatpush2.msra.mxu0 0.0
        %1630 = vmatprep.subr.mxu0 0.0
        %1631 = vmatpush2.msra.mxu0 0.0
        %1632 = vmatprep.subr.mxu0 0.0
        %1633 = vmatpush2.msra.mxu0 0.0
        %1634 = vmatprep.subr.mxu0 0.0
        %1635 = vmatpush2.msra.mxu0 0.0
        %1636 = vmatprep.subr.mxu0 0.0
        %1637 = vmatpush2.msra.mxu0 0.0
        %1638 = vmatprep.subr.mxu0 0.0
        %1639 = vmatpush2.msra.mxu0 0.0
        %1640 = vmatprep.subr.mxu0 0.0
        %1641 = vmatpush2.msra.mxu0 0.0
        %1642 = vmatprep.subr.mxu0 0.0
        %1643 = vmatpush2.msra.mxu0 0.0
        %1644 = vmatprep.subr.mxu0 0.0
        %1645 = vmatpush2.msra.mxu0 0.0
        %1646 = vmatprep.subr.mxu0 0.0
        %1647 = vmatpush2.msra.mxu0 0.0
        %1648 = vmatprep.subr.mxu0 0.0
        %1649 = vmatpush2.msra.mxu0 0.0
        %1650 = vmatprep.subr.mxu0 0.0
        %1651 = vmatpush2.msra.mxu0 0.0
        %1652 = vmatprep.subr.mxu0 0.0
        %1653 = vmatpush2.msra.mxu0 0.0
        %1654 = vmatprep.subr.mxu0 0.0
        %1655 = vmatpush2.msra.mxu0 0.0
        %1656 = vmatprep.mubr.f32.mxu0 0.0
        %1657 = vmatmul.mubr.f32.gmra.mxu0 %v1590
        %v1658 = vpop.f32.mrf.mxu0
        %v1659 = vadd.f32 0.0, %v1658
        %v1660 = vpop.f32.mrf.mxu0
        %1661 = vdwg.mxu0
        %v1663 = vsel %vm781, %v1659, 0
        %1665 = vmatprep.subr.mxu0 0.0
        %1666 = vmatpush1.msra.mxu0 0.0
        %1667 = vmatprep.subr.mxu0 0.0
        %1668 = vmatpush1.msra.mxu0 0.0
        %1669 = vmatprep.subr.mxu0 0.0
        %1670 = vmatpush1.msra.mxu0 0.0
        %1671 = vmatprep.subr.mxu0 0.0
        %1672 = vmatpush1.msra.mxu0 0.0
        %1673 = vmatprep.subr.mxu0 0.0
        %1674 = vmatpush1.msra.mxu0 0.0
        %1675 = vmatprep.subr.mxu0 0.0
        %1676 = vmatpush1.msra.mxu0 0.0
        %1677 = vmatprep.subr.mxu0 0.0
        %1678 = vmatpush1.msra.mxu0 0.0
        %1679 = vmatprep.subr.mxu0 0.0
        %1680 = vmatpush1.msra.mxu0 0.0
        %1681 = vmatprep.subr.mxu0 0.0
        %1682 = vmatpush1.msra.mxu0 0.0
        %1683 = vmatprep.subr.mxu0 0.0
        %1684 = vmatpush1.msra.mxu0 0.0
        %1685 = vmatprep.subr.mxu0 0.0
        %1686 = vmatpush1.msra.mxu0 0.0
        %1687 = vmatprep.subr.mxu0 0.0
        %1688 = vmatpush1.msra.mxu0 0.0
        %1689 = vmatprep.subr.mxu0 0.0
        %1690 = vmatpush1.msra.mxu0 0.0
        %1691 = vmatprep.subr.mxu0 0.0
        %1692 = vmatpush1.msra.mxu0 0.0
        %1693 = vmatprep.subr.mxu0 0.0
        %1694 = vmatpush1.msra.mxu0 0.0
        %1695 = vmatprep.subr.mxu0 0.0
        %1696 = vmatpush1.msra.mxu0 %v780
        %1697 = vmatprep.subr.mxu0 0.0
        %1698 = vmatpush2.msra.mxu0 0.0
        %1699 = vmatprep.subr.mxu0 0.0
        %1700 = vmatpush2.msra.mxu0 0.0
        %1701 = vmatprep.subr.mxu0 0.0
        %1702 = vmatpush2.msra.mxu0 0.0
        %1703 = vmatprep.subr.mxu0 0.0
        %1704 = vmatpush2.msra.mxu0 0.0
        %1705 = vmatprep.subr.mxu0 0.0
        %1706 = vmatpush2.msra.mxu0 0.0
        %1707 = vmatprep.subr.mxu0 0.0
        %1708 = vmatpush2.msra.mxu0 0.0
        %1709 = vmatprep.subr.mxu0 0.0
        %1710 = vmatpush2.msra.mxu0 0.0
        %1711 = vmatprep.subr.mxu0 0.0
        %1712 = vmatpush2.msra.mxu0 0.0
        %1713 = vmatprep.subr.mxu0 0.0
        %1714 = vmatpush2.msra.mxu0 0.0
        %1715 = vmatprep.subr.mxu0 0.0
        %1716 = vmatpush2.msra.mxu0 0.0
        %1717 = vmatprep.subr.mxu0 0.0
        %1718 = vmatpush2.msra.mxu0 0.0
        %1719 = vmatprep.subr.mxu0 0.0
        %1720 = vmatpush2.msra.mxu0 0.0
        %1721 = vmatprep.subr.mxu0 0.0
        %1722 = vmatpush2.msra.mxu0 0.0
        %1723 = vmatprep.subr.mxu0 0.0
        %1724 = vmatpush2.msra.mxu0 0.0
        %1725 = vmatprep.subr.mxu0 0.0
        %1726 = vmatpush2.msra.mxu0 0.0
        %1727 = vmatprep.subr.mxu0 0.0
        %1728 = vmatpush2.msra.mxu0 0.0
        %1729 = vmatprep.mubr.f32.mxu0 0.0
        %1730 = vmatmul.mubr.f32.gmra.mxu0 %v1663
        %v1731 = vpop.f32.mrf.mxu0
        %v1732 = vadd.f32 0.0, %v1731
        %v1733 = vpop.f32.mrf.mxu0
        %1734 = vdwg.mxu0
        %v1735 = vadd.f32 %v1495, %v1732
        %s1736 = scalar_lea.vmem %s6, 3
        %v1737 = vld [vmem:[%s1736] sm:$0x1]
        %v1739 = vlaneseq
        %v1740 = vshrl.u32 %v1739, 7
        %v1741 = vsub.s32 0, %v1740
        %v1742 = vrot.slane %v1737, %v1741
        %v1744 = vadd.f32 %v1735, %v1742
        %v1745 = vadd.f32 %v525, %v1744
        %v1746 = vsel %vm495, %v1745, 0.0
        %1747 = vadd.xlane.f32.xlu0 %v1746
        %v1748 = vpop.xlane.xlu0 %1747
        %v1749 = vmul.f32 %v1748, %v499
        %v1750 = vsub.f32 %v1745, %v1749
        %v1751 = vmul.f32 %v1750, %v1750
        %v1752 = vsel %vm495, %v1751, 0.0
        %1753 = vadd.xlane.f32.xlu0 %v1752
        %v1754 = vpop.xlane.xlu0 %1753
        %v1755 = vmul.f32 %v1754, %v499
        %v1756 = vadd.f32 %v1755, 1e-05
        %v1757 = vrsqrt.pop %v1756
        %v1758 = vmul.f32 %v1750, %v1757
        %s1759 = scalar_lea.vmem %s3, 1
        %v1760 = vld [vmem:[%s1759] sm:$0x1]
        %v1762 = vlaneseq
        %v1763 = vshrl.u32 %v1762, 7
        %v1764 = vsub.s32 0, %v1763
        %v1765 = vrot.slane %v1760, %v1764
        %v1767 = vmul.f32 %v1758, %v1765
        %s1768 = scalar_lea.vmem %s4, 1
        %v1769 = vld [vmem:[%s1768] sm:$0x1]
        %v1771 = vlaneseq
        %v1772 = vshrl.u32 %v1771, 7
        %v1773 = vsub.s32 0, %v1772
        %v1774 = vrot.slane %v1769, %v1773
        %v1776 = vadd.f32 %v1767, %v1774
        %s1777 = scalar_lea.vmem %s5, 128
        %v1778 = vld [vmem:[%s1777] sm:$0xff]
        %v1779 = vld [vmem:[%s1777 + $0x8] sm:$0xff]
        %v1780 = vld [vmem:[%s1777 + $0x10] sm:$0xff]
        %v1781 = vld [vmem:[%s1777 + $0x18] sm:$0xff]
        %s1782 = scalar_lea.vmem %s6, 4
        %v1783 = vld [vmem:[%s1782] sm:$0x1]
        %v1785 = vlaneseq
        %v1786 = vshrl.u32 %v1785, 7
        %v1787 = vsub.s32 0, %v1786
        %v1788 = vrot.slane %v1783, %v1787
        %v1791 = vsel %vm495, %v1776, 0
        %1793 = vmatprep.subr.mxu0 0.0
        %1794 = vmatpush1.msra.mxu0 0.0
        %1795 = vmatprep.subr.mxu0 0.0
        %1796 = vmatpush1.msra.mxu0 0.0
        %1797 = vmatprep.subr.mxu0 0.0
        %1798 = vmatpush1.msra.mxu0 0.0
        %1799 = vmatprep.subr.mxu0 0.0
        %1800 = vmatpush1.msra.mxu0 0.0
        %1801 = vmatprep.subr.mxu0 0.0
        %1802 = vmatpush1.msra.mxu0 0.0
        %1803 = vmatprep.subr.mxu0 0.0
        %1804 = vmatpush1.msra.mxu0 0.0
        %1805 = vmatprep.subr.mxu0 0.0
        %1806 = vmatpush1.msra.mxu0 0.0
        %1807 = vmatprep.subr.mxu0 0.0
        %1808 = vmatpush1.msra.mxu0 0.0
        %1809 = vmatprep.subr.mxu0 0.0
        %1810 = vmatpush1.msra.mxu0 0.0
        %1811 = vmatprep.subr.mxu0 0.0
        %1812 = vmatpush1.msra.mxu0 0.0
        %1813 = vmatprep.subr.mxu0 0.0
        %1814 = vmatpush1.msra.mxu0 0.0
        %1815 = vmatprep.subr.mxu0 0.0
        %1816 = vmatpush1.msra.mxu0 0.0
        %1817 = vmatprep.subr.mxu0 0.0
        %1818 = vmatpush1.msra.mxu0 %v1781
        %1819 = vmatprep.subr.mxu0 0.0
        %1820 = vmatpush1.msra.mxu0 %v1780
        %1821 = vmatprep.subr.mxu0 0.0
        %1822 = vmatpush1.msra.mxu0 %v1779
        %1823 = vmatprep.subr.mxu0 0.0
        %1824 = vmatpush1.msra.mxu0 %v1778
        %1825 = vmatprep.subr.mxu0 0.0
        %1826 = vmatpush2.msra.mxu0 0.0
        %1827 = vmatprep.subr.mxu0 0.0
        %1828 = vmatpush2.msra.mxu0 0.0
        %1829 = vmatprep.subr.mxu0 0.0
        %1830 = vmatpush2.msra.mxu0 0.0
        %1831 = vmatprep.subr.mxu0 0.0
        %1832 = vmatpush2.msra.mxu0 0.0
        %1833 = vmatprep.subr.mxu0 0.0
        %1834 = vmatpush2.msra.mxu0 0.0
        %1835 = vmatprep.subr.mxu0 0.0
        %1836 = vmatpush2.msra.mxu0 0.0
        %1837 = vmatprep.subr.mxu0 0.0
        %1838 = vmatpush2.msra.mxu0 0.0
        %1839 = vmatprep.subr.mxu0 0.0
        %1840 = vmatpush2.msra.mxu0 0.0
        %1841 = vmatprep.subr.mxu0 0.0
        %1842 = vmatpush2.msra.mxu0 0.0
        %1843 = vmatprep.subr.mxu0 0.0
        %1844 = vmatpush2.msra.mxu0 0.0
        %1845 = vmatprep.subr.mxu0 0.0
        %1846 = vmatpush2.msra.mxu0 0.0
        %1847 = vmatprep.subr.mxu0 0.0
        %1848 = vmatpush2.msra.mxu0 0.0
        %1849 = vmatprep.subr.mxu0 0.0
        %1850 = vmatpush2.msra.mxu0 0.0
        %1851 = vmatprep.subr.mxu0 0.0
        %1852 = vmatpush2.msra.mxu0 0.0
        %1853 = vmatprep.subr.mxu0 0.0
        %1854 = vmatpush2.msra.mxu0 0.0
        %1855 = vmatprep.subr.mxu0 0.0
        %1856 = vmatpush2.msra.mxu0 0.0
        %1857 = vmatprep.mubr.f32.mxu0 0.0
        %1858 = vmatmul.mubr.f32.gmra.mxu0 %v1791
        %v1859 = vpop.f32.mrf.mxu0
        %v1860 = vadd.f32 %v1788, %v1859
        %v1861 = vpop.f32.mrf.mxu0
        %1862 = vdwg.mxu0
        %s1863 = scalar_lea.vmem %s5, 160
        %v1864 = vld [vmem:[%s1863] sm:$0xff]
        %v1865 = vld [vmem:[%s1863 + $0x8] sm:$0xff]
        %v1866 = vld [vmem:[%s1863 + $0x10] sm:$0xff]
        %v1867 = vld [vmem:[%s1863 + $0x18] sm:$0xff]
        %s1868 = scalar_lea.vmem %s6, 5
        %v1869 = vld [vmem:[%s1868] sm:$0x1]
        %v1871 = vlaneseq
        %v1872 = vshrl.u32 %v1871, 7
        %v1873 = vsub.s32 0, %v1872
        %v1874 = vrot.slane %v1869, %v1873
        %v1877 = vsel %vm495, %v491, 0
        %v1880 = vsel %vm495, %v492, 0
        %1882 = vmatprep.subr.mxu0 0.0
        %1883 = vmatpush1.msra.mxu0 0.0
        %1884 = vmatprep.subr.mxu0 0.0
        %1885 = vmatpush1.msra.mxu0 0.0
        %1886 = vmatprep.subr.mxu0 0.0
        %1887 = vmatpush1.msra.mxu0 0.0
        %1888 = vmatprep.subr.mxu0 0.0
        %1889 = vmatpush1.msra.mxu0 0.0
        %1890 = vmatprep.subr.mxu0 0.0
        %1891 = vmatpush1.msra.mxu0 0.0
        %1892 = vmatprep.subr.mxu0 0.0
        %1893 = vmatpush1.msra.mxu0 0.0
        %1894 = vmatprep.subr.mxu0 0.0
        %1895 = vmatpush1.msra.mxu0 0.0
        %1896 = vmatprep.subr.mxu0 0.0
        %1897 = vmatpush1.msra.mxu0 0.0
        %1898 = vmatprep.subr.mxu0 0.0
        %1899 = vmatpush1.msra.mxu0 0.0
        %1900 = vmatprep.subr.mxu0 0.0
        %1901 = vmatpush1.msra.mxu0 0.0
        %1902 = vmatprep.subr.mxu0 0.0
        %1903 = vmatpush1.msra.mxu0 0.0
        %1904 = vmatprep.subr.mxu0 0.0
        %1905 = vmatpush1.msra.mxu0 0.0
        %1906 = vmatprep.subr.mxu0 0.0
        %1907 = vmatpush1.msra.mxu0 %v1867
        %1908 = vmatprep.subr.mxu0 0.0
        %1909 = vmatpush1.msra.mxu0 %v1866
        %1910 = vmatprep.subr.mxu0 0.0
        %1911 = vmatpush1.msra.mxu0 %v1865
        %1912 = vmatprep.subr.mxu0 0.0
        %1913 = vmatpush1.msra.mxu0 %v1864
        %1914 = vmatprep.subr.mxu0 0.0
        %1915 = vmatpush2.msra.mxu0 0.0
        %1916 = vmatprep.subr.mxu0 0.0
        %1917 = vmatpush2.msra.mxu0 0.0
        %1918 = vmatprep.subr.mxu0 0.0
        %1919 = vmatpush2.msra.mxu0 0.0
        %1920 = vmatprep.subr.mxu0 0.0
        %1921 = vmatpush2.msra.mxu0 0.0
        %1922 = vmatprep.subr.mxu0 0.0
        %1923 = vmatpush2.msra.mxu0 0.0
        %1924 = vmatprep.subr.mxu0 0.0
        %1925 = vmatpush2.msra.mxu0 0.0
        %1926 = vmatprep.subr.mxu0 0.0
        %1927 = vmatpush2.msra.mxu0 0.0
        %1928 = vmatprep.subr.mxu0 0.0
        %1929 = vmatpush2.msra.mxu0 0.0
        %1930 = vmatprep.subr.mxu0 0.0
        %1931 = vmatpush2.msra.mxu0 0.0
        %1932 = vmatprep.subr.mxu0 0.0
        %1933 = vmatpush2.msra.mxu0 0.0
        %1934 = vmatprep.subr.mxu0 0.0
        %1935 = vmatpush2.msra.mxu0 0.0
        %1936 = vmatprep.subr.mxu0 0.0
        %1937 = vmatpush2.msra.mxu0 0.0
        %1938 = vmatprep.subr.mxu0 0.0
        %1939 = vmatpush2.msra.mxu0 0.0
        %1940 = vmatprep.subr.mxu0 0.0
        %1941 = vmatpush2.msra.mxu0 0.0
        %1942 = vmatprep.subr.mxu0 0.0
        %1943 = vmatpush2.msra.mxu0 0.0
        %1944 = vmatprep.subr.mxu0 0.0
        %1945 = vmatpush2.msra.mxu0 0.0
        %1946 = vmatprep.mubr.f32.mxu0 0.0
        %1947 = vmatmul.mubr.f32.gmra.mxu0 %v1877
        %v1948 = vpop.f32.mrf.mxu0
        %v1949 = vadd.f32 %v1874, %v1948
        %v1950 = vpop.f32.mrf.mxu0
        %1951 = vmatprep.mubr.f32.mxu0 0.0
        %1952 = vmatmul.mubr.f32.gmra.mxu0 %v1880
        %v1953 = vpop.f32.mrf.mxu0
        %v1954 = vadd.f32 %v1874, %v1953
        %v1955 = vpop.f32.mrf.mxu0
        %1956 = vdwg.mxu0
        %s1957 = scalar_lea.vmem %s5, 192
        %v1958 = vld [vmem:[%s1957] sm:$0xff]
        %v1959 = vld [vmem:[%s1957 + $0x8] sm:$0xff]
        %v1960 = vld [vmem:[%s1957 + $0x10] sm:$0xff]
        %v1961 = vld [vmem:[%s1957 + $0x18] sm:$0xff]
        %s1962 = scalar_lea.vmem %s6, 6
        %v1963 = vld [vmem:[%s1962] sm:$0x1]
        %v1965 = vlaneseq
        %v1966 = vshrl.u32 %v1965, 7
        %v1967 = vsub.s32 0, %v1966
        %v1968 = vrot.slane %v1963, %v1967
        %1970 = vmatprep.subr.mxu0 0.0
        %1971 = vmatpush1.msra.mxu0 0.0
        %1972 = vmatprep.subr.mxu0 0.0
        %1973 = vmatpush1.msra.mxu0 0.0
        %1974 = vmatprep.subr.mxu0 0.0
        %1975 = vmatpush1.msra.mxu0 0.0
        %1976 = vmatprep.subr.mxu0 0.0
        %1977 = vmatpush1.msra.mxu0 0.0
        %1978 = vmatprep.subr.mxu0 0.0
        %1979 = vmatpush1.msra.mxu0 0.0
        %1980 = vmatprep.subr.mxu0 0.0
        %1981 = vmatpush1.msra.mxu0 0.0
        %1982 = vmatprep.subr.mxu0 0.0
        %1983 = vmatpush1.msra.mxu0 0.0
        %1984 = vmatprep.subr.mxu0 0.0
        %1985 = vmatpush1.msra.mxu0 0.0
        %1986 = vmatprep.subr.mxu0 0.0
        %1987 = vmatpush1.msra.mxu0 0.0
        %1988 = vmatprep.subr.mxu0 0.0
        %1989 = vmatpush1.msra.mxu0 0.0
        %1990 = vmatprep.subr.mxu0 0.0
        %1991 = vmatpush1.msra.mxu0 0.0
        %1992 = vmatprep.subr.mxu0 0.0
        %1993 = vmatpush1.msra.mxu0 0.0
        %1994 = vmatprep.subr.mxu0 0.0
        %1995 = vmatpush1.msra.mxu0 %v1961
        %1996 = vmatprep.subr.mxu0 0.0
        %1997 = vmatpush1.msra.mxu0 %v1960
        %1998 = vmatprep.subr.mxu0 0.0
        %1999 = vmatpush1.msra.mxu0 %v1959
        %2000 = vmatprep.subr.mxu0 0.0
        %2001 = vmatpush1.msra.mxu0 %v1958
        %2002 = vmatprep.subr.mxu0 0.0
        %2003 = vmatpush2.msra.mxu0 0.0
        %2004 = vmatprep.subr.mxu0 0.0
        %2005 = vmatpush2.msra.mxu0 0.0
        %2006 = vmatprep.subr.mxu0 0.0
        %2007 = vmatpush2.msra.mxu0 0.0
        %2008 = vmatprep.subr.mxu0 0.0
        %2009 = vmatpush2.msra.mxu0 0.0
        %2010 = vmatprep.subr.mxu0 0.0
        %2011 = vmatpush2.msra.mxu0 0.0
        %2012 = vmatprep.subr.mxu0 0.0
        %2013 = vmatpush2.msra.mxu0 0.0
        %2014 = vmatprep.subr.mxu0 0.0
        %2015 = vmatpush2.msra.mxu0 0.0
        %2016 = vmatprep.subr.mxu0 0.0
        %2017 = vmatpush2.msra.mxu0 0.0
        %2018 = vmatprep.subr.mxu0 0.0
        %2019 = vmatpush2.msra.mxu0 0.0
        %2020 = vmatprep.subr.mxu0 0.0
        %2021 = vmatpush2.msra.mxu0 0.0
        %2022 = vmatprep.subr.mxu0 0.0
        %2023 = vmatpush2.msra.mxu0 0.0
        %2024 = vmatprep.subr.mxu0 0.0
        %2025 = vmatpush2.msra.mxu0 0.0
        %2026 = vmatprep.subr.mxu0 0.0
        %2027 = vmatpush2.msra.mxu0 0.0
        %2028 = vmatprep.subr.mxu0 0.0
        %2029 = vmatpush2.msra.mxu0 0.0
        %2030 = vmatprep.subr.mxu0 0.0
        %2031 = vmatpush2.msra.mxu0 0.0
        %2032 = vmatprep.subr.mxu0 0.0
        %2033 = vmatpush2.msra.mxu0 0.0
        %2034 = vmatprep.mubr.f32.mxu0 0.0
        %2035 = vmatmul.mubr.f32.gmra.mxu0 %v1877
        %v2036 = vpop.f32.mrf.mxu0
        %v2037 = vadd.f32 %v1968, %v2036
        %v2038 = vpop.f32.mrf.mxu0
        %2039 = vmatprep.mubr.f32.mxu0 0.0
        %2040 = vmatmul.mubr.f32.gmra.mxu0 %v1880
        %v2041 = vpop.f32.mrf.mxu0
        %v2042 = vadd.f32 %v1968, %v2041
        %v2043 = vpop.f32.mrf.mxu0
        %2044 = vdwg.mxu0
        %s2045 = scalar_lea.vmem %s5, 224
        %v2046 = vld [vmem:[%s2045] sm:$0xff]
        %v2047 = vld [vmem:[%s2045 + $0x8] sm:$0xff]
        %v2048 = vld [vmem:[%s2045 + $0x10] sm:$0xff]
        %v2049 = vld [vmem:[%s2045 + $0x18] sm:$0xff]
        %v2051 = vsel %vm781, %v1860, 0
        %v2054 = vsel %vm781, %v1949, 0
        %v2057 = vsel %vm781, %v1954, 0
        %2059 = vmatprep.subr.mxu0 0.0
        %2060 = vmatpush1.xpose.msra.mxu0 0.0
        %2061 = vmatprep.subr.mxu0 0.0
        %2062 = vmatpush1.xpose.msra.mxu0 0.0
        %2063 = vmatprep.subr.mxu0 0.0
        %2064 = vmatpush1.xpose.msra.mxu0 0.0
        %2065 = vmatprep.subr.mxu0 0.0
        %2066 = vmatpush1.xpose.msra.mxu0 0.0
        %2067 = vmatprep.subr.mxu0 0.0
        %2068 = vmatpush1.xpose.msra.mxu0 0.0
        %2069 = vmatprep.subr.mxu0 0.0
        %2070 = vmatpush1.xpose.msra.mxu0 0.0
        %2071 = vmatprep.subr.mxu0 0.0
        %2072 = vmatpush1.xpose.msra.mxu0 0.0
        %2073 = vmatprep.subr.mxu0 0.0
        %2074 = vmatpush1.xpose.msra.mxu0 0.0
        %2075 = vmatprep.subr.mxu0 0.0
        %2076 = vmatpush1.xpose.msra.mxu0 0.0
        %2077 = vmatprep.subr.mxu0 0.0
        %2078 = vmatpush1.xpose.msra.mxu0 0.0
        %2079 = vmatprep.subr.mxu0 0.0
        %2080 = vmatpush1.xpose.msra.mxu0 0.0
        %2081 = vmatprep.subr.mxu0 0.0
        %2082 = vmatpush1.xpose.msra.mxu0 0.0
        %2083 = vmatprep.subr.mxu0 0.0
        %2084 = vmatpush1.xpose.msra.mxu0 0.0
        %2085 = vmatprep.subr.mxu0 0.0
        %2086 = vmatpush1.xpose.msra.mxu0 0.0
        %2087 = vmatprep.subr.mxu0 0.0
        %2088 = vmatpush1.xpose.msra.mxu0 %v2057
        %2089 = vmatprep.subr.mxu0 0.0
        %2090 = vmatpush1.xpose.msra.mxu0 %v2054
        %2091 = vmatprep.subr.mxu0 0.0
        %2092 = vmatpush2.xpose.msra.mxu0 0.0
        %2093 = vmatprep.subr.mxu0 0.0
        %2094 = vmatpush2.xpose.msra.mxu0 0.0
        %2095 = vmatprep.subr.mxu0 0.0
        %2096 = vmatpush2.xpose.msra.mxu0 0.0
        %2097 = vmatprep.subr.mxu0 0.0
        %2098 = vmatpush2.xpose.msra.mxu0 0.0
        %2099 = vmatprep.subr.mxu0 0.0
        %2100 = vmatpush2.xpose.msra.mxu0 0.0
        %2101 = vmatprep.subr.mxu0 0.0
        %2102 = vmatpush2.xpose.msra.mxu0 0.0
        %2103 = vmatprep.subr.mxu0 0.0
        %2104 = vmatpush2.xpose.msra.mxu0 0.0
        %2105 = vmatprep.subr.mxu0 0.0
        %2106 = vmatpush2.xpose.msra.mxu0 0.0
        %2107 = vmatprep.subr.mxu0 0.0
        %2108 = vmatpush2.xpose.msra.mxu0 0.0
        %2109 = vmatprep.subr.mxu0 0.0
        %2110 = vmatpush2.xpose.msra.mxu0 0.0
        %2111 = vmatprep.subr.mxu0 0.0
        %2112 = vmatpush2.xpose.msra.mxu0 0.0
        %2113 = vmatprep.subr.mxu0 0.0
        %2114 = vmatpush2.xpose.msra.mxu0 0.0
        %2115 = vmatprep.subr.mxu0 0.0
        %2116 = vmatpush2.xpose.msra.mxu0 0.0
        %2117 = vmatprep.subr.mxu0 0.0
        %2118 = vmatpush2.xpose.msra.mxu0 0.0
        %2119 = vmatprep.subr.mxu0 0.0
        %2120 = vmatpush2.xpose.msra.mxu0 0.0
        %2121 = vmatprep.subr.mxu0 0.0
        %2122 = vmatpush2.xpose.msra.mxu0 0.0
        %2123 = vmatprep.mubr.f32.mxu0 0.0
        %2124 = vmatmul.mubr.f32.gmra.mxu0 %v2051
        %v2125 = vpop.f32.mrf.mxu0
        %v2126 = vadd.f32 0.0, %v2125
        %v2127 = vpop.f32.mrf.mxu0
        %2128 = vdwg.mxu0
        %v2129 = vmul.f32 %v2126, 0.35355338
        %vm2130 = vcmask 130048
        %v2131 = vsel %vm2130, %v2129, -inf
        %2132 = vmax.xlane.f32.xlu0 %v2131
        %v2133 = vpop.xlane.xlu0 %2132
        %v2134 = vsub.f32 %v2129, %v2133
        %v2135 = vmul.f32 %v2134, 1.442695
        %v2136 = vpow.pop %v2135
        %v2137 = vsel %vm2130, %v2136, 0.0
        %2138 = vadd.xlane.f32.xlu0 %v2137
        %v2139 = vpop.xlane.xlu0 %2138
        %v2140 = vrcp.pop %v2139
        %v2141 = vmul.f32 %v2136, %v2140
        %v2143 = vsel %vm2130, %v2141, 0
        %2145 = vmatprep.subr.mxu0 0.0
        %2146 = vmatpush1.msra.mxu0 0.0
        %2147 = vmatprep.subr.mxu0 0.0
        %2148 = vmatpush1.msra.mxu0 0.0
        %2149 = vmatprep.subr.mxu0 0.0
        %2150 = vmatpush1.msra.mxu0 0.0
        %2151 = vmatprep.subr.mxu0 0.0
        %2152 = vmatpush1.msra.mxu0 0.0
        %2153 = vmatprep.subr.mxu0 0.0
        %2154 = vmatpush1.msra.mxu0 0.0
        %2155 = vmatprep.subr.mxu0 0.0
        %2156 = vmatpush1.msra.mxu0 0.0
        %2157 = vmatprep.subr.mxu0 0.0
        %2158 = vmatpush1.msra.mxu0 0.0
        %2159 = vmatprep.subr.mxu0 0.0
        %2160 = vmatpush1.msra.mxu0 0.0
        %2161 = vmatprep.subr.mxu0 0.0
        %2162 = vmatpush1.msra.mxu0 0.0
        %2163 = vmatprep.subr.mxu0 0.0
        %2164 = vmatpush1.msra.mxu0 0.0
        %2165 = vmatprep.subr.mxu0 0.0
        %2166 = vmatpush1.msra.mxu0 0.0
        %2167 = vmatprep.subr.mxu0 0.0
        %2168 = vmatpush1.msra.mxu0 0.0
        %2169 = vmatprep.subr.mxu0 0.0
        %2170 = vmatpush1.msra.mxu0 0.0
        %2171 = vmatprep.subr.mxu0 0.0
        %2172 = vmatpush1.msra.mxu0 0.0
        %2173 = vmatprep.subr.mxu0 0.0
        %2174 = vmatpush1.msra.mxu0 %v2042
        %2175 = vmatprep.subr.mxu0 0.0
        %2176 = vmatpush1.msra.mxu0 %v2037
        %2177 = vmatprep.subr.mxu0 0.0
        %2178 = vmatpush2.msra.mxu0 0.0
        %2179 = vmatprep.subr.mxu0 0.0
        %2180 = vmatpush2.msra.mxu0 0.0
        %2181 = vmatprep.subr.mxu0 0.0
        %2182 = vmatpush2.msra.mxu0 0.0
        %2183 = vmatprep.subr.mxu0 0.0
        %2184 = vmatpush2.msra.mxu0 0.0
        %2185 = vmatprep.subr.mxu0 0.0
        %2186 = vmatpush2.msra.mxu0 0.0
        %2187 = vmatprep.subr.mxu0 0.0
        %2188 = vmatpush2.msra.mxu0 0.0
        %2189 = vmatprep.subr.mxu0 0.0
        %2190 = vmatpush2.msra.mxu0 0.0
        %2191 = vmatprep.subr.mxu0 0.0
        %2192 = vmatpush2.msra.mxu0 0.0
        %2193 = vmatprep.subr.mxu0 0.0
        %2194 = vmatpush2.msra.mxu0 0.0
        %2195 = vmatprep.subr.mxu0 0.0
        %2196 = vmatpush2.msra.mxu0 0.0
        %2197 = vmatprep.subr.mxu0 0.0
        %2198 = vmatpush2.msra.mxu0 0.0
        %2199 = vmatprep.subr.mxu0 0.0
        %2200 = vmatpush2.msra.mxu0 0.0
        %2201 = vmatprep.subr.mxu0 0.0
        %2202 = vmatpush2.msra.mxu0 0.0
        %2203 = vmatprep.subr.mxu0 0.0
        %2204 = vmatpush2.msra.mxu0 0.0
        %2205 = vmatprep.subr.mxu0 0.0
        %2206 = vmatpush2.msra.mxu0 0.0
        %2207 = vmatprep.subr.mxu0 0.0
        %2208 = vmatpush2.msra.mxu0 0.0
        %2209 = vmatprep.mubr.f32.mxu0 0.0
        %2210 = vmatmul.mubr.f32.gmra.mxu0 %v2143
        %v2211 = vpop.f32.mrf.mxu0
        %v2212 = vadd.f32 0.0, %v2211
        %v2213 = vpop.f32.mrf.mxu0
        %2214 = vdwg.mxu0
        %2215 = vrot.lane.b32.xlu0 %v1860, 120
        %v2216 = vpop.permute.xlu0 %2215
        %2217 = vrot.lane.b32.xlu0 %v1949, 120
        %v2218 = vpop.permute.xlu0 %2217
        %2219 = vrot.lane.b32.xlu0 %v1954, 120
        %v2220 = vpop.permute.xlu0 %2219
        %v2221 = vsel %vm781, %v2216, 0
        %v2223 = vsel %vm781, %v2218, 0
        %v2225 = vsel %vm781, %v2220, 0
        %2227 = vmatprep.subr.mxu0 0.0
        %2228 = vmatpush1.xpose.msra.mxu0 0.0
        %2229 = vmatprep.subr.mxu0 0.0
        %2230 = vmatpush1.xpose.msra.mxu0 0.0
        %2231 = vmatprep.subr.mxu0 0.0
        %2232 = vmatpush1.xpose.msra.mxu0 0.0
        %2233 = vmatprep.subr.mxu0 0.0
        %2234 = vmatpush1.xpose.msra.mxu0 0.0
        %2235 = vmatprep.subr.mxu0 0.0
        %2236 = vmatpush1.xpose.msra.mxu0 0.0
        %2237 = vmatprep.subr.mxu0 0.0
        %2238 = vmatpush1.xpose.msra.mxu0 0.0
        %2239 = vmatprep.subr.mxu0 0.0
        %2240 = vmatpush1.xpose.msra.mxu0 0.0
        %2241 = vmatprep.subr.mxu0 0.0
        %2242 = vmatpush1.xpose.msra.mxu0 0.0
        %2243 = vmatprep.subr.mxu0 0.0
        %2244 = vmatpush1.xpose.msra.mxu0 0.0
        %2245 = vmatprep.subr.mxu0 0.0
        %2246 = vmatpush1.xpose.msra.mxu0 0.0
        %2247 = vmatprep.subr.mxu0 0.0
        %2248 = vmatpush1.xpose.msra.mxu0 0.0
        %2249 = vmatprep.subr.mxu0 0.0
        %2250 = vmatpush1.xpose.msra.mxu0 0.0
        %2251 = vmatprep.subr.mxu0 0.0
        %2252 = vmatpush1.xpose.msra.mxu0 0.0
        %2253 = vmatprep.subr.mxu0 0.0
        %2254 = vmatpush1.xpose.msra.mxu0 0.0
        %2255 = vmatprep.subr.mxu0 0.0
        %2256 = vmatpush1.xpose.msra.mxu0 %v2225
        %2257 = vmatprep.subr.mxu0 0.0
        %2258 = vmatpush1.xpose.msra.mxu0 %v2223
        %2259 = vmatprep.subr.mxu0 0.0
        %2260 = vmatpush2.xpose.msra.mxu0 0.0
        %2261 = vmatprep.subr.mxu0 0.0
        %2262 = vmatpush2.xpose.msra.mxu0 0.0
        %2263 = vmatprep.subr.mxu0 0.0
        %2264 = vmatpush2.xpose.msra.mxu0 0.0
        %2265 = vmatprep.subr.mxu0 0.0
        %2266 = vmatpush2.xpose.msra.mxu0 0.0
        %2267 = vmatprep.subr.mxu0 0.0
        %2268 = vmatpush2.xpose.msra.mxu0 0.0
        %2269 = vmatprep.subr.mxu0 0.0
        %2270 = vmatpush2.xpose.msra.mxu0 0.0
        %2271 = vmatprep.subr.mxu0 0.0
        %2272 = vmatpush2.xpose.msra.mxu0 0.0
        %2273 = vmatprep.subr.mxu0 0.0
        %2274 = vmatpush2.xpose.msra.mxu0 0.0
        %2275 = vmatprep.subr.mxu0 0.0
        %2276 = vmatpush2.xpose.msra.mxu0 0.0
        %2277 = vmatprep.subr.mxu0 0.0
        %2278 = vmatpush2.xpose.msra.mxu0 0.0
        %2279 = vmatprep.subr.mxu0 0.0
        %2280 = vmatpush2.xpose.msra.mxu0 0.0
        %2281 = vmatprep.subr.mxu0 0.0
        %2282 = vmatpush2.xpose.msra.mxu0 0.0
        %2283 = vmatprep.subr.mxu0 0.0
        %2284 = vmatpush2.xpose.msra.mxu0 0.0
        %2285 = vmatprep.subr.mxu0 0.0
        %2286 = vmatpush2.xpose.msra.mxu0 0.0
        %2287 = vmatprep.subr.mxu0 0.0
        %2288 = vmatpush2.xpose.msra.mxu0 0.0
        %2289 = vmatprep.subr.mxu0 0.0
        %2290 = vmatpush2.xpose.msra.mxu0 0.0
        %2291 = vmatprep.mubr.f32.mxu0 0.0
        %2292 = vmatmul.mubr.f32.gmra.mxu0 %v2221
        %v2293 = vpop.f32.mrf.mxu0
        %v2294 = vadd.f32 0.0, %v2293
        %v2295 = vpop.f32.mrf.mxu0
        %2296 = vdwg.mxu0
        %v2297 = vmul.f32 %v2294, 0.35355338
        %v2298 = vsel %vm2130, %v2297, -inf
        %2299 = vmax.xlane.f32.xlu0 %v2298
        %v2300 = vpop.xlane.xlu0 %2299
        %v2301 = vsub.f32 %v2297, %v2300
        %v2302 = vmul.f32 %v2301, 1.442695
        %v2303 = vpow.pop %v2302
        %v2304 = vsel %vm2130, %v2303, 0.0
        %2305 = vadd.xlane.f32.xlu0 %v2304
        %v2306 = vpop.xlane.xlu0 %2305
        %v2307 = vrcp.pop %v2306
        %v2308 = vmul.f32 %v2303, %v2307
        %2311 = vrot.lane.b32.xlu0 %v2037, 120
        %v2312 = vpop.permute.xlu0 %2311
        %2313 = vrot.lane.b32.xlu0 %v2042, 120
        %v2314 = vpop.permute.xlu0 %2313
        %v2318 = vsel %vm2130, %v2308, 0
        %2320 = vmatprep.subr.mxu0 0.0
        %2321 = vmatpush1.msra.mxu0 0.0
        %2322 = vmatprep.subr.mxu0 0.0
        %2323 = vmatpush1.msra.mxu0 0.0
        %2324 = vmatprep.subr.mxu0 0.0
        %2325 = vmatpush1.msra.mxu0 0.0
        %2326 = vmatprep.subr.mxu0 0.0
        %2327 = vmatpush1.msra.mxu0 0.0
        %2328 = vmatprep.subr.mxu0 0.0
        %2329 = vmatpush1.msra.mxu0 0.0
        %2330 = vmatprep.subr.mxu0 0.0
        %2331 = vmatpush1.msra.mxu0 0.0
        %2332 = vmatprep.subr.mxu0 0.0
        %2333 = vmatpush1.msra.mxu0 0.0
        %2334 = vmatprep.subr.mxu0 0.0
        %2335 = vmatpush1.msra.mxu0 0.0
        %2336 = vmatprep.subr.mxu0 0.0
        %2337 = vmatpush1.msra.mxu0 0.0
        %2338 = vmatprep.subr.mxu0 0.0
        %2339 = vmatpush1.msra.mxu0 0.0
        %2340 = vmatprep.subr.mxu0 0.0
        %2341 = vmatpush1.msra.mxu0 0.0
        %2342 = vmatprep.subr.mxu0 0.0
        %2343 = vmatpush1.msra.mxu0 0.0
        %2344 = vmatprep.subr.mxu0 0.0
        %2345 = vmatpush1.msra.mxu0 0.0
        %2346 = vmatprep.subr.mxu0 0.0
        %2347 = vmatpush1.msra.mxu0 0.0
        %2348 = vmatprep.subr.mxu0 0.0
        %2349 = vmatpush1.msra.mxu0 %v2314
        %2350 = vmatprep.subr.mxu0 0.0
        %2351 = vmatpush1.msra.mxu0 %v2312
        %2352 = vmatprep.subr.mxu0 0.0
        %2353 = vmatpush2.msra.mxu0 0.0
        %2354 = vmatprep.subr.mxu0 0.0
        %2355 = vmatpush2.msra.mxu0 0.0
        %2356 = vmatprep.subr.mxu0 0.0
        %2357 = vmatpush2.msra.mxu0 0.0
        %2358 = vmatprep.subr.mxu0 0.0
        %2359 = vmatpush2.msra.mxu0 0.0
        %2360 = vmatprep.subr.mxu0 0.0
        %2361 = vmatpush2.msra.mxu0 0.0
        %2362 = vmatprep.subr.mxu0 0.0
        %2363 = vmatpush2.msra.mxu0 0.0
        %2364 = vmatprep.subr.mxu0 0.0
        %2365 = vmatpush2.msra.mxu0 0.0
        %2366 = vmatprep.subr.mxu0 0.0
        %2367 = vmatpush2.msra.mxu0 0.0
        %2368 = vmatprep.subr.mxu0 0.0
        %2369 = vmatpush2.msra.mxu0 0.0
        %2370 = vmatprep.subr.mxu0 0.0
        %2371 = vmatpush2.msra.mxu0 0.0
        %2372 = vmatprep.subr.mxu0 0.0
        %2373 = vmatpush2.msra.mxu0 0.0
        %2374 = vmatprep.subr.mxu0 0.0
        %2375 = vmatpush2.msra.mxu0 0.0
        %2376 = vmatprep.subr.mxu0 0.0
        %2377 = vmatpush2.msra.mxu0 0.0
        %2378 = vmatprep.subr.mxu0 0.0
        %2379 = vmatpush2.msra.mxu0 0.0
        %2380 = vmatprep.subr.mxu0 0.0
        %2381 = vmatpush2.msra.mxu0 0.0
        %2382 = vmatprep.subr.mxu0 0.0
        %2383 = vmatpush2.msra.mxu0 0.0
        %2384 = vmatprep.mubr.f32.mxu0 0.0
        %2385 = vmatmul.mubr.f32.gmra.mxu0 %v2318
        %v2386 = vpop.f32.mrf.mxu0
        %v2387 = vadd.f32 0.0, %v2386
        %v2388 = vpop.f32.mrf.mxu0
        %2389 = vdwg.mxu0
        %v2391 = vsel %vm781, %v2387, 0
        %2393 = vmatprep.subr.mxu0 0.0
        %2394 = vmatpush1.msra.mxu0 0.0
        %2395 = vmatprep.subr.mxu0 0.0
        %2396 = vmatpush1.msra.mxu0 0.0
        %2397 = vmatprep.subr.mxu0 0.0
        %2398 = vmatpush1.msra.mxu0 0.0
        %2399 = vmatprep.subr.mxu0 0.0
        %2400 = vmatpush1.msra.mxu0 0.0
        %2401 = vmatprep.subr.mxu0 0.0
        %2402 = vmatpush1.msra.mxu0 0.0
        %2403 = vmatprep.subr.mxu0 0.0
        %2404 = vmatpush1.msra.mxu0 0.0
        %2405 = vmatprep.subr.mxu0 0.0
        %2406 = vmatpush1.msra.mxu0 0.0
        %2407 = vmatprep.subr.mxu0 0.0
        %2408 = vmatpush1.msra.mxu0 0.0
        %2409 = vmatprep.subr.mxu0 0.0
        %2410 = vmatpush1.msra.mxu0 0.0
        %2411 = vmatprep.subr.mxu0 0.0
        %2412 = vmatpush1.msra.mxu0 0.0
        %2413 = vmatprep.subr.mxu0 0.0
        %2414 = vmatpush1.msra.mxu0 0.0
        %2415 = vmatprep.subr.mxu0 0.0
        %2416 = vmatpush1.msra.mxu0 0.0
        %2417 = vmatprep.subr.mxu0 0.0
        %2418 = vmatpush1.msra.mxu0 0.0
        %2419 = vmatprep.subr.mxu0 0.0
        %2420 = vmatpush1.msra.mxu0 0.0
        %2421 = vmatprep.subr.mxu0 0.0
        %2422 = vmatpush1.msra.mxu0 0.0
        %2423 = vmatprep.subr.mxu0 0.0
        %2424 = vmatpush1.msra.mxu0 %v2047
        %2425 = vmatprep.subr.mxu0 0.0
        %2426 = vmatpush2.msra.mxu0 0.0
        %2427 = vmatprep.subr.mxu0 0.0
        %2428 = vmatpush2.msra.mxu0 0.0
        %2429 = vmatprep.subr.mxu0 0.0
        %2430 = vmatpush2.msra.mxu0 0.0
        %2431 = vmatprep.subr.mxu0 0.0
        %2432 = vmatpush2.msra.mxu0 0.0
        %2433 = vmatprep.subr.mxu0 0.0
        %2434 = vmatpush2.msra.mxu0 0.0
        %2435 = vmatprep.subr.mxu0 0.0
        %2436 = vmatpush2.msra.mxu0 0.0
        %2437 = vmatprep.subr.mxu0 0.0
        %2438 = vmatpush2.msra.mxu0 0.0
        %2439 = vmatprep.subr.mxu0 0.0
        %2440 = vmatpush2.msra.mxu0 0.0
        %2441 = vmatprep.subr.mxu0 0.0
        %2442 = vmatpush2.msra.mxu0 0.0
        %2443 = vmatprep.subr.mxu0 0.0
        %2444 = vmatpush2.msra.mxu0 0.0
        %2445 = vmatprep.subr.mxu0 0.0
        %2446 = vmatpush2.msra.mxu0 0.0
        %2447 = vmatprep.subr.mxu0 0.0
        %2448 = vmatpush2.msra.mxu0 0.0
        %2449 = vmatprep.subr.mxu0 0.0
        %2450 = vmatpush2.msra.mxu0 0.0
        %2451 = vmatprep.subr.mxu0 0.0
        %2452 = vmatpush2.msra.mxu0 0.0
        %2453 = vmatprep.subr.mxu0 0.0
        %2454 = vmatpush2.msra.mxu0 0.0
        %2455 = vmatprep.subr.mxu0 0.0
        %2456 = vmatpush2.msra.mxu0 0.0
        %2457 = vmatprep.mubr.f32.mxu0 0.0
        %2458 = vmatmul.mubr.f32.gmra.mxu0 %v2391
        %v2459 = vpop.f32.mrf.mxu0
        %v2460 = vadd.f32 0.0, %v2459
        %v2461 = vpop.f32.mrf.mxu0
        %2462 = vdwg.mxu0
        %v2464 = vsel %vm781, %v2212, 0
        %2466 = vmatprep.subr.mxu0 0.0
        %2467 = vmatpush1.msra.mxu0 0.0
        %2468 = vmatprep.subr.mxu0 0.0
        %2469 = vmatpush1.msra.mxu0 0.0
        %2470 = vmatprep.subr.mxu0 0.0
        %2471 = vmatpush1.msra.mxu0 0.0
        %2472 = vmatprep.subr.mxu0 0.0
        %2473 = vmatpush1.msra.mxu0 0.0
        %2474 = vmatprep.subr.mxu0 0.0
        %2475 = vmatpush1.msra.mxu0 0.0
        %2476 = vmatprep.subr.mxu0 0.0
        %2477 = vmatpush1.msra.mxu0 0.0
        %2478 = vmatprep.subr.mxu0 0.0
        %2479 = vmatpush1.msra.mxu0 0.0
        %2480 = vmatprep.subr.mxu0 0.0
        %2481 = vmatpush1.msra.mxu0 0.0
        %2482 = vmatprep.subr.mxu0 0.0
        %2483 = vmatpush1.msra.mxu0 0.0
        %2484 = vmatprep.subr.mxu0 0.0
        %2485 = vmatpush1.msra.mxu0 0.0
        %2486 = vmatprep.subr.mxu0 0.0
        %2487 = vmatpush1.msra.mxu0 0.0
        %2488 = vmatprep.subr.mxu0 0.0
        %2489 = vmatpush1.msra.mxu0 0.0
        %2490 = vmatprep.subr.mxu0 0.0
        %2491 = vmatpush1.msra.mxu0 0.0
        %2492 = vmatprep.subr.mxu0 0.0
        %2493 = vmatpush1.msra.mxu0 0.0
        %2494 = vmatprep.subr.mxu0 0.0
        %2495 = vmatpush1.msra.mxu0 0.0
        %2496 = vmatprep.subr.mxu0 0.0
        %2497 = vmatpush1.msra.mxu0 %v2046
        %2498 = vmatprep.subr.mxu0 0.0
        %2499 = vmatpush2.msra.mxu0 0.0
        %2500 = vmatprep.subr.mxu0 0.0
        %2501 = vmatpush2.msra.mxu0 0.0
        %2502 = vmatprep.subr.mxu0 0.0
        %2503 = vmatpush2.msra.mxu0 0.0
        %2504 = vmatprep.subr.mxu0 0.0
        %2505 = vmatpush2.msra.mxu0 0.0
        %2506 = vmatprep.subr.mxu0 0.0
        %2507 = vmatpush2.msra.mxu0 0.0
        %2508 = vmatprep.subr.mxu0 0.0
        %2509 = vmatpush2.msra.mxu0 0.0
        %2510 = vmatprep.subr.mxu0 0.0
        %2511 = vmatpush2.msra.mxu0 0.0
        %2512 = vmatprep.subr.mxu0 0.0
        %2513 = vmatpush2.msra.mxu0 0.0
        %2514 = vmatprep.subr.mxu0 0.0
        %2515 = vmatpush2.msra.mxu0 0.0
        %2516 = vmatprep.subr.mxu0 0.0
        %2517 = vmatpush2.msra.mxu0 0.0
        %2518 = vmatprep.subr.mxu0 0.0
        %2519 = vmatpush2.msra.mxu0 0.0
        %2520 = vmatprep.subr.mxu0 0.0
        %2521 = vmatpush2.msra.mxu0 0.0
        %2522 = vmatprep.subr.mxu0 0.0
        %2523 = vmatpush2.msra.mxu0 0.0
        %2524 = vmatprep.subr.mxu0 0.0
        %2525 = vmatpush2.msra.mxu0 0.0
        %2526 = vmatprep.subr.mxu0 0.0
        %2527 = vmatpush2.msra.mxu0 0.0
        %2528 = vmatprep.subr.mxu0 0.0
        %2529 = vmatpush2.msra.mxu0 0.0
        %2530 = vmatprep.mubr.f32.mxu0 0.0
        %2531 = vmatmul.mubr.f32.gmra.mxu0 %v2464
        %v2532 = vpop.f32.mrf.mxu0
        %v2533 = vadd.f32 %v2460, %v2532
        %v2534 = vpop.f32.mrf.mxu0
        %2535 = vdwg.mxu0
        %2536 = vrot.lane.b32.xlu0 %v1860, 112
        %v2537 = vpop.permute.xlu0 %2536
        %2538 = vrot.lane.b32.xlu0 %v1949, 112
        %v2539 = vpop.permute.xlu0 %2538
        %2540 = vrot.lane.b32.xlu0 %v1954, 112
        %v2541 = vpop.permute.xlu0 %2540
        %v2542 = vsel %vm781, %v2537, 0
        %v2544 = vsel %vm781, %v2539, 0
        %v2546 = vsel %vm781, %v2541, 0
        %2548 = vmatprep.subr.mxu0 0.0
        %2549 = vmatpush1.xpose.msra.mxu0 0.0
        %2550 = vmatprep.subr.mxu0 0.0
        %2551 = vmatpush1.xpose.msra.mxu0 0.0
        %2552 = vmatprep.subr.mxu0 0.0
        %2553 = vmatpush1.xpose.msra.mxu0 0.0
        %2554 = vmatprep.subr.mxu0 0.0
        %2555 = vmatpush1.xpose.msra.mxu0 0.0
        %2556 = vmatprep.subr.mxu0 0.0
        %2557 = vmatpush1.xpose.msra.mxu0 0.0
        %2558 = vmatprep.subr.mxu0 0.0
        %2559 = vmatpush1.xpose.msra.mxu0 0.0
        %2560 = vmatprep.subr.mxu0 0.0
        %2561 = vmatpush1.xpose.msra.mxu0 0.0
        %2562 = vmatprep.subr.mxu0 0.0
        %2563 = vmatpush1.xpose.msra.mxu0 0.0
        %2564 = vmatprep.subr.mxu0 0.0
        %2565 = vmatpush1.xpose.msra.mxu0 0.0
        %2566 = vmatprep.subr.mxu0 0.0
        %2567 = vmatpush1.xpose.msra.mxu0 0.0
        %2568 = vmatprep.subr.mxu0 0.0
        %2569 = vmatpush1.xpose.msra.mxu0 0.0
        %2570 = vmatprep.subr.mxu0 0.0
        %2571 = vmatpush1.xpose.msra.mxu0 0.0
        %2572 = vmatprep.subr.mxu0 0.0
        %2573 = vmatpush1.xpose.msra.mxu0 0.0
        %2574 = vmatprep.subr.mxu0 0.0
        %2575 = vmatpush1.xpose.msra.mxu0 0.0
        %2576 = vmatprep.subr.mxu0 0.0
        %2577 = vmatpush1.xpose.msra.mxu0 %v2546
        %2578 = vmatprep.subr.mxu0 0.0
        %2579 = vmatpush1.xpose.msra.mxu0 %v2544
        %2580 = vmatprep.subr.mxu0 0.0
        %2581 = vmatpush2.xpose.msra.mxu0 0.0
        %2582 = vmatprep.subr.mxu0 0.0
        %2583 = vmatpush2.xpose.msra.mxu0 0.0
        %2584 = vmatprep.subr.mxu0 0.0
        %2585 = vmatpush2.xpose.msra.mxu0 0.0
        %2586 = vmatprep.subr.mxu0 0.0
        %2587 = vmatpush2.xpose.msra.mxu0 0.0
        %2588 = vmatprep.subr.mxu0 0.0
        %2589 = vmatpush2.xpose.msra.mxu0 0.0
        %2590 = vmatprep.subr.mxu0 0.0
        %2591 = vmatpush2.xpose.msra.mxu0 0.0
        %2592 = vmatprep.subr.mxu0 0.0
        %2593 = vmatpush2.xpose.msra.mxu0 0.0
        %2594 = vmatprep.subr.mxu0 0.0
        %2595 = vmatpush2.xpose.msra.mxu0 0.0
        %2596 = vmatprep.subr.mxu0 0.0
        %2597 = vmatpush2.xpose.msra.mxu0 0.0
        %2598 = vmatprep.subr.mxu0 0.0
        %2599 = vmatpush2.xpose.msra.mxu0 0.0
        %2600 = vmatprep.subr.mxu0 0.0
        %2601 = vmatpush2.xpose.msra.mxu0 0.0
        %2602 = vmatprep.subr.mxu0 0.0
        %2603 = vmatpush2.xpose.msra.mxu0 0.0
        %2604 = vmatprep.subr.mxu0 0.0
        %2605 = vmatpush2.xpose.msra.mxu0 0.0
        %2606 = vmatprep.subr.mxu0 0.0
        %2607 = vmatpush2.xpose.msra.mxu0 0.0
        %2608 = vmatprep.subr.mxu0 0.0
        %2609 = vmatpush2.xpose.msra.mxu0 0.0
        %2610 = vmatprep.subr.mxu0 0.0
        %2611 = vmatpush2.xpose.msra.mxu0 0.0
        %2612 = vmatprep.mubr.f32.mxu0 0.0
        %2613 = vmatmul.mubr.f32.gmra.mxu0 %v2542
        %v2614 = vpop.f32.mrf.mxu0
        %v2615 = vadd.f32 0.0, %v2614
        %v2616 = vpop.f32.mrf.mxu0
        %2617 = vdwg.mxu0
        %v2618 = vmul.f32 %v2615, 0.35355338
        %v2619 = vsel %vm2130, %v2618, -inf
        %2620 = vmax.xlane.f32.xlu0 %v2619
        %v2621 = vpop.xlane.xlu0 %2620
        %v2622 = vsub.f32 %v2618, %v2621
        %v2623 = vmul.f32 %v2622, 1.442695
        %v2624 = vpow.pop %v2623
        %v2625 = vsel %vm2130, %v2624, 0.0
        %2626 = vadd.xlane.f32.xlu0 %v2625
        %v2627 = vpop.xlane.xlu0 %2626
        %v2628 = vrcp.pop %v2627
        %v2629 = vmul.f32 %v2624, %v2628
        %2630 = vrot.lane.b32.xlu0 %v2037, 112
        %v2631 = vpop.permute.xlu0 %2630
        %2632 = vrot.lane.b32.xlu0 %v2042, 112
        %v2633 = vpop.permute.xlu0 %2632
        %v2637 = vsel %vm2130, %v2629, 0
        %2639 = vmatprep.subr.mxu0 0.0
        %2640 = vmatpush1.msra.mxu0 0.0
        %2641 = vmatprep.subr.mxu0 0.0
        %2642 = vmatpush1.msra.mxu0 0.0
        %2643 = vmatprep.subr.mxu0 0.0
        %2644 = vmatpush1.msra.mxu0 0.0
        %2645 = vmatprep.subr.mxu0 0.0
        %2646 = vmatpush1.msra.mxu0 0.0
        %2647 = vmatprep.subr.mxu0 0.0
        %2648 = vmatpush1.msra.mxu0 0.0
        %2649 = vmatprep.subr.mxu0 0.0
        %2650 = vmatpush1.msra.mxu0 0.0
        %2651 = vmatprep.subr.mxu0 0.0
        %2652 = vmatpush1.msra.mxu0 0.0
        %2653 = vmatprep.subr.mxu0 0.0
        %2654 = vmatpush1.msra.mxu0 0.0
        %2655 = vmatprep.subr.mxu0 0.0
        %2656 = vmatpush1.msra.mxu0 0.0
        %2657 = vmatprep.subr.mxu0 0.0
        %2658 = vmatpush1.msra.mxu0 0.0
        %2659 = vmatprep.subr.mxu0 0.0
        %2660 = vmatpush1.msra.mxu0 0.0
        %2661 = vmatprep.subr.mxu0 0.0
        %2662 = vmatpush1.msra.mxu0 0.0
        %2663 = vmatprep.subr.mxu0 0.0
        %2664 = vmatpush1.msra.mxu0 0.0
        %2665 = vmatprep.subr.mxu0 0.0
        %2666 = vmatpush1.msra.mxu0 0.0
        %2667 = vmatprep.subr.mxu0 0.0
        %2668 = vmatpush1.msra.mxu0 %v2633
        %2669 = vmatprep.subr.mxu0 0.0
        %2670 = vmatpush1.msra.mxu0 %v2631
        %2671 = vmatprep.subr.mxu0 0.0
        %2672 = vmatpush2.msra.mxu0 0.0
        %2673 = vmatprep.subr.mxu0 0.0
        %2674 = vmatpush2.msra.mxu0 0.0
        %2675 = vmatprep.subr.mxu0 0.0
        %2676 = vmatpush2.msra.mxu0 0.0
        %2677 = vmatprep.subr.mxu0 0.0
        %2678 = vmatpush2.msra.mxu0 0.0
        %2679 = vmatprep.subr.mxu0 0.0
        %2680 = vmatpush2.msra.mxu0 0.0
        %2681 = vmatprep.subr.mxu0 0.0
        %2682 = vmatpush2.msra.mxu0 0.0
        %2683 = vmatprep.subr.mxu0 0.0
        %2684 = vmatpush2.msra.mxu0 0.0
        %2685 = vmatprep.subr.mxu0 0.0
        %2686 = vmatpush2.msra.mxu0 0.0
        %2687 = vmatprep.subr.mxu0 0.0
        %2688 = vmatpush2.msra.mxu0 0.0
        %2689 = vmatprep.subr.mxu0 0.0
        %2690 = vmatpush2.msra.mxu0 0.0
        %2691 = vmatprep.subr.mxu0 0.0
        %2692 = vmatpush2.msra.mxu0 0.0
        %2693 = vmatprep.subr.mxu0 0.0
        %2694 = vmatpush2.msra.mxu0 0.0
        %2695 = vmatprep.subr.mxu0 0.0
        %2696 = vmatpush2.msra.mxu0 0.0
        %2697 = vmatprep.subr.mxu0 0.0
        %2698 = vmatpush2.msra.mxu0 0.0
        %2699 = vmatprep.subr.mxu0 0.0
        %2700 = vmatpush2.msra.mxu0 0.0
        %2701 = vmatprep.subr.mxu0 0.0
        %2702 = vmatpush2.msra.mxu0 0.0
        %2703 = vmatprep.mubr.f32.mxu0 0.0
        %2704 = vmatmul.mubr.f32.gmra.mxu0 %v2637
        %v2705 = vpop.f32.mrf.mxu0
        %v2706 = vadd.f32 0.0, %v2705
        %v2707 = vpop.f32.mrf.mxu0
        %2708 = vdwg.mxu0
        %v2710 = vsel %vm781, %v2706, 0
        %2712 = vmatprep.subr.mxu0 0.0
        %2713 = vmatpush1.msra.mxu0 0.0
        %2714 = vmatprep.subr.mxu0 0.0
        %2715 = vmatpush1.msra.mxu0 0.0
        %2716 = vmatprep.subr.mxu0 0.0
        %2717 = vmatpush1.msra.mxu0 0.0
        %2718 = vmatprep.subr.mxu0 0.0
        %2719 = vmatpush1.msra.mxu0 0.0
        %2720 = vmatprep.subr.mxu0 0.0
        %2721 = vmatpush1.msra.mxu0 0.0
        %2722 = vmatprep.subr.mxu0 0.0
        %2723 = vmatpush1.msra.mxu0 0.0
        %2724 = vmatprep.subr.mxu0 0.0
        %2725 = vmatpush1.msra.mxu0 0.0
        %2726 = vmatprep.subr.mxu0 0.0
        %2727 = vmatpush1.msra.mxu0 0.0
        %2728 = vmatprep.subr.mxu0 0.0
        %2729 = vmatpush1.msra.mxu0 0.0
        %2730 = vmatprep.subr.mxu0 0.0
        %2731 = vmatpush1.msra.mxu0 0.0
        %2732 = vmatprep.subr.mxu0 0.0
        %2733 = vmatpush1.msra.mxu0 0.0
        %2734 = vmatprep.subr.mxu0 0.0
        %2735 = vmatpush1.msra.mxu0 0.0
        %2736 = vmatprep.subr.mxu0 0.0
        %2737 = vmatpush1.msra.mxu0 0.0
        %2738 = vmatprep.subr.mxu0 0.0
        %2739 = vmatpush1.msra.mxu0 0.0
        %2740 = vmatprep.subr.mxu0 0.0
        %2741 = vmatpush1.msra.mxu0 0.0
        %2742 = vmatprep.subr.mxu0 0.0
        %2743 = vmatpush1.msra.mxu0 %v2048
        %2744 = vmatprep.subr.mxu0 0.0
        %2745 = vmatpush2.msra.mxu0 0.0
        %2746 = vmatprep.subr.mxu0 0.0
        %2747 = vmatpush2.msra.mxu0 0.0
        %2748 = vmatprep.subr.mxu0 0.0
        %2749 = vmatpush2.msra.mxu0 0.0
        %2750 = vmatprep.subr.mxu0 0.0
        %2751 = vmatpush2.msra.mxu0 0.0
        %2752 = vmatprep.subr.mxu0 0.0
        %2753 = vmatpush2.msra.mxu0 0.0
        %2754 = vmatprep.subr.mxu0 0.0
        %2755 = vmatpush2.msra.mxu0 0.0
        %2756 = vmatprep.subr.mxu0 0.0
        %2757 = vmatpush2.msra.mxu0 0.0
        %2758 = vmatprep.subr.mxu0 0.0
        %2759 = vmatpush2.msra.mxu0 0.0
        %2760 = vmatprep.subr.mxu0 0.0
        %2761 = vmatpush2.msra.mxu0 0.0
        %2762 = vmatprep.subr.mxu0 0.0
        %2763 = vmatpush2.msra.mxu0 0.0
        %2764 = vmatprep.subr.mxu0 0.0
        %2765 = vmatpush2.msra.mxu0 0.0
        %2766 = vmatprep.subr.mxu0 0.0
        %2767 = vmatpush2.msra.mxu0 0.0
        %2768 = vmatprep.subr.mxu0 0.0
        %2769 = vmatpush2.msra.mxu0 0.0
        %2770 = vmatprep.subr.mxu0 0.0
        %2771 = vmatpush2.msra.mxu0 0.0
        %2772 = vmatprep.subr.mxu0 0.0
        %2773 = vmatpush2.msra.mxu0 0.0
        %2774 = vmatprep.subr.mxu0 0.0
        %2775 = vmatpush2.msra.mxu0 0.0
        %2776 = vmatprep.mubr.f32.mxu0 0.0
        %2777 = vmatmul.mubr.f32.gmra.mxu0 %v2710
        %v2778 = vpop.f32.mrf.mxu0
        %v2779 = vadd.f32 0.0, %v2778
        %v2780 = vpop.f32.mrf.mxu0
        %2781 = vdwg.mxu0
        %v2782 = vadd.f32 %v2533, %v2779
        %2783 = vrot.lane.b32.xlu0 %v1860, 104
        %v2784 = vpop.permute.xlu0 %2783
        %2785 = vrot.lane.b32.xlu0 %v1949, 104
        %v2786 = vpop.permute.xlu0 %2785
        %2787 = vrot.lane.b32.xlu0 %v1954, 104
        %v2788 = vpop.permute.xlu0 %2787
        %v2789 = vsel %vm781, %v2784, 0
        %v2791 = vsel %vm781, %v2786, 0
        %v2793 = vsel %vm781, %v2788, 0
        %2795 = vmatprep.subr.mxu0 0.0
        %2796 = vmatpush1.xpose.msra.mxu0 0.0
        %2797 = vmatprep.subr.mxu0 0.0
        %2798 = vmatpush1.xpose.msra.mxu0 0.0
        %2799 = vmatprep.subr.mxu0 0.0
        %2800 = vmatpush1.xpose.msra.mxu0 0.0
        %2801 = vmatprep.subr.mxu0 0.0
        %2802 = vmatpush1.xpose.msra.mxu0 0.0
        %2803 = vmatprep.subr.mxu0 0.0
        %2804 = vmatpush1.xpose.msra.mxu0 0.0
        %2805 = vmatprep.subr.mxu0 0.0
        %2806 = vmatpush1.xpose.msra.mxu0 0.0
        %2807 = vmatprep.subr.mxu0 0.0
        %2808 = vmatpush1.xpose.msra.mxu0 0.0
        %2809 = vmatprep.subr.mxu0 0.0
        %2810 = vmatpush1.xpose.msra.mxu0 0.0
        %2811 = vmatprep.subr.mxu0 0.0
        %2812 = vmatpush1.xpose.msra.mxu0 0.0
        %2813 = vmatprep.subr.mxu0 0.0
        %2814 = vmatpush1.xpose.msra.mxu0 0.0
        %2815 = vmatprep.subr.mxu0 0.0
        %2816 = vmatpush1.xpose.msra.mxu0 0.0
        %2817 = vmatprep.subr.mxu0 0.0
        %2818 = vmatpush1.xpose.msra.mxu0 0.0
        %2819 = vmatprep.subr.mxu0 0.0
        %2820 = vmatpush1.xpose.msra.mxu0 0.0
        %2821 = vmatprep.subr.mxu0 0.0
        %2822 = vmatpush1.xpose.msra.mxu0 0.0
        %2823 = vmatprep.subr.mxu0 0.0
        %2824 = vmatpush1.xpose.msra.mxu0 %v2793
        %2825 = vmatprep.subr.mxu0 0.0
        %2826 = vmatpush1.xpose.msra.mxu0 %v2791
        %2827 = vmatprep.subr.mxu0 0.0
        %2828 = vmatpush2.xpose.msra.mxu0 0.0
        %2829 = vmatprep.subr.mxu0 0.0
        %2830 = vmatpush2.xpose.msra.mxu0 0.0
        %2831 = vmatprep.subr.mxu0 0.0
        %2832 = vmatpush2.xpose.msra.mxu0 0.0
        %2833 = vmatprep.subr.mxu0 0.0
        %2834 = vmatpush2.xpose.msra.mxu0 0.0
        %2835 = vmatprep.subr.mxu0 0.0
        %2836 = vmatpush2.xpose.msra.mxu0 0.0
        %2837 = vmatprep.subr.mxu0 0.0
        %2838 = vmatpush2.xpose.msra.mxu0 0.0
        %2839 = vmatprep.subr.mxu0 0.0
        %2840 = vmatpush2.xpose.msra.mxu0 0.0
        %2841 = vmatprep.subr.mxu0 0.0
        %2842 = vmatpush2.xpose.msra.mxu0 0.0
        %2843 = vmatprep.subr.mxu0 0.0
        %2844 = vmatpush2.xpose.msra.mxu0 0.0
        %2845 = vmatprep.subr.mxu0 0.0
        %2846 = vmatpush2.xpose.msra.mxu0 0.0
        %2847 = vmatprep.subr.mxu0 0.0
        %2848 = vmatpush2.xpose.msra.mxu0 0.0
        %2849 = vmatprep.subr.mxu0 0.0
        %2850 = vmatpush2.xpose.msra.mxu0 0.0
        %2851 = vmatprep.subr.mxu0 0.0
        %2852 = vmatpush2.xpose.msra.mxu0 0.0
        %2853 = vmatprep.subr.mxu0 0.0
        %2854 = vmatpush2.xpose.msra.mxu0 0.0
        %2855 = vmatprep.subr.mxu0 0.0
        %2856 = vmatpush2.xpose.msra.mxu0 0.0
        %2857 = vmatprep.subr.mxu0 0.0
        %2858 = vmatpush2.xpose.msra.mxu0 0.0
        %2859 = vmatprep.mubr.f32.mxu0 0.0
        %2860 = vmatmul.mubr.f32.gmra.mxu0 %v2789
        %v2861 = vpop.f32.mrf.mxu0
        %v2862 = vadd.f32 0.0, %v2861
        %v2863 = vpop.f32.mrf.mxu0
        %2864 = vdwg.mxu0
        %v2865 = vmul.f32 %v2862, 0.35355338
        %v2866 = vsel %vm2130, %v2865, -inf
        %2867 = vmax.xlane.f32.xlu0 %v2866
        %v2868 = vpop.xlane.xlu0 %2867
        %v2869 = vsub.f32 %v2865, %v2868
        %v2870 = vmul.f32 %v2869, 1.442695
        %v2871 = vpow.pop %v2870
        %v2872 = vsel %vm2130, %v2871, 0.0
        %2873 = vadd.xlane.f32.xlu0 %v2872
        %v2874 = vpop.xlane.xlu0 %2873
        %v2875 = vrcp.pop %v2874
        %v2876 = vmul.f32 %v2871, %v2875
        %2877 = vrot.lane.b32.xlu0 %v2037, 104
        %v2878 = vpop.permute.xlu0 %2877
        %2879 = vrot.lane.b32.xlu0 %v2042, 104
        %v2880 = vpop.permute.xlu0 %2879
        %v2884 = vsel %vm2130, %v2876, 0
        %2886 = vmatprep.subr.mxu0 0.0
        %2887 = vmatpush1.msra.mxu0 0.0
        %2888 = vmatprep.subr.mxu0 0.0
        %2889 = vmatpush1.msra.mxu0 0.0
        %2890 = vmatprep.subr.mxu0 0.0
        %2891 = vmatpush1.msra.mxu0 0.0
        %2892 = vmatprep.subr.mxu0 0.0
        %2893 = vmatpush1.msra.mxu0 0.0
        %2894 = vmatprep.subr.mxu0 0.0
        %2895 = vmatpush1.msra.mxu0 0.0
        %2896 = vmatprep.subr.mxu0 0.0
        %2897 = vmatpush1.msra.mxu0 0.0
        %2898 = vmatprep.subr.mxu0 0.0
        %2899 = vmatpush1.msra.mxu0 0.0
        %2900 = vmatprep.subr.mxu0 0.0
        %2901 = vmatpush1.msra.mxu0 0.0
        %2902 = vmatprep.subr.mxu0 0.0
        %2903 = vmatpush1.msra.mxu0 0.0
        %2904 = vmatprep.subr.mxu0 0.0
        %2905 = vmatpush1.msra.mxu0 0.0
        %2906 = vmatprep.subr.mxu0 0.0
        %2907 = vmatpush1.msra.mxu0 0.0
        %2908 = vmatprep.subr.mxu0 0.0
        %2909 = vmatpush1.msra.mxu0 0.0
        %2910 = vmatprep.subr.mxu0 0.0
        %2911 = vmatpush1.msra.mxu0 0.0
        %2912 = vmatprep.subr.mxu0 0.0
        %2913 = vmatpush1.msra.mxu0 0.0
        %2914 = vmatprep.subr.mxu0 0.0
        %2915 = vmatpush1.msra.mxu0 %v2880
        %2916 = vmatprep.subr.mxu0 0.0
        %2917 = vmatpush1.msra.mxu0 %v2878
        %2918 = vmatprep.subr.mxu0 0.0
        %2919 = vmatpush2.msra.mxu0 0.0
        %2920 = vmatprep.subr.mxu0 0.0
        %2921 = vmatpush2.msra.mxu0 0.0
        %2922 = vmatprep.subr.mxu0 0.0
        %2923 = vmatpush2.msra.mxu0 0.0
        %2924 = vmatprep.subr.mxu0 0.0
        %2925 = vmatpush2.msra.mxu0 0.0
        %2926 = vmatprep.subr.mxu0 0.0
        %2927 = vmatpush2.msra.mxu0 0.0
        %2928 = vmatprep.subr.mxu0 0.0
        %2929 = vmatpush2.msra.mxu0 0.0
        %2930 = vmatprep.subr.mxu0 0.0
        %2931 = vmatpush2.msra.mxu0 0.0
        %2932 = vmatprep.subr.mxu0 0.0
        %2933 = vmatpush2.msra.mxu0 0.0
        %2934 = vmatprep.subr.mxu0 0.0
        %2935 = vmatpush2.msra.mxu0 0.0
        %2936 = vmatprep.subr.mxu0 0.0
        %2937 = vmatpush2.msra.mxu0 0.0
        %2938 = vmatprep.subr.mxu0 0.0
        %2939 = vmatpush2.msra.mxu0 0.0
        %2940 = vmatprep.subr.mxu0 0.0
        %2941 = vmatpush2.msra.mxu0 0.0
        %2942 = vmatprep.subr.mxu0 0.0
        %2943 = vmatpush2.msra.mxu0 0.0
        %2944 = vmatprep.subr.mxu0 0.0
        %2945 = vmatpush2.msra.mxu0 0.0
        %2946 = vmatprep.subr.mxu0 0.0
        %2947 = vmatpush2.msra.mxu0 0.0
        %2948 = vmatprep.subr.mxu0 0.0
        %2949 = vmatpush2.msra.mxu0 0.0
        %2950 = vmatprep.mubr.f32.mxu0 0.0
        %2951 = vmatmul.mubr.f32.gmra.mxu0 %v2884
        %v2952 = vpop.f32.mrf.mxu0
        %v2953 = vadd.f32 0.0, %v2952
        %v2954 = vpop.f32.mrf.mxu0
        %2955 = vdwg.mxu0
        %v2957 = vsel %vm781, %v2953, 0
        %2959 = vmatprep.subr.mxu0 0.0
        %2960 = vmatpush1.msra.mxu0 0.0
        %2961 = vmatprep.subr.mxu0 0.0
        %2962 = vmatpush1.msra.mxu0 0.0
        %2963 = vmatprep.subr.mxu0 0.0
        %2964 = vmatpush1.msra.mxu0 0.0
        %2965 = vmatprep.subr.mxu0 0.0
        %2966 = vmatpush1.msra.mxu0 0.0
        %2967 = vmatprep.subr.mxu0 0.0
        %2968 = vmatpush1.msra.mxu0 0.0
        %2969 = vmatprep.subr.mxu0 0.0
        %2970 = vmatpush1.msra.mxu0 0.0
        %2971 = vmatprep.subr.mxu0 0.0
        %2972 = vmatpush1.msra.mxu0 0.0
        %2973 = vmatprep.subr.mxu0 0.0
        %2974 = vmatpush1.msra.mxu0 0.0
        %2975 = vmatprep.subr.mxu0 0.0
        %2976 = vmatpush1.msra.mxu0 0.0
        %2977 = vmatprep.subr.mxu0 0.0
        %2978 = vmatpush1.msra.mxu0 0.0
        %2979 = vmatprep.subr.mxu0 0.0
        %2980 = vmatpush1.msra.mxu0 0.0
        %2981 = vmatprep.subr.mxu0 0.0
        %2982 = vmatpush1.msra.mxu0 0.0
        %2983 = vmatprep.subr.mxu0 0.0
        %2984 = vmatpush1.msra.mxu0 0.0
        %2985 = vmatprep.subr.mxu0 0.0
        %2986 = vmatpush1.msra.mxu0 0.0
        %2987 = vmatprep.subr.mxu0 0.0
        %2988 = vmatpush1.msra.mxu0 0.0
        %2989 = vmatprep.subr.mxu0 0.0
        %2990 = vmatpush1.msra.mxu0 %v2049
        %2991 = vmatprep.subr.mxu0 0.0
        %2992 = vmatpush2.msra.mxu0 0.0
        %2993 = vmatprep.subr.mxu0 0.0
        %2994 = vmatpush2.msra.mxu0 0.0
        %2995 = vmatprep.subr.mxu0 0.0
        %2996 = vmatpush2.msra.mxu0 0.0
        %2997 = vmatprep.subr.mxu0 0.0
        %2998 = vmatpush2.msra.mxu0 0.0
        %2999 = vmatprep.subr.mxu0 0.0
        %3000 = vmatpush2.msra.mxu0 0.0
        %3001 = vmatprep.subr.mxu0 0.0
        %3002 = vmatpush2.msra.mxu0 0.0
        %3003 = vmatprep.subr.mxu0 0.0
        %3004 = vmatpush2.msra.mxu0 0.0
        %3005 = vmatprep.subr.mxu0 0.0
        %3006 = vmatpush2.msra.mxu0 0.0
        %3007 = vmatprep.subr.mxu0 0.0
        %3008 = vmatpush2.msra.mxu0 0.0
        %3009 = vmatprep.subr.mxu0 0.0
        %3010 = vmatpush2.msra.mxu0 0.0
        %3011 = vmatprep.subr.mxu0 0.0
        %3012 = vmatpush2.msra.mxu0 0.0
        %3013 = vmatprep.subr.mxu0 0.0
        %3014 = vmatpush2.msra.mxu0 0.0
        %3015 = vmatprep.subr.mxu0 0.0
        %3016 = vmatpush2.msra.mxu0 0.0
        %3017 = vmatprep.subr.mxu0 0.0
        %3018 = vmatpush2.msra.mxu0 0.0
        %3019 = vmatprep.subr.mxu0 0.0
        %3020 = vmatpush2.msra.mxu0 0.0
        %3021 = vmatprep.subr.mxu0 0.0
        %3022 = vmatpush2.msra.mxu0 0.0
        %3023 = vmatprep.mubr.f32.mxu0 0.0
        %3024 = vmatmul.mubr.f32.gmra.mxu0 %v2957
        %v3025 = vpop.f32.mrf.mxu0
        %v3026 = vadd.f32 0.0, %v3025
        %v3027 = vpop.f32.mrf.mxu0
        %3028 = vdwg.mxu0
        %v3029 = vadd.f32 %v2782, %v3026
        %s3030 = scalar_lea.vmem %s6, 7
        %v3031 = vld [vmem:[%s3030] sm:$0x1]
        %v3033 = vlaneseq
        %v3034 = vshrl.u32 %v3033, 7
        %v3035 = vsub.s32 0, %v3034
        %v3036 = vrot.slane %v3031, %v3035
        %v3038 = vadd.f32 %v3029, %v3036
        %v3039 = vadd.f32 %v1745, %v3038
        %v3040 = vsel %vm495, %v3039, 0.0
        %3041 = vadd.xlane.f32.xlu0 %v3040
        %v3042 = vpop.xlane.xlu0 %3041
        %v3043 = vmul.f32 %v3042, %v499
        %v3044 = vsub.f32 %v3039, %v3043
        %v3045 = vmul.f32 %v3044, %v3044
        %v3046 = vsel %vm495, %v3045, 0.0
        %3047 = vadd.xlane.f32.xlu0 %v3046
        %v3048 = vpop.xlane.xlu0 %3047
        %v3049 = vmul.f32 %v3048, %v499
        %v3050 = vadd.f32 %v3049, 1e-05
        %v3051 = vrsqrt.pop %v3050
        %v3052 = vmul.f32 %v3044, %v3051
        %s3053 = scalar_lea.vmem %s3, 2
        %v3054 = vld [vmem:[%s3053] sm:$0x1]
        %v3056 = vlaneseq
        %v3057 = vshrl.u32 %v3056, 7
        %v3058 = vsub.s32 0, %v3057
        %v3059 = vrot.slane %v3054, %v3058
        %v3061 = vmul.f32 %v3052, %v3059
        %s3062 = scalar_lea.vmem %s4, 2
        %v3063 = vld [vmem:[%s3062] sm:$0x1]
        %v3065 = vlaneseq
        %v3066 = vshrl.u32 %v3065, 7
        %v3067 = vsub.s32 0, %v3066
        %v3068 = vrot.slane %v3063, %v3067
        %v3070 = vadd.f32 %v3061, %v3068
        %v3071 = vld [vmem:[%s7] sm:$0xff]
        %v3072 = vld [vmem:[%s7 + $0x8] sm:$0xff]
        %v3073 = vld [vmem:[%s7 + $0x10] sm:$0xff]
        %v3074 = vld [vmem:[%s7 + $0x18] sm:$0xff]
        %v3075 = vld [vmem:[%s8] sm:$0x1]
        %v3077 = vlaneseq
        %v3078 = vshrl.u32 %v3077, 7
        %v3079 = vsub.s32 0, %v3078
        %v3080 = vrot.slane %v3075, %v3079
        %v3083 = vsel %vm495, %v3070, 0
        %3085 = vmatprep.subr.mxu0 0.0
        %3086 = vmatpush1.msra.mxu0 0.0
        %3087 = vmatprep.subr.mxu0 0.0
        %3088 = vmatpush1.msra.mxu0 0.0
        %3089 = vmatprep.subr.mxu0 0.0
        %3090 = vmatpush1.msra.mxu0 0.0
        %3091 = vmatprep.subr.mxu0 0.0
        %3092 = vmatpush1.msra.mxu0 0.0
        %3093 = vmatprep.subr.mxu0 0.0
        %3094 = vmatpush1.msra.mxu0 0.0
        %3095 = vmatprep.subr.mxu0 0.0
        %3096 = vmatpush1.msra.mxu0 0.0
        %3097 = vmatprep.subr.mxu0 0.0
        %3098 = vmatpush1.msra.mxu0 0.0
        %3099 = vmatprep.subr.mxu0 0.0
        %3100 = vmatpush1.msra.mxu0 0.0
        %3101 = vmatprep.subr.mxu0 0.0
        %3102 = vmatpush1.msra.mxu0 0.0
        %3103 = vmatprep.subr.mxu0 0.0
        %3104 = vmatpush1.msra.mxu0 0.0
        %3105 = vmatprep.subr.mxu0 0.0
        %3106 = vmatpush1.msra.mxu0 0.0
        %3107 = vmatprep.subr.mxu0 0.0
        %3108 = vmatpush1.msra.mxu0 0.0
        %3109 = vmatprep.subr.mxu0 0.0
        %3110 = vmatpush1.msra.mxu0 %v3074
        %3111 = vmatprep.subr.mxu0 0.0
        %3112 = vmatpush1.msra.mxu0 %v3073
        %3113 = vmatprep.subr.mxu0 0.0
        %3114 = vmatpush1.msra.mxu0 %v3072
        %3115 = vmatprep.subr.mxu0 0.0
        %3116 = vmatpush1.msra.mxu0 %v3071
        %3117 = vmatprep.subr.mxu0 0.0
        %3118 = vmatpush2.msra.mxu0 0.0
        %3119 = vmatprep.subr.mxu0 0.0
        %3120 = vmatpush2.msra.mxu0 0.0
        %3121 = vmatprep.subr.mxu0 0.0
        %3122 = vmatpush2.msra.mxu0 0.0
        %3123 = vmatprep.subr.mxu0 0.0
        %3124 = vmatpush2.msra.mxu0 0.0
        %3125 = vmatprep.subr.mxu0 0.0
        %3126 = vmatpush2.msra.mxu0 0.0
        %3127 = vmatprep.subr.mxu0 0.0
        %3128 = vmatpush2.msra.mxu0 0.0
        %3129 = vmatprep.subr.mxu0 0.0
        %3130 = vmatpush2.msra.mxu0 0.0
        %3131 = vmatprep.subr.mxu0 0.0
        %3132 = vmatpush2.msra.mxu0 0.0
        %3133 = vmatprep.subr.mxu0 0.0
        %3134 = vmatpush2.msra.mxu0 0.0
        %3135 = vmatprep.subr.mxu0 0.0
        %3136 = vmatpush2.msra.mxu0 0.0
        %3137 = vmatprep.subr.mxu0 0.0
        %3138 = vmatpush2.msra.mxu0 0.0
        %3139 = vmatprep.subr.mxu0 0.0
        %3140 = vmatpush2.msra.mxu0 0.0
        %3141 = vmatprep.subr.mxu0 0.0
        %3142 = vmatpush2.msra.mxu0 0.0
        %3143 = vmatprep.subr.mxu0 0.0
        %3144 = vmatpush2.msra.mxu0 0.0
        %3145 = vmatprep.subr.mxu0 0.0
        %3146 = vmatpush2.msra.mxu0 0.0
        %3147 = vmatprep.subr.mxu0 0.0
        %3148 = vmatpush2.msra.mxu0 0.0
        %3149 = vmatprep.mubr.f32.mxu0 0.0
        %3150 = vmatmul.mubr.f32.gmra.mxu0 %v3083
        %v3151 = vpop.f32.mrf.mxu0
        %v3152 = vadd.f32 %v3080, %v3151
        %v3153 = vpop.f32.mrf.mxu0
        %3154 = vdwg.mxu0
        %v3155 = vmul.f32 %v3152, 0.5
        %v3156 = vmul.f32 %v3152, 0.70710677
        %vm3157 = vcmp.ge.f32.partialorder %v3156, 0.0
        %v3158 = vsel %vm3157, 1.0, -1.0
        %v3159 = vand.u32 2147483647, %v3156
        %v3160 = vmul.f32 %v3159, 0.3275911
        %v3161 = vadd.f32 %v3160, 1.0
        %v3162 = vrcp.pop %v3161
        %v3163 = vmul.f32 1.0, %v3162
        %v3164 = vmul.f32 %v3163, 1.0614054
        %v3165 = vadd.f32 %v3164, -1.4531521
        %v3166 = vmul.f32 %v3165, %v3163
        %v3167 = vadd.f32 %v3166, 1.4214138
        %v3168 = vmul.f32 %v3167, %v3163
        %v3169 = vadd.f32 %v3168, -0.28449672
        %v3170 = vmul.f32 %v3169, %v3163
        %v3171 = vadd.f32 %v3170, 0.2548296
        %v3172 = vmul.f32 %v3171, %v3163
        %v3173 = vsub.f32 0.0, %v3159
        %v3174 = vmul.f32 %v3173, %v3159
        %v3175 = vmul.f32 %v3174, 1.442695
        %v3176 = vpow.pop %v3175
        %v3177 = vmul.f32 %v3172, %v3176
        %v3178 = vsub.f32 1.0, %v3177
        %v3179 = vmul.f32 %v3158, %v3178
        %v3180 = vadd.f32 %v3179, 1.0
        %v3181 = vmul.f32 %v3155, %v3180
        %v3182 = vld [vmem:[%s9] sm:$0xff]
        %v3183 = vld [vmem:[%s9 + $0x8] sm:$0xff]
        %v3184 = vld [vmem:[%s9 + $0x10] sm:$0xff]
        %v3185 = vld [vmem:[%s9 + $0x18] sm:$0xff]
        %v3186 = vld [vmem:[%s9 + $0x20] sm:$0xff]
        %v3187 = vld [vmem:[%s9 + $0x28] sm:$0xff]
        %v3188 = vld [vmem:[%s9 + $0x30] sm:$0xff]
        %v3189 = vld [vmem:[%s9 + $0x38] sm:$0xff]
        %v3190 = vld [vmem:[%s9 + $0x40] sm:$0xff]
        %v3191 = vld [vmem:[%s9 + $0x48] sm:$0xff]
        %v3192 = vld [vmem:[%s9 + $0x50] sm:$0xff]
        %v3193 = vld [vmem:[%s9 + $0x58] sm:$0xff]
        %v3194 = vld [vmem:[%s9 + $0x60] sm:$0xff]
        %v3195 = vld [vmem:[%s9 + $0x68] sm:$0xff]
        %v3196 = vld [vmem:[%s9 + $0x70] sm:$0xff]
        %v3197 = vld [vmem:[%s9 + $0x78] sm:$0xff]
        %v3198 = vld [vmem:[%s10] sm:$0x1]
        %v3200 = vlaneseq
        %v3201 = vshrl.u32 %v3200, 7
        %v3202 = vsub.s32 0, %v3201
        %v3203 = vrot.slane %v3198, %v3202
        %3205 = vmatprep.subr.mxu0 0.0
        %3206 = vmatpush1.msra.mxu0 %v3197
        %3207 = vmatprep.subr.mxu0 0.0
        %3208 = vmatpush1.msra.mxu0 %v3196
        %3209 = vmatprep.subr.mxu0 0.0
        %3210 = vmatpush1.msra.mxu0 %v3195
        %3211 = vmatprep.subr.mxu0 0.0
        %3212 = vmatpush1.msra.mxu0 %v3194
        %3213 = vmatprep.subr.mxu0 0.0
        %3214 = vmatpush1.msra.mxu0 %v3193
        %3215 = vmatprep.subr.mxu0 0.0
        %3216 = vmatpush1.msra.mxu0 %v3192
        %3217 = vmatprep.subr.mxu0 0.0
        %3218 = vmatpush1.msra.mxu0 %v3191
        %3219 = vmatprep.subr.mxu0 0.0
        %3220 = vmatpush1.msra.mxu0 %v3190
        %3221 = vmatprep.subr.mxu0 0.0
        %3222 = vmatpush1.msra.mxu0 %v3189
        %3223 = vmatprep.subr.mxu0 0.0
        %3224 = vmatpush1.msra.mxu0 %v3188
        %3225 = vmatprep.subr.mxu0 0.0
        %3226 = vmatpush1.msra.mxu0 %v3187
        %3227 = vmatprep.subr.mxu0 0.0
        %3228 = vmatpush1.msra.mxu0 %v3186
        %3229 = vmatprep.subr.mxu0 0.0
        %3230 = vmatpush1.msra.mxu0 %v3185
        %3231 = vmatprep.subr.mxu0 0.0
        %3232 = vmatpush1.msra.mxu0 %v3184
        %3233 = vmatprep.subr.mxu0 0.0
        %3234 = vmatpush1.msra.mxu0 %v3183
        %3235 = vmatprep.subr.mxu0 0.0
        %3236 = vmatpush1.msra.mxu0 %v3182
        %3237 = vmatprep.subr.mxu0 0.0
        %3238 = vmatpush2.msra.mxu0 0.0
        %3239 = vmatprep.subr.mxu0 0.0
        %3240 = vmatpush2.msra.mxu0 0.0
        %3241 = vmatprep.subr.mxu0 0.0
        %3242 = vmatpush2.msra.mxu0 0.0
        %3243 = vmatprep.subr.mxu0 0.0
        %3244 = vmatpush2.msra.mxu0 0.0
        %3245 = vmatprep.subr.mxu0 0.0
        %3246 = vmatpush2.msra.mxu0 0.0
        %3247 = vmatprep.subr.mxu0 0.0
        %3248 = vmatpush2.msra.mxu0 0.0
        %3249 = vmatprep.subr.mxu0 0.0
        %3250 = vmatpush2.msra.mxu0 0.0
        %3251 = vmatprep.subr.mxu0 0.0
        %3252 = vmatpush2.msra.mxu0 0.0
        %3253 = vmatprep.subr.mxu0 0.0
        %3254 = vmatpush2.msra.mxu0 0.0
        %3255 = vmatprep.subr.mxu0 0.0
        %3256 = vmatpush2.msra.mxu0 0.0
        %3257 = vmatprep.subr.mxu0 0.0
        %3258 = vmatpush2.msra.mxu0 0.0
        %3259 = vmatprep.subr.mxu0 0.0
        %3260 = vmatpush2.msra.mxu0 0.0
        %3261 = vmatprep.subr.mxu0 0.0
        %3262 = vmatpush2.msra.mxu0 0.0
        %3263 = vmatprep.subr.mxu0 0.0
        %3264 = vmatpush2.msra.mxu0 0.0
        %3265 = vmatprep.subr.mxu0 0.0
        %3266 = vmatpush2.msra.mxu0 0.0
        %3267 = vmatprep.subr.mxu0 0.0
        %3268 = vmatpush2.msra.mxu0 0.0
        %3269 = vmatprep.mubr.f32.mxu0 0.0
        %3270 = vmatmul.mubr.f32.gmra.mxu0 %v3181
        %v3271 = vpop.f32.mrf.mxu0
        %v3272 = vadd.f32 %v3203, %v3271
        %v3273 = vpop.f32.mrf.mxu0
        %3274 = vdwg.mxu0
        %v3275 = vadd.f32 %v3039, %v3272
        %s3276 = scalar_lea.vmem %s5, 256
        %v3277 = vld [vmem:[%s3276] sm:$0xff]
        %v3278 = vld [vmem:[%s3276 + $0x8] sm:$0xff]
        %v3279 = vld [vmem:[%s3276 + $0x10] sm:$0xff]
        %v3280 = vld [vmem:[%s3276 + $0x18] sm:$0xff]
        %s3281 = scalar_lea.vmem %s6, 8
        %v3282 = vld [vmem:[%s3281] sm:$0x1]
        %v3284 = vlaneseq
        %v3285 = vshrl.u32 %v3284, 7
        %v3286 = vsub.s32 0, %v3285
        %v3287 = vrot.slane %v3282, %v3286
        %3289 = vmatprep.subr.mxu0 0.0
        %3290 = vmatpush1.msra.mxu0 0.0
        %3291 = vmatprep.subr.mxu0 0.0
        %3292 = vmatpush1.msra.mxu0 0.0
        %3293 = vmatprep.subr.mxu0 0.0
        %3294 = vmatpush1.msra.mxu0 0.0
        %3295 = vmatprep.subr.mxu0 0.0
        %3296 = vmatpush1.msra.mxu0 0.0
        %3297 = vmatprep.subr.mxu0 0.0
        %3298 = vmatpush1.msra.mxu0 0.0
        %3299 = vmatprep.subr.mxu0 0.0
        %3300 = vmatpush1.msra.mxu0 0.0
        %3301 = vmatprep.subr.mxu0 0.0
        %3302 = vmatpush1.msra.mxu0 0.0
        %3303 = vmatprep.subr.mxu0 0.0
        %3304 = vmatpush1.msra.mxu0 0.0
        %3305 = vmatprep.subr.mxu0 0.0
        %3306 = vmatpush1.msra.mxu0 0.0
        %3307 = vmatprep.subr.mxu0 0.0
        %3308 = vmatpush1.msra.mxu0 0.0
        %3309 = vmatprep.subr.mxu0 0.0
        %3310 = vmatpush1.msra.mxu0 0.0
        %3311 = vmatprep.subr.mxu0 0.0
        %3312 = vmatpush1.msra.mxu0 0.0
        %3313 = vmatprep.subr.mxu0 0.0
        %3314 = vmatpush1.msra.mxu0 %v3280
        %3315 = vmatprep.subr.mxu0 0.0
        %3316 = vmatpush1.msra.mxu0 %v3279
        %3317 = vmatprep.subr.mxu0 0.0
        %3318 = vmatpush1.msra.mxu0 %v3278
        %3319 = vmatprep.subr.mxu0 0.0
        %3320 = vmatpush1.msra.mxu0 %v3277
        %3321 = vmatprep.subr.mxu0 0.0
        %3322 = vmatpush2.msra.mxu0 0.0
        %3323 = vmatprep.subr.mxu0 0.0
        %3324 = vmatpush2.msra.mxu0 0.0
        %3325 = vmatprep.subr.mxu0 0.0
        %3326 = vmatpush2.msra.mxu0 0.0
        %3327 = vmatprep.subr.mxu0 0.0
        %3328 = vmatpush2.msra.mxu0 0.0
        %3329 = vmatprep.subr.mxu0 0.0
        %3330 = vmatpush2.msra.mxu0 0.0
        %3331 = vmatprep.subr.mxu0 0.0
        %3332 = vmatpush2.msra.mxu0 0.0
        %3333 = vmatprep.subr.mxu0 0.0
        %3334 = vmatpush2.msra.mxu0 0.0
        %3335 = vmatprep.subr.mxu0 0.0
        %3336 = vmatpush2.msra.mxu0 0.0
        %3337 = vmatprep.subr.mxu0 0.0
        %3338 = vmatpush2.msra.mxu0 0.0
        %3339 = vmatprep.subr.mxu0 0.0
        %3340 = vmatpush2.msra.mxu0 0.0
        %3341 = vmatprep.subr.mxu0 0.0
        %3342 = vmatpush2.msra.mxu0 0.0
        %3343 = vmatprep.subr.mxu0 0.0
        %3344 = vmatpush2.msra.mxu0 0.0
        %3345 = vmatprep.subr.mxu0 0.0
        %3346 = vmatpush2.msra.mxu0 0.0
        %3347 = vmatprep.subr.mxu0 0.0
        %3348 = vmatpush2.msra.mxu0 0.0
        %3349 = vmatprep.subr.mxu0 0.0
        %3350 = vmatpush2.msra.mxu0 0.0
        %3351 = vmatprep.subr.mxu0 0.0
        %3352 = vmatpush2.msra.mxu0 0.0
        %3353 = vmatprep.mubr.f32.mxu0 0.0
        %3354 = vmatmul.mubr.f32.gmra.mxu0 %v3083
        %v3355 = vpop.f32.mrf.mxu0
        %v3356 = vadd.f32 %v3287, %v3355
        %v3357 = vpop.f32.mrf.mxu0
        %3358 = vdwg.mxu0
        %s3359 = scalar_lea.vmem %s5, 288
        %v3360 = vld [vmem:[%s3359] sm:$0xff]
        %v3361 = vld [vmem:[%s3359 + $0x8] sm:$0xff]
        %v3362 = vld [vmem:[%s3359 + $0x10] sm:$0xff]
        %v3363 = vld [vmem:[%s3359 + $0x18] sm:$0xff]
        %s3364 = scalar_lea.vmem %s6, 9
        %v3365 = vld [vmem:[%s3364] sm:$0x1]
        %v3367 = vlaneseq
        %v3368 = vshrl.u32 %v3367, 7
        %v3369 = vsub.s32 0, %v3368
        %v3370 = vrot.slane %v3365, %v3369
        %v3373 = vsel %vm495, %v494, 0
        %3375 = vmatprep.subr.mxu0 0.0
        %3376 = vmatpush1.msra.mxu0 0.0
        %3377 = vmatprep.subr.mxu0 0.0
        %3378 = vmatpush1.msra.mxu0 0.0
        %3379 = vmatprep.subr.mxu0 0.0
        %3380 = vmatpush1.msra.mxu0 0.0
        %3381 = vmatprep.subr.mxu0 0.0
        %3382 = vmatpush1.msra.mxu0 0.0
        %3383 = vmatprep.subr.mxu0 0.0
        %3384 = vmatpush1.msra.mxu0 0.0
        %3385 = vmatprep.subr.mxu0 0.0
        %3386 = vmatpush1.msra.mxu0 0.0
        %3387 = vmatprep.subr.mxu0 0.0
        %3388 = vmatpush1.msra.mxu0 0.0
        %3389 = vmatprep.subr.mxu0 0.0
        %3390 = vmatpush1.msra.mxu0 0.0
        %3391 = vmatprep.subr.mxu0 0.0
        %3392 = vmatpush1.msra.mxu0 0.0
        %3393 = vmatprep.subr.mxu0 0.0
        %3394 = vmatpush1.msra.mxu0 0.0
        %3395 = vmatprep.subr.mxu0 0.0
        %3396 = vmatpush1.msra.mxu0 0.0
        %3397 = vmatprep.subr.mxu0 0.0
        %3398 = vmatpush1.msra.mxu0 0.0
        %3399 = vmatprep.subr.mxu0 0.0
        %3400 = vmatpush1.msra.mxu0 %v3363
        %3401 = vmatprep.subr.mxu0 0.0
        %3402 = vmatpush1.msra.mxu0 %v3362
        %3403 = vmatprep.subr.mxu0 0.0
        %3404 = vmatpush1.msra.mxu0 %v3361
        %3405 = vmatprep.subr.mxu0 0.0
        %3406 = vmatpush1.msra.mxu0 %v3360
        %3407 = vmatprep.subr.mxu0 0.0
        %3408 = vmatpush2.msra.mxu0 0.0
        %3409 = vmatprep.subr.mxu0 0.0
        %3410 = vmatpush2.msra.mxu0 0.0
        %3411 = vmatprep.subr.mxu0 0.0
        %3412 = vmatpush2.msra.mxu0 0.0
        %3413 = vmatprep.subr.mxu0 0.0
        %3414 = vmatpush2.msra.mxu0 0.0
        %3415 = vmatprep.subr.mxu0 0.0
        %3416 = vmatpush2.msra.mxu0 0.0
        %3417 = vmatprep.subr.mxu0 0.0
        %3418 = vmatpush2.msra.mxu0 0.0
        %3419 = vmatprep.subr.mxu0 0.0
        %3420 = vmatpush2.msra.mxu0 0.0
        %3421 = vmatprep.subr.mxu0 0.0
        %3422 = vmatpush2.msra.mxu0 0.0
        %3423 = vmatprep.subr.mxu0 0.0
        %3424 = vmatpush2.msra.mxu0 0.0
        %3425 = vmatprep.subr.mxu0 0.0
        %3426 = vmatpush2.msra.mxu0 0.0
        %3427 = vmatprep.subr.mxu0 0.0
        %3428 = vmatpush2.msra.mxu0 0.0
        %3429 = vmatprep.subr.mxu0 0.0
        %3430 = vmatpush2.msra.mxu0 0.0
        %3431 = vmatprep.subr.mxu0 0.0
        %3432 = vmatpush2.msra.mxu0 0.0
        %3433 = vmatprep.subr.mxu0 0.0
        %3434 = vmatpush2.msra.mxu0 0.0
        %3435 = vmatprep.subr.mxu0 0.0
        %3436 = vmatpush2.msra.mxu0 0.0
        %3437 = vmatprep.subr.mxu0 0.0
        %3438 = vmatpush2.msra.mxu0 0.0
        %3439 = vmatprep.mubr.f32.mxu0 0.0
        %3440 = vmatmul.mubr.f32.gmra.mxu0 %v3373
        %v3441 = vpop.f32.mrf.mxu0
        %v3442 = vadd.f32 %v3370, %v3441
        %v3443 = vpop.f32.mrf.mxu0
        %3444 = vdwg.mxu0
        %s3445 = scalar_lea.vmem %s5, 320
        %v3446 = vld [vmem:[%s3445] sm:$0xff]
        %v3447 = vld [vmem:[%s3445 + $0x8] sm:$0xff]
        %v3448 = vld [vmem:[%s3445 + $0x10] sm:$0xff]
        %v3449 = vld [vmem:[%s3445 + $0x18] sm:$0xff]
        %s3450 = scalar_lea.vmem %s6, 10
        %v3451 = vld [vmem:[%s3450] sm:$0x1]
        %v3453 = vlaneseq
        %v3454 = vshrl.u32 %v3453, 7
        %v3455 = vsub.s32 0, %v3454
        %v3456 = vrot.slane %v3451, %v3455
        %3458 = vmatprep.subr.mxu0 0.0
        %3459 = vmatpush1.msra.mxu0 0.0
        %3460 = vmatprep.subr.mxu0 0.0
        %3461 = vmatpush1.msra.mxu0 0.0
        %3462 = vmatprep.subr.mxu0 0.0
        %3463 = vmatpush1.msra.mxu0 0.0
        %3464 = vmatprep.subr.mxu0 0.0
        %3465 = vmatpush1.msra.mxu0 0.0
        %3466 = vmatprep.subr.mxu0 0.0
        %3467 = vmatpush1.msra.mxu0 0.0
        %3468 = vmatprep.subr.mxu0 0.0
        %3469 = vmatpush1.msra.mxu0 0.0
        %3470 = vmatprep.subr.mxu0 0.0
        %3471 = vmatpush1.msra.mxu0 0.0
        %3472 = vmatprep.subr.mxu0 0.0
        %3473 = vmatpush1.msra.mxu0 0.0
        %3474 = vmatprep.subr.mxu0 0.0
        %3475 = vmatpush1.msra.mxu0 0.0
        %3476 = vmatprep.subr.mxu0 0.0
        %3477 = vmatpush1.msra.mxu0 0.0
        %3478 = vmatprep.subr.mxu0 0.0
        %3479 = vmatpush1.msra.mxu0 0.0
        %3480 = vmatprep.subr.mxu0 0.0
        %3481 = vmatpush1.msra.mxu0 0.0
        %3482 = vmatprep.subr.mxu0 0.0
        %3483 = vmatpush1.msra.mxu0 %v3449
        %3484 = vmatprep.subr.mxu0 0.0
        %3485 = vmatpush1.msra.mxu0 %v3448
        %3486 = vmatprep.subr.mxu0 0.0
        %3487 = vmatpush1.msra.mxu0 %v3447
        %3488 = vmatprep.subr.mxu0 0.0
        %3489 = vmatpush1.msra.mxu0 %v3446
        %3490 = vmatprep.subr.mxu0 0.0
        %3491 = vmatpush2.msra.mxu0 0.0
        %3492 = vmatprep.subr.mxu0 0.0
        %3493 = vmatpush2.msra.mxu0 0.0
        %3494 = vmatprep.subr.mxu0 0.0
        %3495 = vmatpush2.msra.mxu0 0.0
        %3496 = vmatprep.subr.mxu0 0.0
        %3497 = vmatpush2.msra.mxu0 0.0
        %3498 = vmatprep.subr.mxu0 0.0
        %3499 = vmatpush2.msra.mxu0 0.0
        %3500 = vmatprep.subr.mxu0 0.0
        %3501 = vmatpush2.msra.mxu0 0.0
        %3502 = vmatprep.subr.mxu0 0.0
        %3503 = vmatpush2.msra.mxu0 0.0
        %3504 = vmatprep.subr.mxu0 0.0
        %3505 = vmatpush2.msra.mxu0 0.0
        %3506 = vmatprep.subr.mxu0 0.0
        %3507 = vmatpush2.msra.mxu0 0.0
        %3508 = vmatprep.subr.mxu0 0.0
        %3509 = vmatpush2.msra.mxu0 0.0
        %3510 = vmatprep.subr.mxu0 0.0
        %3511 = vmatpush2.msra.mxu0 0.0
        %3512 = vmatprep.subr.mxu0 0.0
        %3513 = vmatpush2.msra.mxu0 0.0
        %3514 = vmatprep.subr.mxu0 0.0
        %3515 = vmatpush2.msra.mxu0 0.0
        %3516 = vmatprep.subr.mxu0 0.0
        %3517 = vmatpush2.msra.mxu0 0.0
        %3518 = vmatprep.subr.mxu0 0.0
        %3519 = vmatpush2.msra.mxu0 0.0
        %3520 = vmatprep.subr.mxu0 0.0
        %3521 = vmatpush2.msra.mxu0 0.0
        %3522 = vmatprep.mubr.f32.mxu0 0.0
        %3523 = vmatmul.mubr.f32.gmra.mxu0 %v3373
        %v3524 = vpop.f32.mrf.mxu0
        %v3525 = vadd.f32 %v3456, %v3524
        %v3526 = vpop.f32.mrf.mxu0
        %3527 = vdwg.mxu0
        %s3528 = scalar_lea.vmem %s5, 352
        %v3529 = vld [vmem:[%s3528] sm:$0xff]
        %v3530 = vld [vmem:[%s3528 + $0x8] sm:$0xff]
        %v3531 = vld [vmem:[%s3528 + $0x10] sm:$0xff]
        %v3532 = vld [vmem:[%s3528 + $0x18] sm:$0xff]
        %v3534 = vsel %vm781, %v3356, 0
        %v3537 = vsel %vm781, %v3442, 0
        %3539 = vmatprep.subr.mxu0 0.0
        %3540 = vmatpush1.xpose.msra.mxu0 0.0
        %3541 = vmatprep.subr.mxu0 0.0
        %3542 = vmatpush1.xpose.msra.mxu0 0.0
        %3543 = vmatprep.subr.mxu0 0.0
        %3544 = vmatpush1.xpose.msra.mxu0 0.0
        %3545 = vmatprep.subr.mxu0 0.0
        %3546 = vmatpush1.xpose.msra.mxu0 0.0
        %3547 = vmatprep.subr.mxu0 0.0
        %3548 = vmatpush1.xpose.msra.mxu0 0.0
        %3549 = vmatprep.subr.mxu0 0.0
        %3550 = vmatpush1.xpose.msra.mxu0 0.0
        %3551 = vmatprep.subr.mxu0 0.0
        %3552 = vmatpush1.xpose.msra.mxu0 0.0
        %3553 = vmatprep.subr.mxu0 0.0
        %3554 = vmatpush1.xpose.msra.mxu0 0.0
        %3555 = vmatprep.subr.mxu0 0.0
        %3556 = vmatpush1.xpose.msra.mxu0 0.0
        %3557 = vmatprep.subr.mxu0 0.0
        %3558 = vmatpush1.xpose.msra.mxu0 0.0
        %3559 = vmatprep.subr.mxu0 0.0
        %3560 = vmatpush1.xpose.msra.mxu0 0.0
        %3561 = vmatprep.subr.mxu0 0.0
        %3562 = vmatpush1.xpose.msra.mxu0 0.0
        %3563 = vmatprep.subr.mxu0 0.0
        %3564 = vmatpush1.xpose.msra.mxu0 0.0
        %3565 = vmatprep.subr.mxu0 0.0
        %3566 = vmatpush1.xpose.msra.mxu0 0.0
        %3567 = vmatprep.subr.mxu0 0.0
        %3568 = vmatpush1.xpose.msra.mxu0 0.0
        %3569 = vmatprep.subr.mxu0 0.0
        %3570 = vmatpush1.xpose.msra.mxu0 %v3537
        %3571 = vmatprep.subr.mxu0 0.0
        %3572 = vmatpush2.xpose.msra.mxu0 0.0
        %3573 = vmatprep.subr.mxu0 0.0
        %3574 = vmatpush2.xpose.msra.mxu0 0.0
        %3575 = vmatprep.subr.mxu0 0.0
        %3576 = vmatpush2.xpose.msra.mxu0 0.0
        %3577 = vmatprep.subr.mxu0 0.0
        %3578 = vmatpush2.xpose.msra.mxu0 0.0
        %3579 = vmatprep.subr.mxu0 0.0
        %3580 = vmatpush2.xpose.msra.mxu0 0.0
        %3581 = vmatprep.subr.mxu0 0.0
        %3582 = vmatpush2.xpose.msra.mxu0 0.0
        %3583 = vmatprep.subr.mxu0 0.0
        %3584 = vmatpush2.xpose.msra.mxu0 0.0
        %3585 = vmatprep.subr.mxu0 0.0
        %3586 = vmatpush2.xpose.msra.mxu0 0.0
        %3587 = vmatprep.subr.mxu0 0.0
        %3588 = vmatpush2.xpose.msra.mxu0 0.0
        %3589 = vmatprep.subr.mxu0 0.0
        %3590 = vmatpush2.xpose.msra.mxu0 0.0
        %3591 = vmatprep.subr.mxu0 0.0
        %3592 = vmatpush2.xpose.msra.mxu0 0.0
        %3593 = vmatprep.subr.mxu0 0.0
        %3594 = vmatpush2.xpose.msra.mxu0 0.0
        %3595 = vmatprep.subr.mxu0 0.0
        %3596 = vmatpush2.xpose.msra.mxu0 0.0
        %3597 = vmatprep.subr.mxu0 0.0
        %3598 = vmatpush2.xpose.msra.mxu0 0.0
        %3599 = vmatprep.subr.mxu0 0.0
        %3600 = vmatpush2.xpose.msra.mxu0 0.0
        %3601 = vmatprep.subr.mxu0 0.0
        %3602 = vmatpush2.xpose.msra.mxu0 0.0
        %3603 = vmatprep.mubr.f32.mxu0 0.0
        %3604 = vmatmul.mubr.f32.gmra.mxu0 %v3534
        %v3605 = vpop.f32.mrf.mxu0
        %v3606 = vadd.f32 0.0, %v3605
        %v3607 = vpop.f32.mrf.mxu0
        %3608 = vdwg.mxu0
        %v3609 = vmul.f32 %v3606, 0.35355338
        %v3610 = vsel %vm781, %v3609, -inf
        %3611 = vmax.xlane.f32.xlu0 %v3610
        %v3612 = vpop.xlane.xlu0 %3611
        %v3613 = vsub.f32 %v3609, %v3612
        %v3614 = vmul.f32 %v3613, 1.442695
        %v3615 = vpow.pop %v3614
        %v3616 = vsel %vm781, %v3615, 0.0
        %3617 = vadd.xlane.f32.xlu0 %v3616
        %v3618 = vpop.xlane.xlu0 %3617
        %v3619 = vrcp.pop %v3618
        %v3620 = vmul.f32 %v3615, %v3619
        %v3622 = vsel %vm781, %v3620, 0
        %3624 = vmatprep.subr.mxu0 0.0
        %3625 = vmatpush1.msra.mxu0 0.0
        %3626 = vmatprep.subr.mxu0 0.0
        %3627 = vmatpush1.msra.mxu0 0.0
        %3628 = vmatprep.subr.mxu0 0.0
        %3629 = vmatpush1.msra.mxu0 0.0
        %3630 = vmatprep.subr.mxu0 0.0
        %3631 = vmatpush1.msra.mxu0 0.0
        %3632 = vmatprep.subr.mxu0 0.0
        %3633 = vmatpush1.msra.mxu0 0.0
        %3634 = vmatprep.subr.mxu0 0.0
        %3635 = vmatpush1.msra.mxu0 0.0
        %3636 = vmatprep.subr.mxu0 0.0
        %3637 = vmatpush1.msra.mxu0 0.0
        %3638 = vmatprep.subr.mxu0 0.0
        %3639 = vmatpush1.msra.mxu0 0.0
        %3640 = vmatprep.subr.mxu0 0.0
        %3641 = vmatpush1.msra.mxu0 0.0
        %3642 = vmatprep.subr.mxu0 0.0
        %3643 = vmatpush1.msra.mxu0 0.0
        %3644 = vmatprep.subr.mxu0 0.0
        %3645 = vmatpush1.msra.mxu0 0.0
        %3646 = vmatprep.subr.mxu0 0.0
        %3647 = vmatpush1.msra.mxu0 0.0
        %3648 = vmatprep.subr.mxu0 0.0
        %3649 = vmatpush1.msra.mxu0 0.0
        %3650 = vmatprep.subr.mxu0 0.0
        %3651 = vmatpush1.msra.mxu0 0.0
        %3652 = vmatprep.subr.mxu0 0.0
        %3653 = vmatpush1.msra.mxu0 0.0
        %3654 = vmatprep.subr.mxu0 0.0
        %3655 = vmatpush1.msra.mxu0 %v3525
        %3656 = vmatprep.subr.mxu0 0.0
        %3657 = vmatpush2.msra.mxu0 0.0
        %3658 = vmatprep.subr.mxu0 0.0
        %3659 = vmatpush2.msra.mxu0 0.0
        %3660 = vmatprep.subr.mxu0 0.0
        %3661 = vmatpush2.msra.mxu0 0.0
        %3662 = vmatprep.subr.mxu0 0.0
        %3663 = vmatpush2.msra.mxu0 0.0
        %3664 = vmatprep.subr.mxu0 0.0
        %3665 = vmatpush2.msra.mxu0 0.0
        %3666 = vmatprep.subr.mxu0 0.0
        %3667 = vmatpush2.msra.mxu0 0.0
        %3668 = vmatprep.subr.mxu0 0.0
        %3669 = vmatpush2.msra.mxu0 0.0
        %3670 = vmatprep.subr.mxu0 0.0
        %3671 = vmatpush2.msra.mxu0 0.0
        %3672 = vmatprep.subr.mxu0 0.0
        %3673 = vmatpush2.msra.mxu0 0.0
        %3674 = vmatprep.subr.mxu0 0.0
        %3675 = vmatpush2.msra.mxu0 0.0
        %3676 = vmatprep.subr.mxu0 0.0
        %3677 = vmatpush2.msra.mxu0 0.0
        %3678 = vmatprep.subr.mxu0 0.0
        %3679 = vmatpush2.msra.mxu0 0.0
        %3680 = vmatprep.subr.mxu0 0.0
        %3681 = vmatpush2.msra.mxu0 0.0
        %3682 = vmatprep.subr.mxu0 0.0
        %3683 = vmatpush2.msra.mxu0 0.0
        %3684 = vmatprep.subr.mxu0 0.0
        %3685 = vmatpush2.msra.mxu0 0.0
        %3686 = vmatprep.subr.mxu0 0.0
        %3687 = vmatpush2.msra.mxu0 0.0
        %3688 = vmatprep.mubr.f32.mxu0 0.0
        %3689 = vmatmul.mubr.f32.gmra.mxu0 %v3622
        %v3690 = vpop.f32.mrf.mxu0
        %v3691 = vadd.f32 0.0, %v3690
        %v3692 = vpop.f32.mrf.mxu0
        %3693 = vdwg.mxu0
        %3694 = vrot.lane.b32.xlu0 %v3356, 120
        %v3695 = vpop.permute.xlu0 %3694
        %3696 = vrot.lane.b32.xlu0 %v3442, 120
        %v3697 = vpop.permute.xlu0 %3696
        %v3698 = vsel %vm781, %v3695, 0
        %v3700 = vsel %vm781, %v3697, 0
        %3702 = vmatprep.subr.mxu0 0.0
        %3703 = vmatpush1.xpose.msra.mxu0 0.0
        %3704 = vmatprep.subr.mxu0 0.0
        %3705 = vmatpush1.xpose.msra.mxu0 0.0
        %3706 = vmatprep.subr.mxu0 0.0
        %3707 = vmatpush1.xpose.msra.mxu0 0.0
        %3708 = vmatprep.subr.mxu0 0.0
        %3709 = vmatpush1.xpose.msra.mxu0 0.0
        %3710 = vmatprep.subr.mxu0 0.0
        %3711 = vmatpush1.xpose.msra.mxu0 0.0
        %3712 = vmatprep.subr.mxu0 0.0
        %3713 = vmatpush1.xpose.msra.mxu0 0.0
        %3714 = vmatprep.subr.mxu0 0.0
        %3715 = vmatpush1.xpose.msra.mxu0 0.0
        %3716 = vmatprep.subr.mxu0 0.0
        %3717 = vmatpush1.xpose.msra.mxu0 0.0
        %3718 = vmatprep.subr.mxu0 0.0
        %3719 = vmatpush1.xpose.msra.mxu0 0.0
        %3720 = vmatprep.subr.mxu0 0.0
        %3721 = vmatpush1.xpose.msra.mxu0 0.0
        %3722 = vmatprep.subr.mxu0 0.0
        %3723 = vmatpush1.xpose.msra.mxu0 0.0
        %3724 = vmatprep.subr.mxu0 0.0
        %3725 = vmatpush1.xpose.msra.mxu0 0.0
        %3726 = vmatprep.subr.mxu0 0.0
        %3727 = vmatpush1.xpose.msra.mxu0 0.0
        %3728 = vmatprep.subr.mxu0 0.0
        %3729 = vmatpush1.xpose.msra.mxu0 0.0
        %3730 = vmatprep.subr.mxu0 0.0
        %3731 = vmatpush1.xpose.msra.mxu0 0.0
        %3732 = vmatprep.subr.mxu0 0.0
        %3733 = vmatpush1.xpose.msra.mxu0 %v3700
        %3734 = vmatprep.subr.mxu0 0.0
        %3735 = vmatpush2.xpose.msra.mxu0 0.0
        %3736 = vmatprep.subr.mxu0 0.0
        %3737 = vmatpush2.xpose.msra.mxu0 0.0
        %3738 = vmatprep.subr.mxu0 0.0
        %3739 = vmatpush2.xpose.msra.mxu0 0.0
        %3740 = vmatprep.subr.mxu0 0.0
        %3741 = vmatpush2.xpose.msra.mxu0 0.0
        %3742 = vmatprep.subr.mxu0 0.0
        %3743 = vmatpush2.xpose.msra.mxu0 0.0
        %3744 = vmatprep.subr.mxu0 0.0
        %3745 = vmatpush2.xpose.msra.mxu0 0.0
        %3746 = vmatprep.subr.mxu0 0.0
        %3747 = vmatpush2.xpose.msra.mxu0 0.0
        %3748 = vmatprep.subr.mxu0 0.0
        %3749 = vmatpush2.xpose.msra.mxu0 0.0
        %3750 = vmatprep.subr.mxu0 0.0
        %3751 = vmatpush2.xpose.msra.mxu0 0.0
        %3752 = vmatprep.subr.mxu0 0.0
        %3753 = vmatpush2.xpose.msra.mxu0 0.0
        %3754 = vmatprep.subr.mxu0 0.0
        %3755 = vmatpush2.xpose.msra.mxu0 0.0
        %3756 = vmatprep.subr.mxu0 0.0
        %3757 = vmatpush2.xpose.msra.mxu0 0.0
        %3758 = vmatprep.subr.mxu0 0.0
        %3759 = vmatpush2.xpose.msra.mxu0 0.0
        %3760 = vmatprep.subr.mxu0 0.0
        %3761 = vmatpush2.xpose.msra.mxu0 0.0
        %3762 = vmatprep.subr.mxu0 0.0
        %3763 = vmatpush2.xpose.msra.mxu0 0.0
        %3764 = vmatprep.subr.mxu0 0.0
        %3765 = vmatpush2.xpose.msra.mxu0 0.0
        %3766 = vmatprep.mubr.f32.mxu0 0.0
        %3767 = vmatmul.mubr.f32.gmra.mxu0 %v3698
        %v3768 = vpop.f32.mrf.mxu0
        %v3769 = vadd.f32 0.0, %v3768
        %v3770 = vpop.f32.mrf.mxu0
        %3771 = vdwg.mxu0
        %v3772 = vmul.f32 %v3769, 0.35355338
        %v3773 = vsel %vm781, %v3772, -inf
        %3774 = vmax.xlane.f32.xlu0 %v3773
        %v3775 = vpop.xlane.xlu0 %3774
        %v3776 = vsub.f32 %v3772, %v3775
        %v3777 = vmul.f32 %v3776, 1.442695
        %v3778 = vpow.pop %v3777
        %v3779 = vsel %vm781, %v3778, 0.0
        %3780 = vadd.xlane.f32.xlu0 %v3779
        %v3781 = vpop.xlane.xlu0 %3780
        %v3782 = vrcp.pop %v3781
        %v3783 = vmul.f32 %v3778, %v3782
        %3785 = vrot.lane.b32.xlu0 %v3525, 120
        %v3786 = vpop.permute.xlu0 %3785
        %v3789 = vsel %vm781, %v3783, 0
        %3791 = vmatprep.subr.mxu0 0.0
        %3792 = vmatpush1.msra.mxu0 0.0
        %3793 = vmatprep.subr.mxu0 0.0
        %3794 = vmatpush1.msra.mxu0 0.0
        %3795 = vmatprep.subr.mxu0 0.0
        %3796 = vmatpush1.msra.mxu0 0.0
        %3797 = vmatprep.subr.mxu0 0.0
        %3798 = vmatpush1.msra.mxu0 0.0
        %3799 = vmatprep.subr.mxu0 0.0
        %3800 = vmatpush1.msra.mxu0 0.0
        %3801 = vmatprep.subr.mxu0 0.0
        %3802 = vmatpush1.msra.mxu0 0.0
        %3803 = vmatprep.subr.mxu0 0.0
        %3804 = vmatpush1.msra.mxu0 0.0
        %3805 = vmatprep.subr.mxu0 0.0
        %3806 = vmatpush1.msra.mxu0 0.0
        %3807 = vmatprep.subr.mxu0 0.0
        %3808 = vmatpush1.msra.mxu0 0.0
        %3809 = vmatprep.subr.mxu0 0.0
        %3810 = vmatpush1.msra.mxu0 0.0
        %3811 = vmatprep.subr.mxu0 0.0
        %3812 = vmatpush1.msra.mxu0 0.0
        %3813 = vmatprep.subr.mxu0 0.0
        %3814 = vmatpush1.msra.mxu0 0.0
        %3815 = vmatprep.subr.mxu0 0.0
        %3816 = vmatpush1.msra.mxu0 0.0
        %3817 = vmatprep.subr.mxu0 0.0
        %3818 = vmatpush1.msra.mxu0 0.0
        %3819 = vmatprep.subr.mxu0 0.0
        %3820 = vmatpush1.msra.mxu0 0.0
        %3821 = vmatprep.subr.mxu0 0.0
        %3822 = vmatpush1.msra.mxu0 %v3786
        %3823 = vmatprep.subr.mxu0 0.0
        %3824 = vmatpush2.msra.mxu0 0.0
        %3825 = vmatprep.subr.mxu0 0.0
        %3826 = vmatpush2.msra.mxu0 0.0
        %3827 = vmatprep.subr.mxu0 0.0
        %3828 = vmatpush2.msra.mxu0 0.0
        %3829 = vmatprep.subr.mxu0 0.0
        %3830 = vmatpush2.msra.mxu0 0.0
        %3831 = vmatprep.subr.mxu0 0.0
        %3832 = vmatpush2.msra.mxu0 0.0
        %3833 = vmatprep.subr.mxu0 0.0
        %3834 = vmatpush2.msra.mxu0 0.0
        %3835 = vmatprep.subr.mxu0 0.0
        %3836 = vmatpush2.msra.mxu0 0.0
        %3837 = vmatprep.subr.mxu0 0.0
        %3838 = vmatpush2.msra.mxu0 0.0
        %3839 = vmatprep.subr.mxu0 0.0
        %3840 = vmatpush2.msra.mxu0 0.0
        %3841 = vmatprep.subr.mxu0 0.0
        %3842 = vmatpush2.msra.mxu0 0.0
        %3843 = vmatprep.subr.mxu0 0.0
        %3844 = vmatpush2.msra.mxu0 0.0
        %3845 = vmatprep.subr.mxu0 0.0
        %3846 = vmatpush2.msra.mxu0 0.0
        %3847 = vmatprep.subr.mxu0 0.0
        %3848 = vmatpush2.msra.mxu0 0.0
        %3849 = vmatprep.subr.mxu0 0.0
        %3850 = vmatpush2.msra.mxu0 0.0
        %3851 = vmatprep.subr.mxu0 0.0
        %3852 = vmatpush2.msra.mxu0 0.0
        %3853 = vmatprep.subr.mxu0 0.0
        %3854 = vmatpush2.msra.mxu0 0.0
        %3855 = vmatprep.mubr.f32.mxu0 0.0
        %3856 = vmatmul.mubr.f32.gmra.mxu0 %v3789
        %v3857 = vpop.f32.mrf.mxu0
        %v3858 = vadd.f32 0.0, %v3857
        %v3859 = vpop.f32.mrf.mxu0
        %3860 = vdwg.mxu0
        %v3862 = vsel %vm781, %v3858, 0
        %3864 = vmatprep.subr.mxu0 0.0
        %3865 = vmatpush1.msra.mxu0 0.0
        %3866 = vmatprep.subr.mxu0 0.0
        %3867 = vmatpush1.msra.mxu0 0.0
        %3868 = vmatprep.subr.mxu0 0.0
        %3869 = vmatpush1.msra.mxu0 0.0
        %3870 = vmatprep.subr.mxu0 0.0
        %3871 = vmatpush1.msra.mxu0 0.0
        %3872 = vmatprep.subr.mxu0 0.0
        %3873 = vmatpush1.msra.mxu0 0.0
        %3874 = vmatprep.subr.mxu0 0.0
        %3875 = vmatpush1.msra.mxu0 0.0
        %3876 = vmatprep.subr.mxu0 0.0
        %3877 = vmatpush1.msra.mxu0 0.0
        %3878 = vmatprep.subr.mxu0 0.0
        %3879 = vmatpush1.msra.mxu0 0.0
        %3880 = vmatprep.subr.mxu0 0.0
        %3881 = vmatpush1.msra.mxu0 0.0
        %3882 = vmatprep.subr.mxu0 0.0
        %3883 = vmatpush1.msra.mxu0 0.0
        %3884 = vmatprep.subr.mxu0 0.0
        %3885 = vmatpush1.msra.mxu0 0.0
        %3886 = vmatprep.subr.mxu0 0.0
        %3887 = vmatpush1.msra.mxu0 0.0
        %3888 = vmatprep.subr.mxu0 0.0
        %3889 = vmatpush1.msra.mxu0 0.0
        %3890 = vmatprep.subr.mxu0 0.0
        %3891 = vmatpush1.msra.mxu0 0.0
        %3892 = vmatprep.subr.mxu0 0.0
        %3893 = vmatpush1.msra.mxu0 0.0
        %3894 = vmatprep.subr.mxu0 0.0
        %3895 = vmatpush1.msra.mxu0 %v3530
        %3896 = vmatprep.subr.mxu0 0.0
        %3897 = vmatpush2.msra.mxu0 0.0
        %3898 = vmatprep.subr.mxu0 0.0
        %3899 = vmatpush2.msra.mxu0 0.0
        %3900 = vmatprep.subr.mxu0 0.0
        %3901 = vmatpush2.msra.mxu0 0.0
        %3902 = vmatprep.subr.mxu0 0.0
        %3903 = vmatpush2.msra.mxu0 0.0
        %3904 = vmatprep.subr.mxu0 0.0
        %3905 = vmatpush2.msra.mxu0 0.0
        %3906 = vmatprep.subr.mxu0 0.0
        %3907 = vmatpush2.msra.mxu0 0.0
        %3908 = vmatprep.subr.mxu0 0.0
        %3909 = vmatpush2.msra.mxu0 0.0
        %3910 = vmatprep.subr.mxu0 0.0
        %3911 = vmatpush2.msra.mxu0 0.0
        %3912 = vmatprep.subr.mxu0 0.0
        %3913 = vmatpush2.msra.mxu0 0.0
        %3914 = vmatprep.subr.mxu0 0.0
        %3915 = vmatpush2.msra.mxu0 0.0
        %3916 = vmatprep.subr.mxu0 0.0
        %3917 = vmatpush2.msra.mxu0 0.0
        %3918 = vmatprep.subr.mxu0 0.0
        %3919 = vmatpush2.msra.mxu0 0.0
        %3920 = vmatprep.subr.mxu0 0.0
        %3921 = vmatpush2.msra.mxu0 0.0
        %3922 = vmatprep.subr.mxu0 0.0
        %3923 = vmatpush2.msra.mxu0 0.0
        %3924 = vmatprep.subr.mxu0 0.0
        %3925 = vmatpush2.msra.mxu0 0.0
        %3926 = vmatprep.subr.mxu0 0.0
        %3927 = vmatpush2.msra.mxu0 0.0
        %3928 = vmatprep.mubr.f32.mxu0 0.0
        %3929 = vmatmul.mubr.f32.gmra.mxu0 %v3862
        %v3930 = vpop.f32.mrf.mxu0
        %v3931 = vadd.f32 0.0, %v3930
        %v3932 = vpop.f32.mrf.mxu0
        %3933 = vdwg.mxu0
        %v3935 = vsel %vm781, %v3691, 0
        %3937 = vmatprep.subr.mxu0 0.0
        %3938 = vmatpush1.msra.mxu0 0.0
        %3939 = vmatprep.subr.mxu0 0.0
        %3940 = vmatpush1.msra.mxu0 0.0
        %3941 = vmatprep.subr.mxu0 0.0
        %3942 = vmatpush1.msra.mxu0 0.0
        %3943 = vmatprep.subr.mxu0 0.0
        %3944 = vmatpush1.msra.mxu0 0.0
        %3945 = vmatprep.subr.mxu0 0.0
        %3946 = vmatpush1.msra.mxu0 0.0
        %3947 = vmatprep.subr.mxu0 0.0
        %3948 = vmatpush1.msra.mxu0 0.0
        %3949 = vmatprep.subr.mxu0 0.0
        %3950 = vmatpush1.msra.mxu0 0.0
        %3951 = vmatprep.subr.mxu0 0.0
        %3952 = vmatpush1.msra.mxu0 0.0
        %3953 = vmatprep.subr.mxu0 0.0
        %3954 = vmatpush1.msra.mxu0 0.0
        %3955 = vmatprep.subr.mxu0 0.0
        %3956 = vmatpush1.msra.mxu0 0.0
        %3957 = vmatprep.subr.mxu0 0.0
        %3958 = vmatpush1.msra.mxu0 0.0
        %3959 = vmatprep.subr.mxu0 0.0
        %3960 = vmatpush1.msra.mxu0 0.0
        %3961 = vmatprep.subr.mxu0 0.0
        %3962 = vmatpush1.msra.mxu0 0.0
        %3963 = vmatprep.subr.mxu0 0.0
        %3964 = vmatpush1.msra.mxu0 0.0
        %3965 = vmatprep.subr.mxu0 0.0
        %3966 = vmatpush1.msra.mxu0 0.0
        %3967 = vmatprep.subr.mxu0 0.0
        %3968 = vmatpush1.msra.mxu0 %v3529
        %3969 = vmatprep.subr.mxu0 0.0
        %3970 = vmatpush2.msra.mxu0 0.0
        %3971 = vmatprep.subr.mxu0 0.0
        %3972 = vmatpush2.msra.mxu0 0.0
        %3973 = vmatprep.subr.mxu0 0.0
        %3974 = vmatpush2.msra.mxu0 0.0
        %3975 = vmatprep.subr.mxu0 0.0
        %3976 = vmatpush2.msra.mxu0 0.0
        %3977 = vmatprep.subr.mxu0 0.0
        %3978 = vmatpush2.msra.mxu0 0.0
        %3979 = vmatprep.subr.mxu0 0.0
        %3980 = vmatpush2.msra.mxu0 0.0
        %3981 = vmatprep.subr.mxu0 0.0
        %3982 = vmatpush2.msra.mxu0 0.0
        %3983 = vmatprep.subr.mxu0 0.0
        %3984 = vmatpush2.msra.mxu0 0.0
        %3985 = vmatprep.subr.mxu0 0.0
        %3986 = vmatpush2.msra.mxu0 0.0
        %3987 = vmatprep.subr.mxu0 0.0
        %3988 = vmatpush2.msra.mxu0 0.0
        %3989 = vmatprep.subr.mxu0 0.0
        %3990 = vmatpush2.msra.mxu0 0.0
        %3991 = vmatprep.subr.mxu0 0.0
        %3992 = vmatpush2.msra.mxu0 0.0
        %3993 = vmatprep.subr.mxu0 0.0
        %3994 = vmatpush2.msra.mxu0 0.0
        %3995 = vmatprep.subr.mxu0 0.0
        %3996 = vmatpush2.msra.mxu0 0.0
        %3997 = vmatprep.subr.mxu0 0.0
        %3998 = vmatpush2.msra.mxu0 0.0
        %3999 = vmatprep.subr.mxu0 0.0
        %4000 = vmatpush2.msra.mxu0 0.0
        %4001 = vmatprep.mubr.f32.mxu0 0.0
        %4002 = vmatmul.mubr.f32.gmra.mxu0 %v3935
        %v4003 = vpop.f32.mrf.mxu0
        %v4004 = vadd.f32 %v3931, %v4003
        %v4005 = vpop.f32.mrf.mxu0
        %4006 = vdwg.mxu0
        %4007 = vrot.lane.b32.xlu0 %v3356, 112
        %v4008 = vpop.permute.xlu0 %4007
        %4009 = vrot.lane.b32.xlu0 %v3442, 112
        %v4010 = vpop.permute.xlu0 %4009
        %v4011 = vsel %vm781, %v4008, 0
        %v4013 = vsel %vm781, %v4010, 0
        %4015 = vmatprep.subr.mxu0 0.0
        %4016 = vmatpush1.xpose.msra.mxu0 0.0
        %4017 = vmatprep.subr.mxu0 0.0
        %4018 = vmatpush1.xpose.msra.mxu0 0.0
        %4019 = vmatprep.subr.mxu0 0.0
        %4020 = vmatpush1.xpose.msra.mxu0 0.0
        %4021 = vmatprep.subr.mxu0 0.0
        %4022 = vmatpush1.xpose.msra.mxu0 0.0
        %4023 = vmatprep.subr.mxu0 0.0
        %4024 = vmatpush1.xpose.msra.mxu0 0.0
        %4025 = vmatprep.subr.mxu0 0.0
        %4026 = vmatpush1.xpose.msra.mxu0 0.0
        %4027 = vmatprep.subr.mxu0 0.0
        %4028 = vmatpush1.xpose.msra.mxu0 0.0
        %4029 = vmatprep.subr.mxu0 0.0
        %4030 = vmatpush1.xpose.msra.mxu0 0.0
        %4031 = vmatprep.subr.mxu0 0.0
        %4032 = vmatpush1.xpose.msra.mxu0 0.0
        %4033 = vmatprep.subr.mxu0 0.0
        %4034 = vmatpush1.xpose.msra.mxu0 0.0
        %4035 = vmatprep.subr.mxu0 0.0
        %4036 = vmatpush1.xpose.msra.mxu0 0.0
        %4037 = vmatprep.subr.mxu0 0.0
        %4038 = vmatpush1.xpose.msra.mxu0 0.0
        %4039 = vmatprep.subr.mxu0 0.0
        %4040 = vmatpush1.xpose.msra.mxu0 0.0
        %4041 = vmatprep.subr.mxu0 0.0
        %4042 = vmatpush1.xpose.msra.mxu0 0.0
        %4043 = vmatprep.subr.mxu0 0.0
        %4044 = vmatpush1.xpose.msra.mxu0 0.0
        %4045 = vmatprep.subr.mxu0 0.0
        %4046 = vmatpush1.xpose.msra.mxu0 %v4013
        %4047 = vmatprep.subr.mxu0 0.0
        %4048 = vmatpush2.xpose.msra.mxu0 0.0
        %4049 = vmatprep.subr.mxu0 0.0
        %4050 = vmatpush2.xpose.msra.mxu0 0.0
        %4051 = vmatprep.subr.mxu0 0.0
        %4052 = vmatpush2.xpose.msra.mxu0 0.0
        %4053 = vmatprep.subr.mxu0 0.0
        %4054 = vmatpush2.xpose.msra.mxu0 0.0
        %4055 = vmatprep.subr.mxu0 0.0
        %4056 = vmatpush2.xpose.msra.mxu0 0.0
        %4057 = vmatprep.subr.mxu0 0.0
        %4058 = vmatpush2.xpose.msra.mxu0 0.0
        %4059 = vmatprep.subr.mxu0 0.0
        %4060 = vmatpush2.xpose.msra.mxu0 0.0
        %4061 = vmatprep.subr.mxu0 0.0
        %4062 = vmatpush2.xpose.msra.mxu0 0.0
        %4063 = vmatprep.subr.mxu0 0.0
        %4064 = vmatpush2.xpose.msra.mxu0 0.0
        %4065 = vmatprep.subr.mxu0 0.0
        %4066 = vmatpush2.xpose.msra.mxu0 0.0
        %4067 = vmatprep.subr.mxu0 0.0
        %4068 = vmatpush2.xpose.msra.mxu0 0.0
        %4069 = vmatprep.subr.mxu0 0.0
        %4070 = vmatpush2.xpose.msra.mxu0 0.0
        %4071 = vmatprep.subr.mxu0 0.0
        %4072 = vmatpush2.xpose.msra.mxu0 0.0
        %4073 = vmatprep.subr.mxu0 0.0
        %4074 = vmatpush2.xpose.msra.mxu0 0.0
        %4075 = vmatprep.subr.mxu0 0.0
        %4076 = vmatpush2.xpose.msra.mxu0 0.0
        %4077 = vmatprep.subr.mxu0 0.0
        %4078 = vmatpush2.xpose.msra.mxu0 0.0
        %4079 = vmatprep.mubr.f32.mxu0 0.0
        %4080 = vmatmul.mubr.f32.gmra.mxu0 %v4011
        %v4081 = vpop.f32.mrf.mxu0
        %v4082 = vadd.f32 0.0, %v4081
        %v4083 = vpop.f32.mrf.mxu0
        %4084 = vdwg.mxu0
        %v4085 = vmul.f32 %v4082, 0.35355338
        %v4086 = vsel %vm781, %v4085, -inf
        %4087 = vmax.xlane.f32.xlu0 %v4086
        %v4088 = vpop.xlane.xlu0 %4087
        %v4089 = vsub.f32 %v4085, %v4088
        %v4090 = vmul.f32 %v4089, 1.442695
        %v4091 = vpow.pop %v4090
        %v4092 = vsel %vm781, %v4091, 0.0
        %4093 = vadd.xlane.f32.xlu0 %v4092
        %v4094 = vpop.xlane.xlu0 %4093
        %v4095 = vrcp.pop %v4094
        %v4096 = vmul.f32 %v4091, %v4095
        %4097 = vrot.lane.b32.xlu0 %v3525, 112
        %v4098 = vpop.permute.xlu0 %4097
        %v4101 = vsel %vm781, %v4096, 0
        %4103 = vmatprep.subr.mxu0 0.0
        %4104 = vmatpush1.msra.mxu0 0.0
        %4105 = vmatprep.subr.mxu0 0.0
        %4106 = vmatpush1.msra.mxu0 0.0
        %4107 = vmatprep.subr.mxu0 0.0
        %4108 = vmatpush1.msra.mxu0 0.0
        %4109 = vmatprep.subr.mxu0 0.0
        %4110 = vmatpush1.msra.mxu0 0.0
        %4111 = vmatprep.subr.mxu0 0.0
        %4112 = vmatpush1.msra.mxu0 0.0
        %4113 = vmatprep.subr.mxu0 0.0
        %4114 = vmatpush1.msra.mxu0 0.0
        %4115 = vmatprep.subr.mxu0 0.0
        %4116 = vmatpush1.msra.mxu0 0.0
        %4117 = vmatprep.subr.mxu0 0.0
        %4118 = vmatpush1.msra.mxu0 0.0
        %4119 = vmatprep.subr.mxu0 0.0
        %4120 = vmatpush1.msra.mxu0 0.0
        %4121 = vmatprep.subr.mxu0 0.0
        %4122 = vmatpush1.msra.mxu0 0.0
        %4123 = vmatprep.subr.mxu0 0.0
        %4124 = vmatpush1.msra.mxu0 0.0
        %4125 = vmatprep.subr.mxu0 0.0
        %4126 = vmatpush1.msra.mxu0 0.0
        %4127 = vmatprep.subr.mxu0 0.0
        %4128 = vmatpush1.msra.mxu0 0.0
        %4129 = vmatprep.subr.mxu0 0.0
        %4130 = vmatpush1.msra.mxu0 0.0
        %4131 = vmatprep.subr.mxu0 0.0
        %4132 = vmatpush1.msra.mxu0 0.0
        %4133 = vmatprep.subr.mxu0 0.0
        %4134 = vmatpush1.msra.mxu0 %v4098
        %4135 = vmatprep.subr.mxu0 0.0
        %4136 = vmatpush2.msra.mxu0 0.0
        %4137 = vmatprep.subr.mxu0 0.0
        %4138 = vmatpush2.msra.mxu0 0.0
        %4139 = vmatprep.subr.mxu0 0.0
        %4140 = vmatpush2.msra.mxu0 0.0
        %4141 = vmatprep.subr.mxu0 0.0
        %4142 = vmatpush2.msra.mxu0 0.0
        %4143 = vmatprep.subr.mxu0 0.0
        %4144 = vmatpush2.msra.mxu0 0.0
        %4145 = vmatprep.subr.mxu0 0.0
        %4146 = vmatpush2.msra.mxu0 0.0
        %4147 = vmatprep.subr.mxu0 0.0
        %4148 = vmatpush2.msra.mxu0 0.0
        %4149 = vmatprep.subr.mxu0 0.0
        %4150 = vmatpush2.msra.mxu0 0.0
        %4151 = vmatprep.subr.mxu0 0.0
        %4152 = vmatpush2.msra.mxu0 0.0
        %4153 = vmatprep.subr.mxu0 0.0
        %4154 = vmatpush2.msra.mxu0 0.0
        %4155 = vmatprep.subr.mxu0 0.0
        %4156 = vmatpush2.msra.mxu0 0.0
        %4157 = vmatprep.subr.mxu0 0.0
        %4158 = vmatpush2.msra.mxu0 0.0
        %4159 = vmatprep.subr.mxu0 0.0
        %4160 = vmatpush2.msra.mxu0 0.0
        %4161 = vmatprep.subr.mxu0 0.0
        %4162 = vmatpush2.msra.mxu0 0.0
        %4163 = vmatprep.subr.mxu0 0.0
        %4164 = vmatpush2.msra.mxu0 0.0
        %4165 = vmatprep.subr.mxu0 0.0
        %4166 = vmatpush2.msra.mxu0 0.0
        %4167 = vmatprep.mubr.f32.mxu0 0.0
        %4168 = vmatmul.mubr.f32.gmra.mxu0 %v4101
        %v4169 = vpop.f32.mrf.mxu0
        %v4170 = vadd.f32 0.0, %v4169
        %v4171 = vpop.f32.mrf.mxu0
        %4172 = vdwg.mxu0
        %v4174 = vsel %vm781, %v4170, 0
        %4176 = vmatprep.subr.mxu0 0.0
        %4177 = vmatpush1.msra.mxu0 0.0
        %4178 = vmatprep.subr.mxu0 0.0
        %4179 = vmatpush1.msra.mxu0 0.0
        %4180 = vmatprep.subr.mxu0 0.0
        %4181 = vmatpush1.msra.mxu0 0.0
        %4182 = vmatprep.subr.mxu0 0.0
        %4183 = vmatpush1.msra.mxu0 0.0
        %4184 = vmatprep.subr.mxu0 0.0
        %4185 = vmatpush1.msra.mxu0 0.0
        %4186 = vmatprep.subr.mxu0 0.0
        %4187 = vmatpush1.msra.mxu0 0.0
        %4188 = vmatprep.subr.mxu0 0.0
        %4189 = vmatpush1.msra.mxu0 0.0
        %4190 = vmatprep.subr.mxu0 0.0
        %4191 = vmatpush1.msra.mxu0 0.0
        %4192 = vmatprep.subr.mxu0 0.0
        %4193 = vmatpush1.msra.mxu0 0.0
        %4194 = vmatprep.subr.mxu0 0.0
        %4195 = vmatpush1.msra.mxu0 0.0
        %4196 = vmatprep.subr.mxu0 0.0
        %4197 = vmatpush1.msra.mxu0 0.0
        %4198 = vmatprep.subr.mxu0 0.0
        %4199 = vmatpush1.msra.mxu0 0.0
        %4200 = vmatprep.subr.mxu0 0.0
        %4201 = vmatpush1.msra.mxu0 0.0
        %4202 = vmatprep.subr.mxu0 0.0
        %4203 = vmatpush1.msra.mxu0 0.0
        %4204 = vmatprep.subr.mxu0 0.0
        %4205 = vmatpush1.msra.mxu0 0.0
        %4206 = vmatprep.subr.mxu0 0.0
        %4207 = vmatpush1.msra.mxu0 %v3531
        %4208 = vmatprep.subr.mxu0 0.0
        %4209 = vmatpush2.msra.mxu0 0.0
        %4210 = vmatprep.subr.mxu0 0.0
        %4211 = vmatpush2.msra.mxu0 0.0
        %4212 = vmatprep.subr.mxu0 0.0
        %4213 = vmatpush2.msra.mxu0 0.0
        %4214 = vmatprep.subr.mxu0 0.0
        %4215 = vmatpush2.msra.mxu0 0.0
        %4216 = vmatprep.subr.mxu0 0.0
        %4217 = vmatpush2.msra.mxu0 0.0
        %4218 = vmatprep.subr.mxu0 0.0
        %4219 = vmatpush2.msra.mxu0 0.0
        %4220 = vmatprep.subr.mxu0 0.0
        %4221 = vmatpush2.msra.mxu0 0.0
        %4222 = vmatprep.subr.mxu0 0.0
        %4223 = vmatpush2.msra.mxu0 0.0
        %4224 = vmatprep.subr.mxu0 0.0
        %4225 = vmatpush2.msra.mxu0 0.0
        %4226 = vmatprep.subr.mxu0 0.0
        %4227 = vmatpush2.msra.mxu0 0.0
        %4228 = vmatprep.subr.mxu0 0.0
        %4229 = vmatpush2.msra.mxu0 0.0
        %4230 = vmatprep.subr.mxu0 0.0
        %4231 = vmatpush2.msra.mxu0 0.0
        %4232 = vmatprep.subr.mxu0 0.0
        %4233 = vmatpush2.msra.mxu0 0.0
        %4234 = vmatprep.subr.mxu0 0.0
        %4235 = vmatpush2.msra.mxu0 0.0
        %4236 = vmatprep.subr.mxu0 0.0
        %4237 = vmatpush2.msra.mxu0 0.0
        %4238 = vmatprep.subr.mxu0 0.0
        %4239 = vmatpush2.msra.mxu0 0.0
        %4240 = vmatprep.mubr.f32.mxu0 0.0
        %4241 = vmatmul.mubr.f32.gmra.mxu0 %v4174
        %v4242 = vpop.f32.mrf.mxu0
        %v4243 = vadd.f32 0.0, %v4242
        %v4244 = vpop.f32.mrf.mxu0
        %4245 = vdwg.mxu0
        %v4246 = vadd.f32 %v4004, %v4243
        %4247 = vrot.lane.b32.xlu0 %v3356, 104
        %v4248 = vpop.permute.xlu0 %4247
        %4249 = vrot.lane.b32.xlu0 %v3442, 104
        %v4250 = vpop.permute.xlu0 %4249
        %v4251 = vsel %vm781, %v4248, 0
        %v4253 = vsel %vm781, %v4250, 0
        %4255 = vmatprep.subr.mxu0 0.0
        %4256 = vmatpush1.xpose.msra.mxu0 0.0
        %4257 = vmatprep.subr.mxu0 0.0
        %4258 = vmatpush1.xpose.msra.mxu0 0.0
        %4259 = vmatprep.subr.mxu0 0.0
        %4260 = vmatpush1.xpose.msra.mxu0 0.0
        %4261 = vmatprep.subr.mxu0 0.0
        %4262 = vmatpush1.xpose.msra.mxu0 0.0
        %4263 = vmatprep.subr.mxu0 0.0
        %4264 = vmatpush1.xpose.msra.mxu0 0.0
        %4265 = vmatprep.subr.mxu0 0.0
        %4266 = vmatpush1.xpose.msra.mxu0 0.0
        %4267 = vmatprep.subr.mxu0 0.0
        %4268 = vmatpush1.xpose.msra.mxu0 0.0
        %4269 = vmatprep.subr.mxu0 0.0
        %4270 = vmatpush1.xpose.msra.mxu0 0.0
        %4271 = vmatprep.subr.mxu0 0.0
        %4272 = vmatpush1.xpose.msra.mxu0 0.0
        %4273 = vmatprep.subr.mxu0 0.0
        %4274 = vmatpush1.xpose.msra.mxu0 0.0
        %4275 = vmatprep.subr.mxu0 0.0
        %4276 = vmatpush1.xpose.msra.mxu0 0.0
        %4277 = vmatprep.subr.mxu0 0.0
        %4278 = vmatpush1.xpose.msra.mxu0 0.0
        %4279 = vmatprep.subr.mxu0 0.0
        %4280 = vmatpush1.xpose.msra.mxu0 0.0
        %4281 = vmatprep.subr.mxu0 0.0
        %4282 = vmatpush1.xpose.msra.mxu0 0.0
        %4283 = vmatprep.subr.mxu0 0.0
        %4284 = vmatpush1.xpose.msra.mxu0 0.0
        %4285 = vmatprep.subr.mxu0 0.0
        %4286 = vmatpush1.xpose.msra.mxu0 %v4253
        %4287 = vmatprep.subr.mxu0 0.0
        %4288 = vmatpush2.xpose.msra.mxu0 0.0
        %4289 = vmatprep.subr.mxu0 0.0
        %4290 = vmatpush2.xpose.msra.mxu0 0.0
        %4291 = vmatprep.subr.mxu0 0.0
        %4292 = vmatpush2.xpose.msra.mxu0 0.0
        %4293 = vmatprep.subr.mxu0 0.0
        %4294 = vmatpush2.xpose.msra.mxu0 0.0
        %4295 = vmatprep.subr.mxu0 0.0
        %4296 = vmatpush2.xpose.msra.mxu0 0.0
        %4297 = vmatprep.subr.mxu0 0.0
        %4298 = vmatpush2.xpose.msra.mxu0 0.0
        %4299 = vmatprep.subr.mxu0 0.0
        %4300 = vmatpush2.xpose.msra.mxu0 0.0
        %4301 = vmatprep.subr.mxu0 0.0
        %4302 = vmatpush2.xpose.msra.mxu0 0.0
        %4303 = vmatprep.subr.mxu0 0.0
        %4304 = vmatpush2.xpose.msra.mxu0 0.0
        %4305 = vmatprep.subr.mxu0 0.0
        %4306 = vmatpush2.xpose.msra.mxu0 0.0
        %4307 = vmatprep.subr.mxu0 0.0
        %4308 = vmatpush2.xpose.msra.mxu0 0.0
        %4309 = vmatprep.subr.mxu0 0.0
        %4310 = vmatpush2.xpose.msra.mxu0 0.0
        %4311 = vmatprep.subr.mxu0 0.0
        %4312 = vmatpush2.xpose.msra.mxu0 0.0
        %4313 = vmatprep.subr.mxu0 0.0
        %4314 = vmatpush2.xpose.msra.mxu0 0.0
        %4315 = vmatprep.subr.mxu0 0.0
        %4316 = vmatpush2.xpose.msra.mxu0 0.0
        %4317 = vmatprep.subr.mxu0 0.0
        %4318 = vmatpush2.xpose.msra.mxu0 0.0
        %4319 = vmatprep.mubr.f32.mxu0 0.0
        %4320 = vmatmul.mubr.f32.gmra.mxu0 %v4251
        %v4321 = vpop.f32.mrf.mxu0
        %v4322 = vadd.f32 0.0, %v4321
        %v4323 = vpop.f32.mrf.mxu0
        %4324 = vdwg.mxu0
        %v4325 = vmul.f32 %v4322, 0.35355338
        %v4326 = vsel %vm781, %v4325, -inf
        %4327 = vmax.xlane.f32.xlu0 %v4326
        %v4328 = vpop.xlane.xlu0 %4327
        %v4329 = vsub.f32 %v4325, %v4328
        %v4330 = vmul.f32 %v4329, 1.442695
        %v4331 = vpow.pop %v4330
        %v4332 = vsel %vm781, %v4331, 0.0
        %4333 = vadd.xlane.f32.xlu0 %v4332
        %v4334 = vpop.xlane.xlu0 %4333
        %v4335 = vrcp.pop %v4334
        %v4336 = vmul.f32 %v4331, %v4335
        %4337 = vrot.lane.b32.xlu0 %v3525, 104
        %v4338 = vpop.permute.xlu0 %4337
        %v4341 = vsel %vm781, %v4336, 0
        %4343 = vmatprep.subr.mxu0 0.0
        %4344 = vmatpush1.msra.mxu0 0.0
        %4345 = vmatprep.subr.mxu0 0.0
        %4346 = vmatpush1.msra.mxu0 0.0
        %4347 = vmatprep.subr.mxu0 0.0
        %4348 = vmatpush1.msra.mxu0 0.0
        %4349 = vmatprep.subr.mxu0 0.0
        %4350 = vmatpush1.msra.mxu0 0.0
        %4351 = vmatprep.subr.mxu0 0.0
        %4352 = vmatpush1.msra.mxu0 0.0
        %4353 = vmatprep.subr.mxu0 0.0
        %4354 = vmatpush1.msra.mxu0 0.0
        %4355 = vmatprep.subr.mxu0 0.0
        %4356 = vmatpush1.msra.mxu0 0.0
        %4357 = vmatprep.subr.mxu0 0.0
        %4358 = vmatpush1.msra.mxu0 0.0
        %4359 = vmatprep.subr.mxu0 0.0
        %4360 = vmatpush1.msra.mxu0 0.0
        %4361 = vmatprep.subr.mxu0 0.0
        %4362 = vmatpush1.msra.mxu0 0.0
        %4363 = vmatprep.subr.mxu0 0.0
        %4364 = vmatpush1.msra.mxu0 0.0
        %4365 = vmatprep.subr.mxu0 0.0
        %4366 = vmatpush1.msra.mxu0 0.0
        %4367 = vmatprep.subr.mxu0 0.0
        %4368 = vmatpush1.msra.mxu0 0.0
        %4369 = vmatprep.subr.mxu0 0.0
        %4370 = vmatpush1.msra.mxu0 0.0
        %4371 = vmatprep.subr.mxu0 0.0
        %4372 = vmatpush1.msra.mxu0 0.0
        %4373 = vmatprep.subr.mxu0 0.0
        %4374 = vmatpush1.msra.mxu0 %v4338
        %4375 = vmatprep.subr.mxu0 0.0
        %4376 = vmatpush2.msra.mxu0 0.0
        %4377 = vmatprep.subr.mxu0 0.0
        %4378 = vmatpush2.msra.mxu0 0.0
        %4379 = vmatprep.subr.mxu0 0.0
        %4380 = vmatpush2.msra.mxu0 0.0
        %4381 = vmatprep.subr.mxu0 0.0
        %4382 = vmatpush2.msra.mxu0 0.0
        %4383 = vmatprep.subr.mxu0 0.0
        %4384 = vmatpush2.msra.mxu0 0.0
        %4385 = vmatprep.subr.mxu0 0.0
        %4386 = vmatpush2.msra.mxu0 0.0
        %4387 = vmatprep.subr.mxu0 0.0
        %4388 = vmatpush2.msra.mxu0 0.0
        %4389 = vmatprep.subr.mxu0 0.0
        %4390 = vmatpush2.msra.mxu0 0.0
        %4391 = vmatprep.subr.mxu0 0.0
        %4392 = vmatpush2.msra.mxu0 0.0
        %4393 = vmatprep.subr.mxu0 0.0
        %4394 = vmatpush2.msra.mxu0 0.0
        %4395 = vmatprep.subr.mxu0 0.0
        %4396 = vmatpush2.msra.mxu0 0.0
        %4397 = vmatprep.subr.mxu0 0.0
        %4398 = vmatpush2.msra.mxu0 0.0
        %4399 = vmatprep.subr.mxu0 0.0
        %4400 = vmatpush2.msra.mxu0 0.0
        %4401 = vmatprep.subr.mxu0 0.0
        %4402 = vmatpush2.msra.mxu0 0.0
        %4403 = vmatprep.subr.mxu0 0.0
        %4404 = vmatpush2.msra.mxu0 0.0
        %4405 = vmatprep.subr.mxu0 0.0
        %4406 = vmatpush2.msra.mxu0 0.0
        %4407 = vmatprep.mubr.f32.mxu0 0.0
        %4408 = vmatmul.mubr.f32.gmra.mxu0 %v4341
        %v4409 = vpop.f32.mrf.mxu0
        %v4410 = vadd.f32 0.0, %v4409
        %v4411 = vpop.f32.mrf.mxu0
        %4412 = vdwg.mxu0
        %v4414 = vsel %vm781, %v4410, 0
        %4416 = vmatprep.subr.mxu0 0.0
        %4417 = vmatpush1.msra.mxu0 0.0
        %4418 = vmatprep.subr.mxu0 0.0
        %4419 = vmatpush1.msra.mxu0 0.0
        %4420 = vmatprep.subr.mxu0 0.0
        %4421 = vmatpush1.msra.mxu0 0.0
        %4422 = vmatprep.subr.mxu0 0.0
        %4423 = vmatpush1.msra.mxu0 0.0
        %4424 = vmatprep.subr.mxu0 0.0
        %4425 = vmatpush1.msra.mxu0 0.0
        %4426 = vmatprep.subr.mxu0 0.0
        %4427 = vmatpush1.msra.mxu0 0.0
        %4428 = vmatprep.subr.mxu0 0.0
        %4429 = vmatpush1.msra.mxu0 0.0
        %4430 = vmatprep.subr.mxu0 0.0
        %4431 = vmatpush1.msra.mxu0 0.0
        %4432 = vmatprep.subr.mxu0 0.0
        %4433 = vmatpush1.msra.mxu0 0.0
        %4434 = vmatprep.subr.mxu0 0.0
        %4435 = vmatpush1.msra.mxu0 0.0
        %4436 = vmatprep.subr.mxu0 0.0
        %4437 = vmatpush1.msra.mxu0 0.0
        %4438 = vmatprep.subr.mxu0 0.0
        %4439 = vmatpush1.msra.mxu0 0.0
        %4440 = vmatprep.subr.mxu0 0.0
        %4441 = vmatpush1.msra.mxu0 0.0
        %4442 = vmatprep.subr.mxu0 0.0
        %4443 = vmatpush1.msra.mxu0 0.0
        %4444 = vmatprep.subr.mxu0 0.0
        %4445 = vmatpush1.msra.mxu0 0.0
        %4446 = vmatprep.subr.mxu0 0.0
        %4447 = vmatpush1.msra.mxu0 %v3532
        %4448 = vmatprep.subr.mxu0 0.0
        %4449 = vmatpush2.msra.mxu0 0.0
        %4450 = vmatprep.subr.mxu0 0.0
        %4451 = vmatpush2.msra.mxu0 0.0
        %4452 = vmatprep.subr.mxu0 0.0
        %4453 = vmatpush2.msra.mxu0 0.0
        %4454 = vmatprep.subr.mxu0 0.0
        %4455 = vmatpush2.msra.mxu0 0.0
        %4456 = vmatprep.subr.mxu0 0.0
        %4457 = vmatpush2.msra.mxu0 0.0
        %4458 = vmatprep.subr.mxu0 0.0
        %4459 = vmatpush2.msra.mxu0 0.0
        %4460 = vmatprep.subr.mxu0 0.0
        %4461 = vmatpush2.msra.mxu0 0.0
        %4462 = vmatprep.subr.mxu0 0.0
        %4463 = vmatpush2.msra.mxu0 0.0
        %4464 = vmatprep.subr.mxu0 0.0
        %4465 = vmatpush2.msra.mxu0 0.0
        %4466 = vmatprep.subr.mxu0 0.0
        %4467 = vmatpush2.msra.mxu0 0.0
        %4468 = vmatprep.subr.mxu0 0.0
        %4469 = vmatpush2.msra.mxu0 0.0
        %4470 = vmatprep.subr.mxu0 0.0
        %4471 = vmatpush2.msra.mxu0 0.0
        %4472 = vmatprep.subr.mxu0 0.0
        %4473 = vmatpush2.msra.mxu0 0.0
        %4474 = vmatprep.subr.mxu0 0.0
        %4475 = vmatpush2.msra.mxu0 0.0
        %4476 = vmatprep.subr.mxu0 0.0
        %4477 = vmatpush2.msra.mxu0 0.0
        %4478 = vmatprep.subr.mxu0 0.0
        %4479 = vmatpush2.msra.mxu0 0.0
        %4480 = vmatprep.mubr.f32.mxu0 0.0
        %4481 = vmatmul.mubr.f32.gmra.mxu0 %v4414
        %v4482 = vpop.f32.mrf.mxu0
        %v4483 = vadd.f32 0.0, %v4482
        %v4484 = vpop.f32.mrf.mxu0
        %4485 = vdwg.mxu0
        %v4486 = vadd.f32 %v4246, %v4483
        %s4487 = scalar_lea.vmem %s6, 11
        %v4488 = vld [vmem:[%s4487] sm:$0x1]
        %v4490 = vlaneseq
        %v4491 = vshrl.u32 %v4490, 7
        %v4492 = vsub.s32 0, %v4491
        %v4493 = vrot.slane %v4488, %v4492
        %v4495 = vadd.f32 %v4486, %v4493
        %v4496 = vadd.f32 %v3039, %v4495
        %v4497 = vsel %vm495, %v4496, 0.0
        %4498 = vadd.xlane.f32.xlu0 %v4497
        %v4499 = vpop.xlane.xlu0 %4498
        %v4500 = vmul.f32 %v4499, %v499
        %v4501 = vsub.f32 %v4496, %v4500
        %v4502 = vmul.f32 %v4501, %v4501
        %v4503 = vsel %vm495, %v4502, 0.0
        %4504 = vadd.xlane.f32.xlu0 %v4503
        %v4505 = vpop.xlane.xlu0 %4504
        %v4506 = vmul.f32 %v4505, %v499
        %v4507 = vadd.f32 %v4506, 1e-05
        %v4508 = vrsqrt.pop %v4507
        %v4509 = vmul.f32 %v4501, %v4508
        %s4510 = scalar_lea.vmem %s3, 3
        %v4511 = vld [vmem:[%s4510] sm:$0x1]
        %v4513 = vlaneseq
        %v4514 = vshrl.u32 %v4513, 7
        %v4515 = vsub.s32 0, %v4514
        %v4516 = vrot.slane %v4511, %v4515
        %v4518 = vmul.f32 %v4509, %v4516
        %s4519 = scalar_lea.vmem %s4, 3
        %v4520 = vld [vmem:[%s4519] sm:$0x1]
        %v4522 = vlaneseq
        %v4523 = vshrl.u32 %v4522, 7
        %v4524 = vsub.s32 0, %v4523
        %v4525 = vrot.slane %v4520, %v4524
        %v4527 = vadd.f32 %v4518, %v4525
        %s4528 = scalar_lea.vmem %s7, 32
        %v4529 = vld [vmem:[%s4528] sm:$0xff]
        %v4530 = vld [vmem:[%s4528 + $0x8] sm:$0xff]
        %v4531 = vld [vmem:[%s4528 + $0x10] sm:$0xff]
        %v4532 = vld [vmem:[%s4528 + $0x18] sm:$0xff]
        %s4533 = scalar_lea.vmem %s8, 1
        %v4534 = vld [vmem:[%s4533] sm:$0x1]
        %v4536 = vlaneseq
        %v4537 = vshrl.u32 %v4536, 7
        %v4538 = vsub.s32 0, %v4537
        %v4539 = vrot.slane %v4534, %v4538
        %v4542 = vsel %vm495, %v4527, 0
        %4544 = vmatprep.subr.mxu0 0.0
        %4545 = vmatpush1.msra.mxu0 0.0
        %4546 = vmatprep.subr.mxu0 0.0
        %4547 = vmatpush1.msra.mxu0 0.0
        %4548 = vmatprep.subr.mxu0 0.0
        %4549 = vmatpush1.msra.mxu0 0.0
        %4550 = vmatprep.subr.mxu0 0.0
        %4551 = vmatpush1.msra.mxu0 0.0
        %4552 = vmatprep.subr.mxu0 0.0
        %4553 = vmatpush1.msra.mxu0 0.0
        %4554 = vmatprep.subr.mxu0 0.0
        %4555 = vmatpush1.msra.mxu0 0.0
        %4556 = vmatprep.subr.mxu0 0.0
        %4557 = vmatpush1.msra.mxu0 0.0
        %4558 = vmatprep.subr.mxu0 0.0
        %4559 = vmatpush1.msra.mxu0 0.0
        %4560 = vmatprep.subr.mxu0 0.0
        %4561 = vmatpush1.msra.mxu0 0.0
        %4562 = vmatprep.subr.mxu0 0.0
        %4563 = vmatpush1.msra.mxu0 0.0
        %4564 = vmatprep.subr.mxu0 0.0
        %4565 = vmatpush1.msra.mxu0 0.0
        %4566 = vmatprep.subr.mxu0 0.0
        %4567 = vmatpush1.msra.mxu0 0.0
        %4568 = vmatprep.subr.mxu0 0.0
        %4569 = vmatpush1.msra.mxu0 %v4532
        %4570 = vmatprep.subr.mxu0 0.0
        %4571 = vmatpush1.msra.mxu0 %v4531
        %4572 = vmatprep.subr.mxu0 0.0
        %4573 = vmatpush1.msra.mxu0 %v4530
        %4574 = vmatprep.subr.mxu0 0.0
        %4575 = vmatpush1.msra.mxu0 %v4529
        %4576 = vmatprep.subr.mxu0 0.0
        %4577 = vmatpush2.msra.mxu0 0.0
        %4578 = vmatprep.subr.mxu0 0.0
        %4579 = vmatpush2.msra.mxu0 0.0
        %4580 = vmatprep.subr.mxu0 0.0
        %4581 = vmatpush2.msra.mxu0 0.0
        %4582 = vmatprep.subr.mxu0 0.0
        %4583 = vmatpush2.msra.mxu0 0.0
        %4584 = vmatprep.subr.mxu0 0.0
        %4585 = vmatpush2.msra.mxu0 0.0
        %4586 = vmatprep.subr.mxu0 0.0
        %4587 = vmatpush2.msra.mxu0 0.0
        %4588 = vmatprep.subr.mxu0 0.0
        %4589 = vmatpush2.msra.mxu0 0.0
        %4590 = vmatprep.subr.mxu0 0.0
        %4591 = vmatpush2.msra.mxu0 0.0
        %4592 = vmatprep.subr.mxu0 0.0
        %4593 = vmatpush2.msra.mxu0 0.0
        %4594 = vmatprep.subr.mxu0 0.0
        %4595 = vmatpush2.msra.mxu0 0.0
        %4596 = vmatprep.subr.mxu0 0.0
        %4597 = vmatpush2.msra.mxu0 0.0
        %4598 = vmatprep.subr.mxu0 0.0
        %4599 = vmatpush2.msra.mxu0 0.0
        %4600 = vmatprep.subr.mxu0 0.0
        %4601 = vmatpush2.msra.mxu0 0.0
        %4602 = vmatprep.subr.mxu0 0.0
        %4603 = vmatpush2.msra.mxu0 0.0
        %4604 = vmatprep.subr.mxu0 0.0
        %4605 = vmatpush2.msra.mxu0 0.0
        %4606 = vmatprep.subr.mxu0 0.0
        %4607 = vmatpush2.msra.mxu0 0.0
        %4608 = vmatprep.mubr.f32.mxu0 0.0
        %4609 = vmatmul.mubr.f32.gmra.mxu0 %v4542
        %v4610 = vpop.f32.mrf.mxu0
        %v4611 = vadd.f32 %v4539, %v4610
        %v4612 = vpop.f32.mrf.mxu0
        %4613 = vdwg.mxu0
        %v4614 = vmul.f32 %v4611, 0.5
        %v4615 = vmul.f32 %v4611, 0.70710677
        %vm4616 = vcmp.ge.f32.partialorder %v4615, 0.0
        %v4617 = vsel %vm4616, 1.0, -1.0
        %v4618 = vand.u32 2147483647, %v4615
        %v4619 = vmul.f32 %v4618, 0.3275911
        %v4620 = vadd.f32 %v4619, 1.0
        %v4621 = vrcp.pop %v4620
        %v4622 = vmul.f32 1.0, %v4621
        %v4623 = vmul.f32 %v4622, 1.0614054
        %v4624 = vadd.f32 %v4623, -1.4531521
        %v4625 = vmul.f32 %v4624, %v4622
        %v4626 = vadd.f32 %v4625, 1.4214138
        %v4627 = vmul.f32 %v4626, %v4622
        %v4628 = vadd.f32 %v4627, -0.28449672
        %v4629 = vmul.f32 %v4628, %v4622
        %v4630 = vadd.f32 %v4629, 0.2548296
        %v4631 = vmul.f32 %v4630, %v4622
        %v4632 = vsub.f32 0.0, %v4618
        %v4633 = vmul.f32 %v4632, %v4618
        %v4634 = vmul.f32 %v4633, 1.442695
        %v4635 = vpow.pop %v4634
        %v4636 = vmul.f32 %v4631, %v4635
        %v4637 = vsub.f32 1.0, %v4636
        %v4638 = vmul.f32 %v4617, %v4637
        %v4639 = vadd.f32 %v4638, 1.0
        %v4640 = vmul.f32 %v4614, %v4639
        %s4641 = scalar_lea.vmem %s9, 128
        %v4642 = vld [vmem:[%s4641] sm:$0xff]
        %v4643 = vld [vmem:[%s4641 + $0x8] sm:$0xff]
        %v4644 = vld [vmem:[%s4641 + $0x10] sm:$0xff]
        %v4645 = vld [vmem:[%s4641 + $0x18] sm:$0xff]
        %v4646 = vld [vmem:[%s4641 + $0x20] sm:$0xff]
        %v4647 = vld [vmem:[%s4641 + $0x28] sm:$0xff]
        %v4648 = vld [vmem:[%s4641 + $0x30] sm:$0xff]
        %v4649 = vld [vmem:[%s4641 + $0x38] sm:$0xff]
        %v4650 = vld [vmem:[%s4641 + $0x40] sm:$0xff]
        %v4651 = vld [vmem:[%s4641 + $0x48] sm:$0xff]
        %v4652 = vld [vmem:[%s4641 + $0x50] sm:$0xff]
        %v4653 = vld [vmem:[%s4641 + $0x58] sm:$0xff]
        %v4654 = vld [vmem:[%s4641 + $0x60] sm:$0xff]
        %v4655 = vld [vmem:[%s4641 + $0x68] sm:$0xff]
        %v4656 = vld [vmem:[%s4641 + $0x70] sm:$0xff]
        %v4657 = vld [vmem:[%s4641 + $0x78] sm:$0xff]
        %s4658 = scalar_lea.vmem %s10, 1
        %v4659 = vld [vmem:[%s4658] sm:$0x1]
        %v4661 = vlaneseq
        %v4662 = vshrl.u32 %v4661, 7
        %v4663 = vsub.s32 0, %v4662
        %v4664 = vrot.slane %v4659, %v4663
        %4666 = vmatprep.subr.mxu0 0.0
        %4667 = vmatpush1.msra.mxu0 %v4657
        %4668 = vmatprep.subr.mxu0 0.0
        %4669 = vmatpush1.msra.mxu0 %v4656
        %4670 = vmatprep.subr.mxu0 0.0
        %4671 = vmatpush1.msra.mxu0 %v4655
        %4672 = vmatprep.subr.mxu0 0.0
        %4673 = vmatpush1.msra.mxu0 %v4654
        %4674 = vmatprep.subr.mxu0 0.0
        %4675 = vmatpush1.msra.mxu0 %v4653
        %4676 = vmatprep.subr.mxu0 0.0
        %4677 = vmatpush1.msra.mxu0 %v4652
        %4678 = vmatprep.subr.mxu0 0.0
        %4679 = vmatpush1.msra.mxu0 %v4651
        %4680 = vmatprep.subr.mxu0 0.0
        %4681 = vmatpush1.msra.mxu0 %v4650
        %4682 = vmatprep.subr.mxu0 0.0
        %4683 = vmatpush1.msra.mxu0 %v4649
        %4684 = vmatprep.subr.mxu0 0.0
        %4685 = vmatpush1.msra.mxu0 %v4648
        %4686 = vmatprep.subr.mxu0 0.0
        %4687 = vmatpush1.msra.mxu0 %v4647
        %4688 = vmatprep.subr.mxu0 0.0
        %4689 = vmatpush1.msra.mxu0 %v4646
        %4690 = vmatprep.subr.mxu0 0.0
        %4691 = vmatpush1.msra.mxu0 %v4645
        %4692 = vmatprep.subr.mxu0 0.0
        %4693 = vmatpush1.msra.mxu0 %v4644
        %4694 = vmatprep.subr.mxu0 0.0
        %4695 = vmatpush1.msra.mxu0 %v4643
        %4696 = vmatprep.subr.mxu0 0.0
        %4697 = vmatpush1.msra.mxu0 %v4642
        %4698 = vmatprep.subr.mxu0 0.0
        %4699 = vmatpush2.msra.mxu0 0.0
        %4700 = vmatprep.subr.mxu0 0.0
        %4701 = vmatpush2.msra.mxu0 0.0
        %4702 = vmatprep.subr.mxu0 0.0
        %4703 = vmatpush2.msra.mxu0 0.0
        %4704 = vmatprep.subr.mxu0 0.0
        %4705 = vmatpush2.msra.mxu0 0.0
        %4706 = vmatprep.subr.mxu0 0.0
        %4707 = vmatpush2.msra.mxu0 0.0
        %4708 = vmatprep.subr.mxu0 0.0
        %4709 = vmatpush2.msra.mxu0 0.0
        %4710 = vmatprep.subr.mxu0 0.0
        %4711 = vmatpush2.msra.mxu0 0.0
        %4712 = vmatprep.subr.mxu0 0.0
        %4713 = vmatpush2.msra.mxu0 0.0
        %4714 = vmatprep.subr.mxu0 0.0
        %4715 = vmatpush2.msra.mxu0 0.0
        %4716 = vmatprep.subr.mxu0 0.0
        %4717 = vmatpush2.msra.mxu0 0.0
        %4718 = vmatprep.subr.mxu0 0.0
        %4719 = vmatpush2.msra.mxu0 0.0
        %4720 = vmatprep.subr.mxu0 0.0
        %4721 = vmatpush2.msra.mxu0 0.0
        %4722 = vmatprep.subr.mxu0 0.0
        %4723 = vmatpush2.msra.mxu0 0.0
        %4724 = vmatprep.subr.mxu0 0.0
        %4725 = vmatpush2.msra.mxu0 0.0
        %4726 = vmatprep.subr.mxu0 0.0
        %4727 = vmatpush2.msra.mxu0 0.0
        %4728 = vmatprep.subr.mxu0 0.0
        %4729 = vmatpush2.msra.mxu0 0.0
        %4730 = vmatprep.mubr.f32.mxu0 0.0
        %4731 = vmatmul.mubr.f32.gmra.mxu0 %v4640
        %v4732 = vpop.f32.mrf.mxu0
        %v4733 = vadd.f32 %v4664, %v4732
        %v4734 = vpop.f32.mrf.mxu0
        %4735 = vdwg.mxu0
        %v4736 = vadd.f32 %v4496, %v4733
        %4737 = vst.msk [vmem:[%s463] sm:$0xff] %vm495, %v4496
        %4738 = vst.msk [vmem:[%s470] sm:$0xff] %vm495, %v3275
        %4739 = vst.msk [vmem:[%s477] sm:$0xff] %vm495, %v4736
        %s4740 = sand.u32 %s285, 1
        %s4741 = scalar_lea.sflag [#allocation3], %s4740
        %s4742 = sand.u32 %s285, 1
        %s4743 = smul.addr %s4742, 8
        %s4744 = scalar_lea.vmem [#allocation2], %s4743
        %s4745 = sand.u32 %s31, 1
        %s4746 = scalar_lea.sflag [#allocation5], %s4745
        %s4747 = sand.u32 %s311, 1
        %s4748 = smul.addr %s4747, 8
        %s4749 = scalar_lea.vmem [#allocation4], %s4748
        %s4750 = sand.u32 %s31, 1
        %s4751 = scalar_lea.sflag [#allocation5], %s4750
        %s4752 = sand.u32 %s337, 1
        %s4753 = smul.addr %s4752, 8
        %s4754 = scalar_lea.vmem [#allocation6], %s4753
        // Predicated region
        $region65: #{dual_attention_forward.1} parent=63 // pred_check
          %p4755 = pneg %p295
        $region66: #{dual_attention_forward.1} parent=63 // pred_check_branch
          %4757 = sbr.rel (%p4755) target = $region68
        $region67: #{dual_attention_forward.1} parent=63 // pred_region
          %s4759 = ssub.s32 128, 128
          %4760 = vsyncadd %s4741, %s4759
          %s4761 = smul.addr %s31, 128
          %s4762 = scalar_lea.hbm %s11, %s4761
          %s4764 = sshll.u32 %s4744, 4
          %s4765 = int_to_ptr.vmem [resolvable:$true] %s4764
          %4767 = dma.vmem_to_hbm [thread:$0]  %s4765, 128, %s4762, %s4741
        $region68: #{dual_attention_forward.1} parent=63 // pred_fallthru
          _
        // Predicated region
        $region69: #{dual_attention_forward.1} parent=63 // pred_check
          %p4768 = pneg %p321
        $region70: #{dual_attention_forward.1} parent=63 // pred_check_branch
          %4770 = sbr.rel (%p4768) target = $region72
        $region71: #{dual_attention_forward.1} parent=63 // pred_region
          %s4772 = ssub.s32 128, 128
          %4773 = vsyncadd %s4746, %s4772
          %s4774 = smul.addr %s31, 128
          %s4775 = scalar_lea.hbm %s12, %s4774
          %s4777 = sshll.u32 %s4749, 4
          %s4778 = int_to_ptr.vmem [resolvable:$true] %s4777
          %4780 = dma.vmem_to_hbm [thread:$0]  %s4778, 128, %s4775, %s4746
        $region72: #{dual_attention_forward.1} parent=63 // pred_fallthru
          _
        // Predicated region
        $region73: #{dual_attention_forward.1} parent=63 // pred_check
          %p4781 = pneg %p347
        $region74: #{dual_attention_forward.1} parent=63 // pred_check_branch
          %4783 = sbr.rel (%p4781) target = $region76
        $region75: #{dual_attention_forward.1} parent=63 // pred_region
          %s4785 = ssub.s32 128, 128
          %4786 = vsyncadd %s4751, %s4785
          %s4787 = smul.addr %s31, 128
          %s4788 = scalar_lea.hbm %s13, %s4787
          %s4790 = sshll.u32 %s4754, 4
          %s4791 = int_to_ptr.vmem [resolvable:$true] %s4790
          %4793 = dma.vmem_to_hbm [thread:$0]  %s4791, 128, %s4788, %s4751
        $region76: #{dual_attention_forward.1} parent=63 // pred_fallthru
          _
      $region64: #{dual_attention_forward.1} parent=5 // pred_fallthru
        _
      %p4794 = scmp.le.s32.totalorder 2, %s26
      // Predicated region
      $region77: #{dual_attention_forward.1} parent=5 // pred_check
        %p4795 = pneg %p4794
      $region78: #{dual_attention_forward.1} parent=5 // pred_check_branch
        %4797 = sbr.rel (%p4795) target = $region80
      $region79: #{dual_attention_forward.1} parent=5 // pred_region
        %s4798 = ssub.s32 %s26, 2
        // Predicated region
        $region81: #{dual_attention_forward.1} parent=79 // pred_check
          %p4799 = pneg %p301
        $region82: #{dual_attention_forward.1} parent=79 // pred_check_branch
          %4801 = sbr.rel (%p4799) target = $region84
        $region83: #{dual_attention_forward.1} parent=79 // pred_region
          %s4802 = sand.u32 %s286, 1
          %s4803 = scalar_lea.sflag [#allocation3], %s4802
          %s4804 = sand.u32 %s286, 1
          %s4805 = smul.addr %s4804, 8
          %s4806 = scalar_lea.vmem [#allocation2], %s4805
          %4807 = dma.done %s4803, 128
        $region84: #{dual_attention_forward.1} parent=79 // pred_fallthru
          _
        // Predicated region
        $region85: #{dual_attention_forward.1} parent=79 // pred_check
          %p4808 = pneg %p327
        $region86: #{dual_attention_forward.1} parent=79 // pred_check_branch
          %4810 = sbr.rel (%p4808) target = $region88
        $region87: #{dual_attention_forward.1} parent=79 // pred_region
          %s4811 = sand.u32 %s32, 1
          %s4812 = scalar_lea.sflag [#allocation5], %s4811
          %s4813 = sand.u32 %s312, 1
          %s4814 = smul.addr %s4813, 8
          %s4815 = scalar_lea.vmem [#allocation4], %s4814
          %4816 = dma.done %s4812, 128
        $region88: #{dual_attention_forward.1} parent=79 // pred_fallthru
          _
        // Predicated region
        $region89: #{dual_attention_forward.1} parent=79 // pred_check
          %p4817 = pneg %p353
        $region90: #{dual_attention_forward.1} parent=79 // pred_check_branch
          %4819 = sbr.rel (%p4817) target = $region92
        $region91: #{dual_attention_forward.1} parent=79 // pred_region
          %s4820 = sand.u32 %s32, 1
          %s4821 = scalar_lea.sflag [#allocation5], %s4820
          %s4822 = sand.u32 %s338, 1
          %s4823 = smul.addr %s4822, 8
          %s4824 = scalar_lea.vmem [#allocation6], %s4823
          %4825 = dma.done %s4821, 128
        $region92: #{dual_attention_forward.1} parent=79 // pred_fallthru
          _
      $region80: #{dual_attention_forward.1} parent=5 // pred_fallthru
        _
    $region6: #{dual_attention_forward.1} parent=1 // loop_footer
      %s30 = sadd.s32 1, %s26
    $region7: #{dual_attention_forward.1} parent=1 // loop_footer_branch
      %25 = sbr.rel target = $region3
    $region8: #{dual_attention_forward.1} parent=1 // loop_exit
      _
    %4826 = vsyncpa [#allocation3], 1
    %s4827 = scalar_lea.sflag [#allocation3], 1
    %4828 = vsyncpa %s4827, 1
    %4829 = vsyncpa [#allocation5], 1
    %s4830 = scalar_lea.sflag [#allocation5], 1
    %4831 = vsyncpa %s4830, 1

</llo_original>
